<compile_context>
chip_gen: v5e
topology: v5e:2x2
jax: 0.10.0
libtpu: 0.0.40
codegen_flags: <defaults>
</compile_context>

<pallas_src>
import functools

import numpy as np

import jax
import jax.numpy as jnp
from jax.experimental import pallas as pl
from jax.experimental.pallas import tpu as pltpu


def _round_up(x, m):
    return (x + m - 1) // m * m


def _cdiv(a, b):
    return (a + b - 1) // b


# --------------------------------------------------------------------------
# Kernel
# --------------------------------------------------------------------------
def _attention_conv_kernel(x_lo_ref, x_hi_ref, w_ref, rel_ref, o_ref, *,
                           ksize, pad, use_roll, newton):
    # x_lo_ref : (1, TH, Wp, C_in)  padded-input rows [j*TH, j*TH+TH)
    # x_hi_ref : (1, HB, Wp, C_in)  start of the *next* row-block (halo rows)
    # w_ref    : (C_in, 3*C_out)    fused [ q | k | v ] 1x1-conv weight
    # rel_ref  : (k*k, C_out)       rel table, row index = dy*k + dx
    # o_ref    : (1, TH, W, C_out)
    _, TH, Wp, C_in = x_lo_ref.shape
    _, _, W, C = o_ref.shape
    R = TH + 2 * pad                       # k/v rows needed for TH output rows

    # ---- assemble the haloed input slab (R, Wp, C_in) ---------------------
    x_lo = x_lo_ref[0]
    if pad > 0:
        x_hi = x_hi_ref[0, :2 * pad]       # first 2*pad rows of the next block
        x_slab = jnp.concatenate([x_lo, x_hi], axis=0)
    else:
        x_slab = x_lo

    # ---- fused q/k/v 1x1 conv: one MXU matmul, N = 3*C_out ----------------
    # (bf16 inputs by default, f32 accumulation.)
    xf = x_slab.reshape(R * Wp, C_in).astype(w_ref.dtype)
    qkv = jnp.dot(xf, w_ref[...], preferred_element_type=jnp.float32)  # (R*Wp, 3C)

    def width_shift(flat, dx):
        # (R*Wp, C) -> (R, W, C) with out[r, x] = flat[r*Wp + x + dx].
        # dx <= 2*pad <= Wp - W, so the consumed region never crosses a row
        # boundary (the roll's wrapped tail lands in columns >= Wp - dx >= W).
        if dx > 0 and use_roll:
            rolled = pltpu.roll(flat, R * Wp - dx, axis=0)   # XLU sublane rotate
            return rolled.reshape(R, Wp, C)[:, :W, :]
        return flat.reshape(R, Wp, C)[:, dx:dx + W, :]       # fallback: slice

    q_rows = width_shift(qkv[:, 0 * C:1 * C], pad)           # (R, W, C)
    q = q_rows[pad:pad + TH]                                  # (TH, W, C) interior
    # One width shift per window column, reused by both softmax passes.
    k_sh = [width_shift(qkv[:, 1 * C:2 * C], dx) for dx in range(ksize)]
    v_sh = [width_shift(qkv[:, 2 * C:3 * C], dx) for dx in range(ksize)]

    rel = rel_ref[...]                                        # (k*k, C)

    # ---- two-pass softmax over the k*k window ------------------------------
    # Pass 1: window max (VPU only — mul/add/max).
    m = None
    for dy in range(ksize):
        for dx in range(ksize):
            logits = q * (k_sh[dx][dy:dy + TH] + rel[dy * ksize + dx])
            m = logits if m is None else jnp.maximum(m, logits)

    # Pass 2: recompute logits (cheap VPU), single exp per window element (EUP).
    den = jnp.zeros((TH, W, C), jnp.float32)
    num = jnp.zeros((TH, W, C), jnp.float32)
    for dy in range(ksize):
        for dx in range(ksize):
            logits = q * (k_sh[dx][dy:dy + TH] + rel[dy * ksize + dx])
            p_exp = jnp.exp(logits - m)
            den = den + p_exp
            num = num + p_exp * v_sh[dx][dy:dy + TH]

    inv = pl.reciprocal(den, approx=True)                     # EUP reciprocal
    if newton:
        inv = inv * (2.0 - den * inv)                         # optional refine
    o_ref[...] = (num * inv).reshape(1, TH, W, C).astype(o_ref.dtype)


# --------------------------------------------------------------------------
# Tile sizing / VMEM budgeting (generation-aware)
# --------------------------------------------------------------------------
def _tile_working_set_bytes(th, W, C_in, C_out, ksize, pad, in_bytes=4):
    """Rough upper bound on the per-grid-step VMEM working set."""
    R = th + 2 * pad
    Wp = _round_up(W + 2 * pad, 8)
    f32 = 4
    elems_f32 = (
        R * Wp * 3 * C_out            # fused qkv matmul result
        + 2 * ksize * R * W * C_out   # shifted k/v copies kept across both passes
        + R * W * C_out               # shifted q rows
        + 6 * th * W * C_out          # q, m, den, num + elementwise transients
        + 3 * th * W * C_out          # output block (double buffered) + store temp
    )
    bytes_in = (R * Wp * C_in                 # assembled x slab (matmul dtype)
                + 4 * th * Wp * C_in          # lo/hi input blocks, double buffered
                ) * in_bytes
    return f32 * elems_f32 + bytes_in


def _vmem_budget_and_cap():
    """Tile budget / vmem_limit cap per generation (v7x: 64 MiB, v5e/v6e: 128)."""
    cap = 128 * 2 ** 20
    try:
        cap = int(getattr(pltpu.get_tpu_info(), "vmem_capacity_bytes", cap))
    except Exception:
        pass
    if cap <= 64 * 2 ** 20:                       # v7x-class: leave headroom
        return (3 * cap) // 8, min(48 * 2 ** 20, (3 * cap) // 4)
    return 40 * 2 ** 20, 96 * 2 ** 20             # v5e / v6e (128 MiB VMEM)


def _pick_tile_rows(H, W, C_in, C_out, ksize, pad, budget_bytes, *,
                    max_tile=None, in_bytes=4):
    """Largest row tile (>= 2*pad) whose working set fits the budget."""
    lo = max(2 * pad, 1)
    hi = H if max_tile is None else min(H, max(lo, max_tile))
    for th in range(hi, lo - 1, -1):
        if _tile_working_set_bytes(th, W, C_in, C_out, ksize, pad,
                                   in_bytes) <= budget_bytes:
            return th
    return lo


# --------------------------------------------------------------------------
# Wrapper
# --------------------------------------------------------------------------
def attention_conv(x_nchw, wq, wk, wv, rel_h, rel_w, *, kernel_size, padding,
                   stride=1, groups=1, tile_rows=None,
                   matmul_dtype=jnp.bfloat16, use_xlu_roll=True,
                   refine_reciprocal=False, vmem_budget_bytes=None):
    """Pallas implementation of AttentionConv.forward.

    x_nchw : (B, C_in, H, W) float32
    wq/wk/wv : PyTorch Conv2d 1x1 weights, shape (C_out, C_in, 1, 1)
    rel_h : (C_out//2, 1, 1, k, 1),  rel_w : (C_out//2, 1, 1, 1, k)
    Returns (B, C_out, H, W) float32.
    """
    assert stride == 1, "only stride=1 is supported (see module-level TODO)"
    B, C_in, H, W = x_nchw.shape
    C_out = wq.shape[0]
    k, p = kernel_size, padding
    assert H + 2 * p - k + 1 == H and W + 2 * p - k + 1 == W, \
        "padding must preserve spatial dims (as the PyTorch forward requires)"
    # groups only changes a view in the PyTorch forward; the per-channel
    # softmax / einsum are unchanged, so the math is group-invariant.
    assert C_out % groups == 0 and C_out % 2 == 0

    in_bytes = np.dtype(matmul_dtype).itemsize
    budget, limit_cap = _vmem_budget_and_cap()
    if vmem_budget_bytes is not None:
        budget = int(vmem_budget_bytes)

    # ---- row-tile selection (bounds VMEM; keeps >= 2 grid steps when B == 1
    #      so a 2-TensorCore chip (v7x) can split the 'parallel' axes). -------
    if tile_rows is None:
        max_tile = H if B >= 2 else max(1, _cdiv(H, 2))
        th = _pick_tile_rows(H, W, C_in, C_out, k, p, budget,
                             max_tile=max_tile, in_bytes=in_bytes)
    else:
        th = int(tile_rows)
    assert th >= max(2 * p, 1), "tile_rows must cover the 2*pad halo"
    n_tiles = _cdiv(H, th)
    H_eff = n_tiles * th                 # H padded up; extra rows sliced off below

    # ---- halo operand: smallest row-block dividing the tile that covers the
    #      2*pad halo rows, so the redundant re-read of x stays tiny. ---------
    hb = next(d for d in range(1, th + 1) if th % d == 0 and d >= max(2 * p, 1))
    step = th // hb
    if p > 0:
        hi_index_map = lambda b, j: (b, (j + 1) * step, 0, 0)
    else:
        hi_index_map = lambda b, j: (b, j * step, 0, 0)     # unused when p == 0

    # ---- host-side layout prep: NCHW -> NHWC, zero pad, cast to MXU dtype.
    #      Bottom padding covers (a) the rows added to round H up to n_tiles*th
    #      and (b) the last tile's halo block, so its DMA never goes OOB.
    Wp = _round_up(W + 2 * p, 8)          # keep the sublane dim 8-aligned
    bottom = (H_eff - H) + (max(p, hb - p) if p > 0 else 0)
    x = jnp.transpose(x_nchw, (0, 2, 3, 1))
    x_pad = jnp.pad(x, ((0, 0), (p, bottom), (p, Wp - W - p), (0, 0)))
    x_pad = x_pad.astype(matmul_dtype)    # halves the input DMA bytes for bf16

    # ---- fused (C_in, 3*C_out) weight:  [ q | k | v ] -----------------------
    w_q = jnp.transpose(wq[:, :, 0, 0], (1, 0))
    w_k = jnp.transpose(wk[:, :, 0, 0], (1, 0))
    w_v = jnp.transpose(wv[:, :, 0, 0], (1, 0))
    w_qkv = jnp.concatenate([w_q, w_k, w_v], axis=1).astype(matmul_dtype)

    # ---- combined relative-position table: rel_flat[dy*k + dx, c] -----------
    #   first  C_out//2 channels use rel_h[c, dy]  (varies with window row)
    #   second C_out//2 channels use rel_w[c, dx]  (varies with window col)
    ch = C_out // 2
    rel_h_sq = rel_h[:, 0, 0, :, 0]                                   # (ch, k)
    rel_w_sq = rel_w[:, 0, 0, 0, :]                                   # (ch, k)
    rel_full = jnp.concatenate(
        [jnp.broadcast_to(rel_h_sq[:, :, None], (ch, k, k)),
         jnp.broadcast_to(rel_w_sq[:, None, :], (ch, k, k))], axis=0)  # (C,k,k)
    rel_flat = jnp.transpose(rel_full, (1, 2, 0)).reshape(k * k, C_out)
    rel_flat = rel_flat.astype(jnp.float32)

    est = _tile_working_set_bytes(th, W, C_in, C_out, k, p, in_bytes)
    vmem_limit = int(min(limit_cap, max(16 * 2 ** 20, 2 * est)))

    kernel = functools.partial(_attention_conv_kernel, ksize=k, pad=p,
                               use_roll=bool(use_xlu_roll),
                               newton=bool(refine_reciprocal))

    out_nhwc = pl.pallas_call(
        kernel,
        out_shape=jax.ShapeDtypeStruct((B, H_eff, W, C_out), jnp.float32),
        grid_spec=pltpu.PrefetchScalarGridSpec(
            num_scalar_prefetch=0,
            grid=(B, n_tiles),
            in_specs=[
                pl.BlockSpec((1, th, Wp, C_in), lambda b, j: (b, j, 0, 0)),
                pl.BlockSpec((1, hb, Wp, C_in), hi_index_map),
                pl.BlockSpec((C_in, 3 * C_out), lambda b, j: (0, 0)),
                pl.BlockSpec((k * k, C_out), lambda b, j: (0, 0)),
            ],
            out_specs=pl.BlockSpec((1, th, W, C_out), lambda b, j: (b, j, 0, 0)),
        ),
        compiler_params=pltpu.CompilerParams(
            dimension_semantics=("parallel", "parallel"),
            vmem_limit_bytes=vmem_limit),
    )(x_pad, x_pad, w_qkv, rel_flat)

    # Back to the PyTorch NCHW contract (drop the rows added to round H up).
    return jnp.transpose(out_nhwc, (0, 3, 1, 2))[:, :, :H, :]


# --------------------------------------------------------------------------
# Pure-JAX reference (mirror of the PyTorch forward) for the self-check
# --------------------------------------------------------------------------
def attention_conv_reference(x, wq, wk, wv, rel_h, rel_w, *, kernel_size, padding):
    B, C_in, H, W = x.shape
    C_out = wq.shape[0]
    k, p = kernel_size, padding
    q = jnp.einsum('bchw,oc->bohw', x, wq[:, :, 0, 0])
    xp = jnp.pad(x, ((0, 0), (0, 0), (p, p), (p, p)))
    kf = jnp.einsum('bchw,oc->bohw', xp, wk[:, :, 0, 0])
    vf = jnp.einsum('bchw,oc->bohw', xp, wv[:, :, 0, 0])
    k_win = jnp.stack([kf[:, :, dy:dy + H, dx:dx + W]
                       for dy in range(k) for dx in range(k)], axis=-1)
    v_win = jnp.stack([vf[:, :, dy:dy + H, dx:dx + W]
                       for dy in range(k) for dx in range(k)], axis=-1)
    ch = C_out // 2
    rel_h_sq = rel_h[:, 0, 0, :, 0]
    rel_w_sq = rel_w[:, 0, 0, 0, :]
    rel = jnp.concatenate(
        [jnp.broadcast_to(rel_h_sq[:, :, None], (ch, k, k)),
         jnp.broadcast_to(rel_w_sq[:, None, :], (ch, k, k))], axis=0
    ).reshape(C_out, k * k)
    k_win = k_win + rel[None, :, None, None, :]
    logits = q[..., None] * k_win
    att = jax.nn.softmax(logits, axis=-1)
    return jnp.sum(att * v_win, axis=-1)


if __name__ == "__main__":
    # Small but lane-friendly demo config: channels ride the 128-lane axis,
    # so C_out = 128 keeps the softmax and output stores lane-dense.
    B, C_in, C_out = 2, 32, 128
    H = W = 16
    KSIZE, PAD, STRIDE, GROUPS = 3, 1, 1, 1

    key = jax.random.PRNGKey(0)
    kx, kq, kk_, kv, krh, krw = jax.random.split(key, 6)

    x = jax.random.normal(kx, (B, C_in, H, W), jnp.float32)
    # Kaiming-normal (fan_out, relu) std = sqrt(2 / fan_out); 1x1 conv fan_out = C_out.
    std = (2.0 / C_out) ** 0.5
    wq = std * jax.random.normal(kq, (C_out, C_in, 1, 1), jnp.float32)
    wk = std * jax.random.normal(kk_, (C_out, C_in, 1, 1), jnp.float32)
    wv = std * jax.random.normal(kv, (C_out, C_in, 1, 1), jnp.float32)
    rel_h = jax.random.normal(krh, (C_out // 2, 1, 1, KSIZE, 1), jnp.float32)
    rel_w = jax.random.normal(krw, (C_out // 2, 1, 1, 1, KSIZE), jnp.float32)

    def run(**overrides):
        kwargs = dict(kernel_size=KSIZE, padding=PAD, stride=STRIDE,
                      groups=GROUPS)
        kwargs.update(overrides)
        try:
            out = attention_conv(x, wq, wk, wv, rel_h, rel_w, **kwargs)
        except Exception:
            # TODO(synk): if the XLU sublane-roll width shift fails to lower on
            # this backend, retry with the plain-slice fallback path.
            kwargs["use_xlu_roll"] = False
            out = attention_conv(x, wq, wk, wv, rel_h, rel_w, **kwargs)
        return jax.block_until_ready(out)

    # 1) Strict check: f32 MXU inputs + Newton-refined reciprocal, two row
    #    tiles (exercises the halo path).
    out32 = run(matmul_dtype=jnp.float32, refine_reciprocal=True, tile_rows=8)
    ref32 = attention_conv_reference(x, wq, wk, wv, rel_h, rel_w,
                                     kernel_size=KSIZE, padding=PAD)
    assert out32.shape == (B, C_out, H, W)
    assert jnp.allclose(out32, ref32, atol=1e-4, rtol=1e-4), "f32 mismatch"

    # 2) Default fast path: bf16 MXU inputs, approx reciprocal, auto tiling /
    #    generation-aware VMEM budget.  Compared against a reference fed
    #    bf16-quantized x / weights so the tolerance only absorbs the approx
    #    reciprocal and accumulation order, not the intentional quantization.
    outbf = run()
    q16 = lambda a: a.astype(jnp.bfloat16).astype(jnp.float32)
    refbf = attention_conv_reference(q16(x), q16(wq), q16(wk), q16(wv),
                                     rel_h, rel_w,
                                     kernel_size=KSIZE, padding=PAD)
    assert outbf.shape == (B, C_out, H, W)
    assert jnp.allclose(outbf, refbf, atol=2e-2, rtol=2e-2), "bf16 mismatch"

    print("KERNEL_OK")
</pallas_src>

<mosaic_0001>
module attributes {stable_mosaic.version = 11 : i64} {
  func.func @_attention_conv_kernel(%arg0: i32, %arg1: i32, %arg2: memref<1x8x24x32xf32, #tpu.memory_space<vmem>>, %arg3: memref<1x2x24x32xf32, #tpu.memory_space<vmem>>, %arg4: memref<32x384xf32, #tpu.memory_space<vmem>>, %arg5: memref<9x128xf32, #tpu.memory_space<vmem>>, %arg6: memref<1x8x16x128xf32, #tpu.memory_space<vmem>>) attributes {dimension_semantics = [#tpu.dimension_semantics<parallel>, #tpu.dimension_semantics<parallel>], iteration_bounds = array<i64: 2, 2>, scalar_prefetch = 0 : i64, scratch_operands = 0 : i64, tpu.core_type = #tpu.core_type<tc>, window_params = [{transform_indices = @transform_0, window_bounds = array<i64: 1, 8, 24, 32>}, {transform_indices = @transform_1, window_bounds = array<i64: 1, 2, 24, 32>}, {pipeline_mode = #tpu.pipeline_mode<synchronous>, transform_indices = @transform_2, window_bounds = array<i64: 32, 384>}, {pipeline_mode = #tpu.pipeline_mode<synchronous>, transform_indices = @transform_3, window_bounds = array<i64: 9, 128>}, {transform_indices = @transform_4, window_bounds = array<i64: 1, 8, 16, 128>}]} {
    %c0 = arith.constant 0 : index
    %c0_0 = arith.constant 0 : index
    %c0_1 = arith.constant 0 : index
    %c0_2 = arith.constant 0 : index
    %0 = vector.load %arg2[%c0, %c0_0, %c0_1, %c0_2] : memref<1x8x24x32xf32, #tpu.memory_space<vmem>>, vector<1x8x24x32xf32>
    %1 = vector.shape_cast %0 : vector<1x8x24x32xf32> to vector<8x24x32xf32>
    %c0_3 = arith.constant 0 : index
    %c0_4 = arith.constant 0 : index
    %c0_5 = arith.constant 0 : index
    %c0_6 = arith.constant 0 : index
    %2 = vector.load %arg3[%c0_3, %c0_4, %c0_5, %c0_6] : memref<1x2x24x32xf32, #tpu.memory_space<vmem>>, vector<1x2x24x32xf32>
    %3 = vector.shape_cast %2 : vector<1x2x24x32xf32> to vector<2x24x32xf32>
    %4 = tpu.concatenate %1, %3 in 0 : vector<8x24x32xf32>, vector<2x24x32xf32> -> vector<10x24x32xf32>
    %5 = vector.shape_cast %4 : vector<10x24x32xf32> to vector<240x32xf32>
    %c0_7 = arith.constant 0 : index
    %c0_8 = arith.constant 0 : index
    %6 = vector.load %arg4[%c0_7, %c0_8] : memref<32x384xf32, #tpu.memory_space<vmem>>, vector<32x384xf32>
    %cst = arith.constant dense<0.000000e+00> : vector<240x384xf32>
    %7 = tpu.matmul %5, %6, %cst {dimension_numbers = #tpu.dot_dimension_numbers<[1], [0], [0], [1], [0, 0, 1, 1], [], []>} : vector<240x32xf32>, vector<32x384xf32>, vector<240x384xf32> -> vector<240x384xf32>
    %8 = vector.extract_strided_slice %7 {offsets = [0, 0], sizes = [240, 128], strides = [1, 1]} : vector<240x384xf32> to vector<240x128xf32>
    %c239_i32 = arith.constant 239 : i32
    %9 = tpu.dynamic_rotate %8 by %c239_i32 dim 0 : vector<240x128xf32>, i32 -> vector<240x128xf32>
    %10 = vector.shape_cast %9 : vector<240x128xf32> to vector<10x24x128xf32>
    %11 = vector.extract_strided_slice %10 {offsets = [0, 0, 0], sizes = [10, 16, 128], strides = [1, 1, 1]} : vector<10x24x128xf32> to vector<10x16x128xf32>
    %12 = vector.extract_strided_slice %11 {offsets = [1, 0, 0], sizes = [8, 16, 128], strides = [1, 1, 1]} : vector<10x16x128xf32> to vector<8x16x128xf32>
    %13 = vector.extract_strided_slice %7 {offsets = [0, 128], sizes = [240, 128], strides = [1, 1]} : vector<240x384xf32> to vector<240x128xf32>
    %14 = vector.shape_cast %13 : vector<240x128xf32> to vector<10x24x128xf32>
    %15 = vector.extract_strided_slice %14 {offsets = [0, 0, 0], sizes = [10, 16, 128], strides = [1, 1, 1]} : vector<10x24x128xf32> to vector<10x16x128xf32>
    %16 = vector.extract_strided_slice %7 {offsets = [0, 128], sizes = [240, 128], strides = [1, 1]} : vector<240x384xf32> to vector<240x128xf32>
    %c239_i32_9 = arith.constant 239 : i32
    %17 = tpu.dynamic_rotate %16 by %c239_i32_9 dim 0 : vector<240x128xf32>, i32 -> vector<240x128xf32>
    %18 = vector.shape_cast %17 : vector<240x128xf32> to vector<10x24x128xf32>
    %19 = vector.extract_strided_slice %18 {offsets = [0, 0, 0], sizes = [10, 16, 128], strides = [1, 1, 1]} : vector<10x24x128xf32> to vector<10x16x128xf32>
    %20 = vector.extract_strided_slice %7 {offsets = [0, 128], sizes = [240, 128], strides = [1, 1]} : vector<240x384xf32> to vector<240x128xf32>
    %c238_i32 = arith.constant 238 : i32
    %21 = tpu.dynamic_rotate %20 by %c238_i32 dim 0 : vector<240x128xf32>, i32 -> vector<240x128xf32>
    %22 = vector.shape_cast %21 : vector<240x128xf32> to vector<10x24x128xf32>
    %23 = vector.extract_strided_slice %22 {offsets = [0, 0, 0], sizes = [10, 16, 128], strides = [1, 1, 1]} : vector<10x24x128xf32> to vector<10x16x128xf32>
    %24 = vector.extract_strided_slice %7 {offsets = [0, 256], sizes = [240, 128], strides = [1, 1]} : vector<240x384xf32> to vector<240x128xf32>
    %25 = vector.shape_cast %24 : vector<240x128xf32> to vector<10x24x128xf32>
    %26 = vector.extract_strided_slice %25 {offsets = [0, 0, 0], sizes = [10, 16, 128], strides = [1, 1, 1]} : vector<10x24x128xf32> to vector<10x16x128xf32>
    %27 = vector.extract_strided_slice %7 {offsets = [0, 256], sizes = [240, 128], strides = [1, 1]} : vector<240x384xf32> to vector<240x128xf32>
    %c239_i32_10 = arith.constant 239 : i32
    %28 = tpu.dynamic_rotate %27 by %c239_i32_10 dim 0 : vector<240x128xf32>, i32 -> vector<240x128xf32>
    %29 = vector.shape_cast %28 : vector<240x128xf32> to vector<10x24x128xf32>
    %30 = vector.extract_strided_slice %29 {offsets = [0, 0, 0], sizes = [10, 16, 128], strides = [1, 1, 1]} : vector<10x24x128xf32> to vector<10x16x128xf32>
    %31 = vector.extract_strided_slice %7 {offsets = [0, 256], sizes = [240, 128], strides = [1, 1]} : vector<240x384xf32> to vector<240x128xf32>
    %c238_i32_11 = arith.constant 238 : i32
    %32 = tpu.dynamic_rotate %31 by %c238_i32_11 dim 0 : vector<240x128xf32>, i32 -> vector<240x128xf32>
    %33 = vector.shape_cast %32 : vector<240x128xf32> to vector<10x24x128xf32>
    %34 = vector.extract_strided_slice %33 {offsets = [0, 0, 0], sizes = [10, 16, 128], strides = [1, 1, 1]} : vector<10x24x128xf32> to vector<10x16x128xf32>
    %c0_12 = arith.constant 0 : index
    %c0_13 = arith.constant 0 : index
    %35 = vector.load %arg5[%c0_12, %c0_13] : memref<9x128xf32, #tpu.memory_space<vmem>>, vector<9x128xf32>
    %36 = vector.extract_strided_slice %15 {offsets = [0, 0, 0], sizes = [8, 16, 128], strides = [1, 1, 1]} : vector<10x16x128xf32> to vector<8x16x128xf32>
    %37 = vector.extract_strided_slice %35 {offsets = [0, 0], sizes = [1, 128], strides = [1, 1]} : vector<9x128xf32> to vector<1x128xf32>
    %38 = vector.shape_cast %37 : vector<1x128xf32> to vector<128xf32>
    %39 = vector.shape_cast %38 : vector<128xf32> to vector<1x1x128xf32>
    %40 = vector.broadcast %39 : vector<1x1x128xf32> to vector<8x16x128xf32>
    %41 = arith.addf %36, %40 : vector<8x16x128xf32>
    %42 = arith.mulf %12, %41 : vector<8x16x128xf32>
    %43 = vector.extract_strided_slice %19 {offsets = [0, 0, 0], sizes = [8, 16, 128], strides = [1, 1, 1]} : vector<10x16x128xf32> to vector<8x16x128xf32>
    %44 = vector.extract_strided_slice %35 {offsets = [1, 0], sizes = [1, 128], strides = [1, 1]} : vector<9x128xf32> to vector<1x128xf32>
    %45 = vector.shape_cast %44 : vector<1x128xf32> to vector<128xf32>
    %46 = vector.shape_cast %45 : vector<128xf32> to vector<1x1x128xf32>
    %47 = vector.broadcast %46 : vector<1x1x128xf32> to vector<8x16x128xf32>
    %48 = arith.addf %43, %47 : vector<8x16x128xf32>
    %49 = arith.mulf %12, %48 : vector<8x16x128xf32>
    %50 = arith.maximumf %42, %49 : vector<8x16x128xf32>
    %51 = vector.extract_strided_slice %23 {offsets = [0, 0, 0], sizes = [8, 16, 128], strides = [1, 1, 1]} : vector<10x16x128xf32> to vector<8x16x128xf32>
    %52 = vector.extract_strided_slice %35 {offsets = [2, 0], sizes = [1, 128], strides = [1, 1]} : vector<9x128xf32> to vector<1x128xf32>
    %53 = vector.shape_cast %52 : vector<1x128xf32> to vector<128xf32>
    %54 = vector.shape_cast %53 : vector<128xf32> to vector<1x1x128xf32>
    %55 = vector.broadcast %54 : vector<1x1x128xf32> to vector<8x16x128xf32>
    %56 = arith.addf %51, %55 : vector<8x16x128xf32>
    %57 = arith.mulf %12, %56 : vector<8x16x128xf32>
    %58 = arith.maximumf %50, %57 : vector<8x16x128xf32>
    %59 = vector.extract_strided_slice %15 {offsets = [1, 0, 0], sizes = [8, 16, 128], strides = [1, 1, 1]} : vector<10x16x128xf32> to vector<8x16x128xf32>
    %60 = vector.extract_strided_slice %35 {offsets = [3, 0], sizes = [1, 128], strides = [1, 1]} : vector<9x128xf32> to vector<1x128xf32>
    %61 = vector.shape_cast %60 : vector<1x128xf32> to vector<128xf32>
    %62 = vector.shape_cast %61 : vector<128xf32> to vector<1x1x128xf32>
    %63 = vector.broadcast %62 : vector<1x1x128xf32> to vector<8x16x128xf32>
    %64 = arith.addf %59, %63 : vector<8x16x128xf32>
    %65 = arith.mulf %12, %64 : vector<8x16x128xf32>
    %66 = arith.maximumf %58, %65 : vector<8x16x128xf32>
    %67 = vector.extract_strided_slice %19 {offsets = [1, 0, 0], sizes = [8, 16, 128], strides = [1, 1, 1]} : vector<10x16x128xf32> to vector<8x16x128xf32>
    %68 = vector.extract_strided_slice %35 {offsets = [4, 0], sizes = [1, 128], strides = [1, 1]} : vector<9x128xf32> to vector<1x128xf32>
    %69 = vector.shape_cast %68 : vector<1x128xf32> to vector<128xf32>
    %70 = vector.shape_cast %69 : vector<128xf32> to vector<1x1x128xf32>
    %71 = vector.broadcast %70 : vector<1x1x128xf32> to vector<8x16x128xf32>
    %72 = arith.addf %67, %71 : vector<8x16x128xf32>
    %73 = arith.mulf %12, %72 : vector<8x16x128xf32>
    %74 = arith.maximumf %66, %73 : vector<8x16x128xf32>
    %75 = vector.extract_strided_slice %23 {offsets = [1, 0, 0], sizes = [8, 16, 128], strides = [1, 1, 1]} : vector<10x16x128xf32> to vector<8x16x128xf32>
    %76 = vector.extract_strided_slice %35 {offsets = [5, 0], sizes = [1, 128], strides = [1, 1]} : vector<9x128xf32> to vector<1x128xf32>
    %77 = vector.shape_cast %76 : vector<1x128xf32> to vector<128xf32>
    %78 = vector.shape_cast %77 : vector<128xf32> to vector<1x1x128xf32>
    %79 = vector.broadcast %78 : vector<1x1x128xf32> to vector<8x16x128xf32>
    %80 = arith.addf %75, %79 : vector<8x16x128xf32>
    %81 = arith.mulf %12, %80 : vector<8x16x128xf32>
    %82 = arith.maximumf %74, %81 : vector<8x16x128xf32>
    %83 = vector.extract_strided_slice %15 {offsets = [2, 0, 0], sizes = [8, 16, 128], strides = [1, 1, 1]} : vector<10x16x128xf32> to vector<8x16x128xf32>
    %84 = vector.extract_strided_slice %35 {offsets = [6, 0], sizes = [1, 128], strides = [1, 1]} : vector<9x128xf32> to vector<1x128xf32>
    %85 = vector.shape_cast %84 : vector<1x128xf32> to vector<128xf32>
    %86 = vector.shape_cast %85 : vector<128xf32> to vector<1x1x128xf32>
    %87 = vector.broadcast %86 : vector<1x1x128xf32> to vector<8x16x128xf32>
    %88 = arith.addf %83, %87 : vector<8x16x128xf32>
    %89 = arith.mulf %12, %88 : vector<8x16x128xf32>
    %90 = arith.maximumf %82, %89 : vector<8x16x128xf32>
    %91 = vector.extract_strided_slice %19 {offsets = [2, 0, 0], sizes = [8, 16, 128], strides = [1, 1, 1]} : vector<10x16x128xf32> to vector<8x16x128xf32>
    %92 = vector.extract_strided_slice %35 {offsets = [7, 0], sizes = [1, 128], strides = [1, 1]} : vector<9x128xf32> to vector<1x128xf32>
    %93 = vector.shape_cast %92 : vector<1x128xf32> to vector<128xf32>
    %94 = vector.shape_cast %93 : vector<128xf32> to vector<1x1x128xf32>
    %95 = vector.broadcast %94 : vector<1x1x128xf32> to vector<8x16x128xf32>
    %96 = arith.addf %91, %95 : vector<8x16x128xf32>
    %97 = arith.mulf %12, %96 : vector<8x16x128xf32>
    %98 = arith.maximumf %90, %97 : vector<8x16x128xf32>
    %99 = vector.extract_strided_slice %23 {offsets = [2, 0, 0], sizes = [8, 16, 128], strides = [1, 1, 1]} : vector<10x16x128xf32> to vector<8x16x128xf32>
    %100 = vector.extract_strided_slice %35 {offsets = [8, 0], sizes = [1, 128], strides = [1, 1]} : vector<9x128xf32> to vector<1x128xf32>
    %101 = vector.shape_cast %100 : vector<1x128xf32> to vector<128xf32>
    %102 = vector.shape_cast %101 : vector<128xf32> to vector<1x1x128xf32>
    %103 = vector.broadcast %102 : vector<1x1x128xf32> to vector<8x16x128xf32>
    %104 = arith.addf %99, %103 : vector<8x16x128xf32>
    %105 = arith.mulf %12, %104 : vector<8x16x128xf32>
    %106 = arith.maximumf %98, %105 : vector<8x16x128xf32>
    %cst_14 = arith.constant 0.000000e+00 : f32
    %107 = vector.broadcast %cst_14 : f32 to vector<8x16x128xf32>
    %cst_15 = arith.constant 0.000000e+00 : f32
    %108 = vector.broadcast %cst_15 : f32 to vector<8x16x128xf32>
    %109 = vector.extract_strided_slice %15 {offsets = [0, 0, 0], sizes = [8, 16, 128], strides = [1, 1, 1]} : vector<10x16x128xf32> to vector<8x16x128xf32>
    %110 = vector.extract_strided_slice %35 {offsets = [0, 0], sizes = [1, 128], strides = [1, 1]} : vector<9x128xf32> to vector<1x128xf32>
    %111 = vector.shape_cast %110 : vector<1x128xf32> to vector<128xf32>
    %112 = vector.shape_cast %111 : vector<128xf32> to vector<1x1x128xf32>
    %113 = vector.broadcast %112 : vector<1x1x128xf32> to vector<8x16x128xf32>
    %114 = arith.addf %109, %113 : vector<8x16x128xf32>
    %115 = arith.mulf %12, %114 : vector<8x16x128xf32>
    %116 = arith.subf %115, %106 : vector<8x16x128xf32>
    %117 = math.exp %116 : vector<8x16x128xf32>
    %118 = arith.addf %107, %117 : vector<8x16x128xf32>
    %119 = vector.extract_strided_slice %26 {offsets = [0, 0, 0], sizes = [8, 16, 128], strides = [1, 1, 1]} : vector<10x16x128xf32> to vector<8x16x128xf32>
    %120 = arith.mulf %117, %119 : vector<8x16x128xf32>
    %121 = arith.addf %108, %120 : vector<8x16x128xf32>
    %122 = vector.extract_strided_slice %19 {offsets = [0, 0, 0], sizes = [8, 16, 128], strides = [1, 1, 1]} : vector<10x16x128xf32> to vector<8x16x128xf32>
    %123 = vector.extract_strided_slice %35 {offsets = [1, 0], sizes = [1, 128], strides = [1, 1]} : vector<9x128xf32> to vector<1x128xf32>
    %124 = vector.shape_cast %123 : vector<1x128xf32> to vector<128xf32>
    %125 = vector.shape_cast %124 : vector<128xf32> to vector<1x1x128xf32>
    %126 = vector.broadcast %125 : vector<1x1x128xf32> to vector<8x16x128xf32>
    %127 = arith.addf %122, %126 : vector<8x16x128xf32>
    %128 = arith.mulf %12, %127 : vector<8x16x128xf32>
    %129 = arith.subf %128, %106 : vector<8x16x128xf32>
    %130 = math.exp %129 : vector<8x16x128xf32>
    %131 = arith.addf %118, %130 : vector<8x16x128xf32>
    %132 = vector.extract_strided_slice %30 {offsets = [0, 0, 0], sizes = [8, 16, 128], strides = [1, 1, 1]} : vector<10x16x128xf32> to vector<8x16x128xf32>
    %133 = arith.mulf %130, %132 : vector<8x16x128xf32>
    %134 = arith.addf %121, %133 : vector<8x16x128xf32>
    %135 = vector.extract_strided_slice %23 {offsets = [0, 0, 0], sizes = [8, 16, 128], strides = [1, 1, 1]} : vector<10x16x128xf32> to vector<8x16x128xf32>
    %136 = vector.extract_strided_slice %35 {offsets = [2, 0], sizes = [1, 128], strides = [1, 1]} : vector<9x128xf32> to vector<1x128xf32>
    %137 = vector.shape_cast %136 : vector<1x128xf32> to vector<128xf32>
    %138 = vector.shape_cast %137 : vector<128xf32> to vector<1x1x128xf32>
    %139 = vector.broadcast %138 : vector<1x1x128xf32> to vector<8x16x128xf32>
    %140 = arith.addf %135, %139 : vector<8x16x128xf32>
    %141 = arith.mulf %12, %140 : vector<8x16x128xf32>
    %142 = arith.subf %141, %106 : vector<8x16x128xf32>
    %143 = math.exp %142 : vector<8x16x128xf32>
    %144 = arith.addf %131, %143 : vector<8x16x128xf32>
    %145 = vector.extract_strided_slice %34 {offsets = [0, 0, 0], sizes = [8, 16, 128], strides = [1, 1, 1]} : vector<10x16x128xf32> to vector<8x16x128xf32>
    %146 = arith.mulf %143, %145 : vector<8x16x128xf32>
    %147 = arith.addf %134, %146 : vector<8x16x128xf32>
    %148 = vector.extract_strided_slice %15 {offsets = [1, 0, 0], sizes = [8, 16, 128], strides = [1, 1, 1]} : vector<10x16x128xf32> to vector<8x16x128xf32>
    %149 = vector.extract_strided_slice %35 {offsets = [3, 0], sizes = [1, 128], strides = [1, 1]} : vector<9x128xf32> to vector<1x128xf32>
    %150 = vector.shape_cast %149 : vector<1x128xf32> to vector<128xf32>
    %151 = vector.shape_cast %150 : vector<128xf32> to vector<1x1x128xf32>
    %152 = vector.broadcast %151 : vector<1x1x128xf32> to vector<8x16x128xf32>
    %153 = arith.addf %148, %152 : vector<8x16x128xf32>
    %154 = arith.mulf %12, %153 : vector<8x16x128xf32>
    %155 = arith.subf %154, %106 : vector<8x16x128xf32>
    %156 = math.exp %155 : vector<8x16x128xf32>
    %157 = arith.addf %144, %156 : vector<8x16x128xf32>
    %158 = vector.extract_strided_slice %26 {offsets = [1, 0, 0], sizes = [8, 16, 128], strides = [1, 1, 1]} : vector<10x16x128xf32> to vector<8x16x128xf32>
    %159 = arith.mulf %156, %158 : vector<8x16x128xf32>
    %160 = arith.addf %147, %159 : vector<8x16x128xf32>
    %161 = vector.extract_strided_slice %19 {offsets = [1, 0, 0], sizes = [8, 16, 128], strides = [1, 1, 1]} : vector<10x16x128xf32> to vector<8x16x128xf32>
    %162 = vector.extract_strided_slice %35 {offsets = [4, 0], sizes = [1, 128], strides = [1, 1]} : vector<9x128xf32> to vector<1x128xf32>
    %163 = vector.shape_cast %162 : vector<1x128xf32> to vector<128xf32>
    %164 = vector.shape_cast %163 : vector<128xf32> to vector<1x1x128xf32>
    %165 = vector.broadcast %164 : vector<1x1x128xf32> to vector<8x16x128xf32>
    %166 = arith.addf %161, %165 : vector<8x16x128xf32>
    %167 = arith.mulf %12, %166 : vector<8x16x128xf32>
    %168 = arith.subf %167, %106 : vector<8x16x128xf32>
    %169 = math.exp %168 : vector<8x16x128xf32>
    %170 = arith.addf %157, %169 : vector<8x16x128xf32>
    %171 = vector.extract_strided_slice %30 {offsets = [1, 0, 0], sizes = [8, 16, 128], strides = [1, 1, 1]} : vector<10x16x128xf32> to vector<8x16x128xf32>
    %172 = arith.mulf %169, %171 : vector<8x16x128xf32>
    %173 = arith.addf %160, %172 : vector<8x16x128xf32>
    %174 = vector.extract_strided_slice %23 {offsets = [1, 0, 0], sizes = [8, 16, 128], strides = [1, 1, 1]} : vector<10x16x128xf32> to vector<8x16x128xf32>
    %175 = vector.extract_strided_slice %35 {offsets = [5, 0], sizes = [1, 128], strides = [1, 1]} : vector<9x128xf32> to vector<1x128xf32>
    %176 = vector.shape_cast %175 : vector<1x128xf32> to vector<128xf32>
    %177 = vector.shape_cast %176 : vector<128xf32> to vector<1x1x128xf32>
    %178 = vector.broadcast %177 : vector<1x1x128xf32> to vector<8x16x128xf32>
    %179 = arith.addf %174, %178 : vector<8x16x128xf32>
    %180 = arith.mulf %12, %179 : vector<8x16x128xf32>
    %181 = arith.subf %180, %106 : vector<8x16x128xf32>
    %182 = math.exp %181 : vector<8x16x128xf32>
    %183 = arith.addf %170, %182 : vector<8x16x128xf32>
    %184 = vector.extract_strided_slice %34 {offsets = [1, 0, 0], sizes = [8, 16, 128], strides = [1, 1, 1]} : vector<10x16x128xf32> to vector<8x16x128xf32>
    %185 = arith.mulf %182, %184 : vector<8x16x128xf32>
    %186 = arith.addf %173, %185 : vector<8x16x128xf32>
    %187 = vector.extract_strided_slice %15 {offsets = [2, 0, 0], sizes = [8, 16, 128], strides = [1, 1, 1]} : vector<10x16x128xf32> to vector<8x16x128xf32>
    %188 = vector.extract_strided_slice %35 {offsets = [6, 0], sizes = [1, 128], strides = [1, 1]} : vector<9x128xf32> to vector<1x128xf32>
    %189 = vector.shape_cast %188 : vector<1x128xf32> to vector<128xf32>
    %190 = vector.shape_cast %189 : vector<128xf32> to vector<1x1x128xf32>
    %191 = vector.broadcast %190 : vector<1x1x128xf32> to vector<8x16x128xf32>
    %192 = arith.addf %187, %191 : vector<8x16x128xf32>
    %193 = arith.mulf %12, %192 : vector<8x16x128xf32>
    %194 = arith.subf %193, %106 : vector<8x16x128xf32>
    %195 = math.exp %194 : vector<8x16x128xf32>
    %196 = arith.addf %183, %195 : vector<8x16x128xf32>
    %197 = vector.extract_strided_slice %26 {offsets = [2, 0, 0], sizes = [8, 16, 128], strides = [1, 1, 1]} : vector<10x16x128xf32> to vector<8x16x128xf32>
    %198 = arith.mulf %195, %197 : vector<8x16x128xf32>
    %199 = arith.addf %186, %198 : vector<8x16x128xf32>
    %200 = vector.extract_strided_slice %19 {offsets = [2, 0, 0], sizes = [8, 16, 128], strides = [1, 1, 1]} : vector<10x16x128xf32> to vector<8x16x128xf32>
    %201 = vector.extract_strided_slice %35 {offsets = [7, 0], sizes = [1, 128], strides = [1, 1]} : vector<9x128xf32> to vector<1x128xf32>
    %202 = vector.shape_cast %201 : vector<1x128xf32> to vector<128xf32>
    %203 = vector.shape_cast %202 : vector<128xf32> to vector<1x1x128xf32>
    %204 = vector.broadcast %203 : vector<1x1x128xf32> to vector<8x16x128xf32>
    %205 = arith.addf %200, %204 : vector<8x16x128xf32>
    %206 = arith.mulf %12, %205 : vector<8x16x128xf32>
    %207 = arith.subf %206, %106 : vector<8x16x128xf32>
    %208 = math.exp %207 : vector<8x16x128xf32>
    %209 = arith.addf %196, %208 : vector<8x16x128xf32>
    %210 = vector.extract_strided_slice %30 {offsets = [2, 0, 0], sizes = [8, 16, 128], strides = [1, 1, 1]} : vector<10x16x128xf32> to vector<8x16x128xf32>
    %211 = arith.mulf %208, %210 : vector<8x16x128xf32>
    %212 = arith.addf %199, %211 : vector<8x16x128xf32>
    %213 = vector.extract_strided_slice %23 {offsets = [2, 0, 0], sizes = [8, 16, 128], strides = [1, 1, 1]} : vector<10x16x128xf32> to vector<8x16x128xf32>
    %214 = vector.extract_strided_slice %35 {offsets = [8, 0], sizes = [1, 128], strides = [1, 1]} : vector<9x128xf32> to vector<1x128xf32>
    %215 = vector.shape_cast %214 : vector<1x128xf32> to vector<128xf32>
    %216 = vector.shape_cast %215 : vector<128xf32> to vector<1x1x128xf32>
    %217 = vector.broadcast %216 : vector<1x1x128xf32> to vector<8x16x128xf32>
    %218 = arith.addf %213, %217 : vector<8x16x128xf32>
    %219 = arith.mulf %12, %218 : vector<8x16x128xf32>
    %220 = arith.subf %219, %106 : vector<8x16x128xf32>
    %221 = math.exp %220 : vector<8x16x128xf32>
    %222 = arith.addf %209, %221 : vector<8x16x128xf32>
    %223 = vector.extract_strided_slice %34 {offsets = [2, 0, 0], sizes = [8, 16, 128], strides = [1, 1, 1]} : vector<10x16x128xf32> to vector<8x16x128xf32>
    %224 = arith.mulf %221, %223 : vector<8x16x128xf32>
    %225 = arith.addf %212, %224 : vector<8x16x128xf32>
    %226 = tpu.reciprocal %222 {approx = true} : vector<8x16x128xf32> -> vector<8x16x128xf32>
    %227 = arith.mulf %222, %226 : vector<8x16x128xf32>
    %cst_16 = arith.constant 2.000000e+00 : f32
    %228 = vector.broadcast %cst_16 : f32 to vector<8x16x128xf32>
    %229 = arith.subf %228, %227 : vector<8x16x128xf32>
    %230 = arith.mulf %226, %229 : vector<8x16x128xf32>
    %231 = arith.mulf %225, %230 : vector<8x16x128xf32>
    %232 = vector.shape_cast %231 : vector<8x16x128xf32> to vector<1x8x16x128xf32>
    %c0_17 = arith.constant 0 : index
    %c0_18 = arith.constant 0 : index
    %c0_19 = arith.constant 0 : index
    %c0_20 = arith.constant 0 : index
    %233 = vector.load %arg6[%c0_17, %c0_18, %c0_19, %c0_20] : memref<1x8x16x128xf32, #tpu.memory_space<vmem>>, vector<1x8x16x128xf32>
    tpu.vector_store %arg6[%c0_17, %c0_18, %c0_19, %c0_20], %232 {strides = array<i32>} : memref<1x8x16x128xf32, #tpu.memory_space<vmem>>, vector<1x8x16x128xf32>,
    return
  }
  func.func @transform_0(%arg0: i32, %arg1: i32) -> (i32, i32, i32, i32) {
    %c0_i32 = arith.constant 0 : i32
    %c0_i32_0 = arith.constant 0 : i32
    %c0_i32_1 = arith.constant 0 : i32
    return %arg0, %arg1, %c0_i32, %c0_i32_0 : i32, i32, i32, i32
  }
  func.func @transform_1(%arg0: i32, %arg1: i32) -> (i32, i32, i32, i32) {
    %c1_i32 = arith.constant 1 : i32
    %0 = arith.addi %arg1, %c1_i32 : i32
    %c4_i32 = arith.constant 4 : i32
    %1 = arith.muli %0, %c4_i32 : i32
    %c0_i32 = arith.constant 0 : i32
    %c0_i32_0 = arith.constant 0 : i32
    %c0_i32_1 = arith.constant 0 : i32
    return %arg0, %1, %c0_i32, %c0_i32_0 : i32, i32, i32, i32
  }
  func.func @transform_2(%arg0: i32, %arg1: i32) -> (i32, i32) {
    %c0_i32 = arith.constant 0 : i32
    %c0_i32_0 = arith.constant 0 : i32
    %c0_i32_1 = arith.constant 0 : i32
    return %c0_i32, %c0_i32_0 : i32, i32
  }
  func.func @transform_3(%arg0: i32, %arg1: i32) -> (i32, i32) {
    %c0_i32 = arith.constant 0 : i32
    %c0_i32_0 = arith.constant 0 : i32
    %c0_i32_1 = arith.constant 0 : i32
    return %c0_i32, %c0_i32_0 : i32, i32
  }
  func.func @transform_4(%arg0: i32, %arg1: i32) -> (i32, i32, i32, i32) {
    %c0_i32 = arith.constant 0 : i32
    %c0_i32_0 = arith.constant 0 : i32
    %c0_i32_1 = arith.constant 0 : i32
    return %arg0, %arg1, %c0_i32, %c0_i32_0 : i32, i32, i32, i32
  }
}

module attributes {stable_mosaic.version = 11 : i64} {
  func.func @_attention_conv_kernel(%arg0: i32, %arg1: i32, %arg2: memref<1x8x24x32xf32, #tpu.memory_space<vmem>>, %arg3: memref<1x2x24x32xf32, #tpu.memory_space<vmem>>, %arg4: memref<32x384xf32, #tpu.memory_space<vmem>>, %arg5: memref<9x128xf32, #tpu.memory_space<vmem>>, %arg6: memref<1x8x16x128xf32, #tpu.memory_space<vmem>>) attributes {dimension_semantics = [#tpu.dimension_semantics<parallel>, #tpu.dimension_semantics<parallel>], iteration_bounds = array<i64: 2, 2>, scalar_prefetch = 0 : i64, scratch_operands = 0 : i64, tpu.core_type = #tpu.core_type<tc>, window_params = [{transform_indices = @transform_0, window_bounds = array<i64: 1, 8, 24, 32>}, {transform_indices = @transform_1, window_bounds = array<i64: 1, 2, 24, 32>}, {pipeline_mode = #tpu.pipeline_mode<synchronous>, transform_indices = @transform_2, window_bounds = array<i64: 32, 384>}, {pipeline_mode = #tpu.pipeline_mode<synchronous>, transform_indices = @transform_3, window_bounds = array<i64: 9, 128>}, {transform_indices = @transform_4, window_bounds = array<i64: 1, 8, 16, 128>}]} {
    %c0 = arith.constant 0 : index
    %c0_0 = arith.constant 0 : index
    %c0_1 = arith.constant 0 : index
    %c0_2 = arith.constant 0 : index
    %0 = vector.load %arg2[%c0, %c0_0, %c0_1, %c0_2] : memref<1x8x24x32xf32, #tpu.memory_space<vmem>>, vector<1x8x24x32xf32>
    %1 = vector.shape_cast %0 : vector<1x8x24x32xf32> to vector<8x24x32xf32>
    %c0_3 = arith.constant 0 : index
    %c0_4 = arith.constant 0 : index
    %c0_5 = arith.constant 0 : index
    %c0_6 = arith.constant 0 : index
    %2 = vector.load %arg3[%c0_3, %c0_4, %c0_5, %c0_6] : memref<1x2x24x32xf32, #tpu.memory_space<vmem>>, vector<1x2x24x32xf32>
    %3 = vector.shape_cast %2 : vector<1x2x24x32xf32> to vector<2x24x32xf32>
    %4 = tpu.concatenate %1, %3 in 0 : vector<8x24x32xf32>, vector<2x24x32xf32> -> vector<10x24x32xf32>
    %5 = vector.shape_cast %4 : vector<10x24x32xf32> to vector<240x32xf32>
    %c0_7 = arith.constant 0 : index
    %c0_8 = arith.constant 0 : index
    %6 = vector.load %arg4[%c0_7, %c0_8] : memref<32x384xf32, #tpu.memory_space<vmem>>, vector<32x384xf32>
    %cst = arith.constant dense<0.000000e+00> : vector<240x384xf32>
    %7 = tpu.matmul %5, %6, %cst {dimension_numbers = #tpu.dot_dimension_numbers<[1], [0], [0], [1], [0, 0, 1, 1], [], []>} : vector<240x32xf32>, vector<32x384xf32>, vector<240x384xf32> -> vector<240x384xf32>
    %8 = vector.extract_strided_slice %7 {offsets = [0, 0], sizes = [240, 128], strides = [1, 1]} : vector<240x384xf32> to vector<240x128xf32>
    %9 = vector.shape_cast %8 : vector<240x128xf32> to vector<10x24x128xf32>
    %10 = vector.extract_strided_slice %9 {offsets = [0, 1, 0], sizes = [10, 16, 128], strides = [1, 1, 1]} : vector<10x24x128xf32> to vector<10x16x128xf32>
    %11 = vector.extract_strided_slice %10 {offsets = [1, 0, 0], sizes = [8, 16, 128], strides = [1, 1, 1]} : vector<10x16x128xf32> to vector<8x16x128xf32>
    %12 = vector.extract_strided_slice %7 {offsets = [0, 128], sizes = [240, 128], strides = [1, 1]} : vector<240x384xf32> to vector<240x128xf32>
    %13 = vector.shape_cast %12 : vector<240x128xf32> to vector<10x24x128xf32>
    %14 = vector.extract_strided_slice %13 {offsets = [0, 0, 0], sizes = [10, 16, 128], strides = [1, 1, 1]} : vector<10x24x128xf32> to vector<10x16x128xf32>
    %15 = vector.extract_strided_slice %7 {offsets = [0, 128], sizes = [240, 128], strides = [1, 1]} : vector<240x384xf32> to vector<240x128xf32>
    %16 = vector.shape_cast %15 : vector<240x128xf32> to vector<10x24x128xf32>
    %17 = vector.extract_strided_slice %16 {offsets = [0, 1, 0], sizes = [10, 16, 128], strides = [1, 1, 1]} : vector<10x24x128xf32> to vector<10x16x128xf32>
    %18 = vector.extract_strided_slice %7 {offsets = [0, 128], sizes = [240, 128], strides = [1, 1]} : vector<240x384xf32> to vector<240x128xf32>
    %19 = vector.shape_cast %18 : vector<240x128xf32> to vector<10x24x128xf32>
    %20 = vector.extract_strided_slice %19 {offsets = [0, 2, 0], sizes = [10, 16, 128], strides = [1, 1, 1]} : vector<10x24x128xf32> to vector<10x16x128xf32>
    %21 = vector.extract_strided_slice %7 {offsets = [0, 256], sizes = [240, 128], strides = [1, 1]} : vector<240x384xf32> to vector<240x128xf32>
    %22 = vector.shape_cast %21 : vector<240x128xf32> to vector<10x24x128xf32>
    %23 = vector.extract_strided_slice %22 {offsets = [0, 0, 0], sizes = [10, 16, 128], strides = [1, 1, 1]} : vector<10x24x128xf32> to vector<10x16x128xf32>
    %24 = vector.extract_strided_slice %7 {offsets = [0, 256], sizes = [240, 128], strides = [1, 1]} : vector<240x384xf32> to vector<240x128xf32>
    %25 = vector.shape_cast %24 : vector<240x128xf32> to vector<10x24x128xf32>
    %26 = vector.extract_strided_slice %25 {offsets = [0, 1, 0], sizes = [10, 16, 128], strides = [1, 1, 1]} : vector<10x24x128xf32> to vector<10x16x128xf32>
    %27 = vector.extract_strided_slice %7 {offsets = [0, 256], sizes = [240, 128], strides = [1, 1]} : vector<240x384xf32> to vector<240x128xf32>
    %28 = vector.shape_cast %27 : vector<240x128xf32> to vector<10x24x128xf32>
    %29 = vector.extract_strided_slice %28 {offsets = [0, 2, 0], sizes = [10, 16, 128], strides = [1, 1, 1]} : vector<10x24x128xf32> to vector<10x16x128xf32>
    %c0_9 = arith.constant 0 : index
    %c0_10 = arith.constant 0 : index
    %30 = vector.load %arg5[%c0_9, %c0_10] : memref<9x128xf32, #tpu.memory_space<vmem>>, vector<9x128xf32>
    %31 = vector.extract_strided_slice %14 {offsets = [0, 0, 0], sizes = [8, 16, 128], strides = [1, 1, 1]} : vector<10x16x128xf32> to vector<8x16x128xf32>
    %32 = vector.extract_strided_slice %30 {offsets = [0, 0], sizes = [1, 128], strides = [1, 1]} : vector<9x128xf32> to vector<1x128xf32>
    %33 = vector.shape_cast %32 : vector<1x128xf32> to vector<128xf32>
    %34 = vector.shape_cast %33 : vector<128xf32> to vector<1x1x128xf32>
    %35 = vector.broadcast %34 : vector<1x1x128xf32> to vector<8x16x128xf32>
    %36 = arith.addf %31, %35 : vector<8x16x128xf32>
    %37 = arith.mulf %11, %36 : vector<8x16x128xf32>
    %38 = vector.extract_strided_slice %17 {offsets = [0, 0, 0], sizes = [8, 16, 128], strides = [1, 1, 1]} : vector<10x16x128xf32> to vector<8x16x128xf32>
    %39 = vector.extract_strided_slice %30 {offsets = [1, 0], sizes = [1, 128], strides = [1, 1]} : vector<9x128xf32> to vector<1x128xf32>
    %40 = vector.shape_cast %39 : vector<1x128xf32> to vector<128xf32>
    %41 = vector.shape_cast %40 : vector<128xf32> to vector<1x1x128xf32>
    %42 = vector.broadcast %41 : vector<1x1x128xf32> to vector<8x16x128xf32>
    %43 = arith.addf %38, %42 : vector<8x16x128xf32>
    %44 = arith.mulf %11, %43 : vector<8x16x128xf32>
    %45 = arith.maximumf %37, %44 : vector<8x16x128xf32>
    %46 = vector.extract_strided_slice %20 {offsets = [0, 0, 0], sizes = [8, 16, 128], strides = [1, 1, 1]} : vector<10x16x128xf32> to vector<8x16x128xf32>
    %47 = vector.extract_strided_slice %30 {offsets = [2, 0], sizes = [1, 128], strides = [1, 1]} : vector<9x128xf32> to vector<1x128xf32>
    %48 = vector.shape_cast %47 : vector<1x128xf32> to vector<128xf32>
    %49 = vector.shape_cast %48 : vector<128xf32> to vector<1x1x128xf32>
    %50 = vector.broadcast %49 : vector<1x1x128xf32> to vector<8x16x128xf32>
    %51 = arith.addf %46, %50 : vector<8x16x128xf32>
    %52 = arith.mulf %11, %51 : vector<8x16x128xf32>
    %53 = arith.maximumf %45, %52 : vector<8x16x128xf32>
    %54 = vector.extract_strided_slice %14 {offsets = [1, 0, 0], sizes = [8, 16, 128], strides = [1, 1, 1]} : vector<10x16x128xf32> to vector<8x16x128xf32>
    %55 = vector.extract_strided_slice %30 {offsets = [3, 0], sizes = [1, 128], strides = [1, 1]} : vector<9x128xf32> to vector<1x128xf32>
    %56 = vector.shape_cast %55 : vector<1x128xf32> to vector<128xf32>
    %57 = vector.shape_cast %56 : vector<128xf32> to vector<1x1x128xf32>
    %58 = vector.broadcast %57 : vector<1x1x128xf32> to vector<8x16x128xf32>
    %59 = arith.addf %54, %58 : vector<8x16x128xf32>
    %60 = arith.mulf %11, %59 : vector<8x16x128xf32>
    %61 = arith.maximumf %53, %60 : vector<8x16x128xf32>
    %62 = vector.extract_strided_slice %17 {offsets = [1, 0, 0], sizes = [8, 16, 128], strides = [1, 1, 1]} : vector<10x16x128xf32> to vector<8x16x128xf32>
    %63 = vector.extract_strided_slice %30 {offsets = [4, 0], sizes = [1, 128], strides = [1, 1]} : vector<9x128xf32> to vector<1x128xf32>
    %64 = vector.shape_cast %63 : vector<1x128xf32> to vector<128xf32>
    %65 = vector.shape_cast %64 : vector<128xf32> to vector<1x1x128xf32>
    %66 = vector.broadcast %65 : vector<1x1x128xf32> to vector<8x16x128xf32>
    %67 = arith.addf %62, %66 : vector<8x16x128xf32>
    %68 = arith.mulf %11, %67 : vector<8x16x128xf32>
    %69 = arith.maximumf %61, %68 : vector<8x16x128xf32>
    %70 = vector.extract_strided_slice %20 {offsets = [1, 0, 0], sizes = [8, 16, 128], strides = [1, 1, 1]} : vector<10x16x128xf32> to vector<8x16x128xf32>
    %71 = vector.extract_strided_slice %30 {offsets = [5, 0], sizes = [1, 128], strides = [1, 1]} : vector<9x128xf32> to vector<1x128xf32>
    %72 = vector.shape_cast %71 : vector<1x128xf32> to vector<128xf32>
    %73 = vector.shape_cast %72 : vector<128xf32> to vector<1x1x128xf32>
    %74 = vector.broadcast %73 : vector<1x1x128xf32> to vector<8x16x128xf32>
    %75 = arith.addf %70, %74 : vector<8x16x128xf32>
    %76 = arith.mulf %11, %75 : vector<8x16x128xf32>
    %77 = arith.maximumf %69, %76 : vector<8x16x128xf32>
    %78 = vector.extract_strided_slice %14 {offsets = [2, 0, 0], sizes = [8, 16, 128], strides = [1, 1, 1]} : vector<10x16x128xf32> to vector<8x16x128xf32>
    %79 = vector.extract_strided_slice %30 {offsets = [6, 0], sizes = [1, 128], strides = [1, 1]} : vector<9x128xf32> to vector<1x128xf32>
    %80 = vector.shape_cast %79 : vector<1x128xf32> to vector<128xf32>
    %81 = vector.shape_cast %80 : vector<128xf32> to vector<1x1x128xf32>
    %82 = vector.broadcast %81 : vector<1x1x128xf32> to vector<8x16x128xf32>
    %83 = arith.addf %78, %82 : vector<8x16x128xf32>
    %84 = arith.mulf %11, %83 : vector<8x16x128xf32>
    %85 = arith.maximumf %77, %84 : vector<8x16x128xf32>
    %86 = vector.extract_strided_slice %17 {offsets = [2, 0, 0], sizes = [8, 16, 128], strides = [1, 1, 1]} : vector<10x16x128xf32> to vector<8x16x128xf32>
    %87 = vector.extract_strided_slice %30 {offsets = [7, 0], sizes = [1, 128], strides = [1, 1]} : vector<9x128xf32> to vector<1x128xf32>
    %88 = vector.shape_cast %87 : vector<1x128xf32> to vector<128xf32>
    %89 = vector.shape_cast %88 : vector<128xf32> to vector<1x1x128xf32>
    %90 = vector.broadcast %89 : vector<1x1x128xf32> to vector<8x16x128xf32>
    %91 = arith.addf %86, %90 : vector<8x16x128xf32>
    %92 = arith.mulf %11, %91 : vector<8x16x128xf32>
    %93 = arith.maximumf %85, %92 : vector<8x16x128xf32>
    %94 = vector.extract_strided_slice %20 {offsets = [2, 0, 0], sizes = [8, 16, 128], strides = [1, 1, 1]} : vector<10x16x128xf32> to vector<8x16x128xf32>
    %95 = vector.extract_strided_slice %30 {offsets = [8, 0], sizes = [1, 128], strides = [1, 1]} : vector<9x128xf32> to vector<1x128xf32>
    %96 = vector.shape_cast %95 : vector<1x128xf32> to vector<128xf32>
    %97 = vector.shape_cast %96 : vector<128xf32> to vector<1x1x128xf32>
    %98 = vector.broadcast %97 : vector<1x1x128xf32> to vector<8x16x128xf32>
    %99 = arith.addf %94, %98 : vector<8x16x128xf32>
    %100 = arith.mulf %11, %99 : vector<8x16x128xf32>
    %101 = arith.maximumf %93, %100 : vector<8x16x128xf32>
    %cst_11 = arith.constant 0.000000e+00 : f32
    %102 = vector.broadcast %cst_11 : f32 to vector<8x16x128xf32>
    %cst_12 = arith.constant 0.000000e+00 : f32
    %103 = vector.broadcast %cst_12 : f32 to vector<8x16x128xf32>
    %104 = vector.extract_strided_slice %14 {offsets = [0, 0, 0], sizes = [8, 16, 128], strides = [1, 1, 1]} : vector<10x16x128xf32> to vector<8x16x128xf32>
    %105 = vector.extract_strided_slice %30 {offsets = [0, 0], sizes = [1, 128], strides = [1, 1]} : vector<9x128xf32> to vector<1x128xf32>
    %106 = vector.shape_cast %105 : vector<1x128xf32> to vector<128xf32>
    %107 = vector.shape_cast %106 : vector<128xf32> to vector<1x1x128xf32>
    %108 = vector.broadcast %107 : vector<1x1x128xf32> to vector<8x16x128xf32>
    %109 = arith.addf %104, %108 : vector<8x16x128xf32>
    %110 = arith.mulf %11, %109 : vector<8x16x128xf32>
    %111 = arith.subf %110, %101 : vector<8x16x128xf32>
    %112 = math.exp %111 : vector<8x16x128xf32>
    %113 = arith.addf %102, %112 : vector<8x16x128xf32>
    %114 = vector.extract_strided_slice %23 {offsets = [0, 0, 0], sizes = [8, 16, 128], strides = [1, 1, 1]} : vector<10x16x128xf32> to vector<8x16x128xf32>
    %115 = arith.mulf %112, %114 : vector<8x16x128xf32>
    %116 = arith.addf %103, %115 : vector<8x16x128xf32>
    %117 = vector.extract_strided_slice %17 {offsets = [0, 0, 0], sizes = [8, 16, 128], strides = [1, 1, 1]} : vector<10x16x128xf32> to vector<8x16x128xf32>
    %118 = vector.extract_strided_slice %30 {offsets = [1, 0], sizes = [1, 128], strides = [1, 1]} : vector<9x128xf32> to vector<1x128xf32>
    %119 = vector.shape_cast %118 : vector<1x128xf32> to vector<128xf32>
    %120 = vector.shape_cast %119 : vector<128xf32> to vector<1x1x128xf32>
    %121 = vector.broadcast %120 : vector<1x1x128xf32> to vector<8x16x128xf32>
    %122 = arith.addf %117, %121 : vector<8x16x128xf32>
    %123 = arith.mulf %11, %122 : vector<8x16x128xf32>
    %124 = arith.subf %123, %101 : vector<8x16x128xf32>
    %125 = math.exp %124 : vector<8x16x128xf32>
    %126 = arith.addf %113, %125 : vector<8x16x128xf32>
    %127 = vector.extract_strided_slice %26 {offsets = [0, 0, 0], sizes = [8, 16, 128], strides = [1, 1, 1]} : vector<10x16x128xf32> to vector<8x16x128xf32>
    %128 = arith.mulf %125, %127 : vector<8x16x128xf32>
    %129 = arith.addf %116, %128 : vector<8x16x128xf32>
    %130 = vector.extract_strided_slice %20 {offsets = [0, 0, 0], sizes = [8, 16, 128], strides = [1, 1, 1]} : vector<10x16x128xf32> to vector<8x16x128xf32>
    %131 = vector.extract_strided_slice %30 {offsets = [2, 0], sizes = [1, 128], strides = [1, 1]} : vector<9x128xf32> to vector<1x128xf32>
    %132 = vector.shape_cast %131 : vector<1x128xf32> to vector<128xf32>
    %133 = vector.shape_cast %132 : vector<128xf32> to vector<1x1x128xf32>
    %134 = vector.broadcast %133 : vector<1x1x128xf32> to vector<8x16x128xf32>
    %135 = arith.addf %130, %134 : vector<8x16x128xf32>
    %136 = arith.mulf %11, %135 : vector<8x16x128xf32>
    %137 = arith.subf %136, %101 : vector<8x16x128xf32>
    %138 = math.exp %137 : vector<8x16x128xf32>
    %139 = arith.addf %126, %138 : vector<8x16x128xf32>
    %140 = vector.extract_strided_slice %29 {offsets = [0, 0, 0], sizes = [8, 16, 128], strides = [1, 1, 1]} : vector<10x16x128xf32> to vector<8x16x128xf32>
    %141 = arith.mulf %138, %140 : vector<8x16x128xf32>
    %142 = arith.addf %129, %141 : vector<8x16x128xf32>
    %143 = vector.extract_strided_slice %14 {offsets = [1, 0, 0], sizes = [8, 16, 128], strides = [1, 1, 1]} : vector<10x16x128xf32> to vector<8x16x128xf32>
    %144 = vector.extract_strided_slice %30 {offsets = [3, 0], sizes = [1, 128], strides = [1, 1]} : vector<9x128xf32> to vector<1x128xf32>
    %145 = vector.shape_cast %144 : vector<1x128xf32> to vector<128xf32>
    %146 = vector.shape_cast %145 : vector<128xf32> to vector<1x1x128xf32>
    %147 = vector.broadcast %146 : vector<1x1x128xf32> to vector<8x16x128xf32>
    %148 = arith.addf %143, %147 : vector<8x16x128xf32>
    %149 = arith.mulf %11, %148 : vector<8x16x128xf32>
    %150 = arith.subf %149, %101 : vector<8x16x128xf32>
    %151 = math.exp %150 : vector<8x16x128xf32>
    %152 = arith.addf %139, %151 : vector<8x16x128xf32>
    %153 = vector.extract_strided_slice %23 {offsets = [1, 0, 0], sizes = [8, 16, 128], strides = [1, 1, 1]} : vector<10x16x128xf32> to vector<8x16x128xf32>
    %154 = arith.mulf %151, %153 : vector<8x16x128xf32>
    %155 = arith.addf %142, %154 : vector<8x16x128xf32>
    %156 = vector.extract_strided_slice %17 {offsets = [1, 0, 0], sizes = [8, 16, 128], strides = [1, 1, 1]} : vector<10x16x128xf32> to vector<8x16x128xf32>
    %157 = vector.extract_strided_slice %30 {offsets = [4, 0], sizes = [1, 128], strides = [1, 1]} : vector<9x128xf32> to vector<1x128xf32>
    %158 = vector.shape_cast %157 : vector<1x128xf32> to vector<128xf32>
    %159 = vector.shape_cast %158 : vector<128xf32> to vector<1x1x128xf32>
    %160 = vector.broadcast %159 : vector<1x1x128xf32> to vector<8x16x128xf32>
    %161 = arith.addf %156, %160 : vector<8x16x128xf32>
    %162 = arith.mulf %11, %161 : vector<8x16x128xf32>
    %163 = arith.subf %162, %101 : vector<8x16x128xf32>
    %164 = math.exp %163 : vector<8x16x128xf32>
    %165 = arith.addf %152, %164 : vector<8x16x128xf32>
    %166 = vector.extract_strided_slice %26 {offsets = [1, 0, 0], sizes = [8, 16, 128], strides = [1, 1, 1]} : vector<10x16x128xf32> to vector<8x16x128xf32>
    %167 = arith.mulf %164, %166 : vector<8x16x128xf32>
    %168 = arith.addf %155, %167 : vector<8x16x128xf32>
    %169 = vector.extract_strided_slice %20 {offsets = [1, 0, 0], sizes = [8, 16, 128], strides = [1, 1, 1]} : vector<10x16x128xf32> to vector<8x16x128xf32>
    %170 = vector.extract_strided_slice %30 {offsets = [5, 0], sizes = [1, 128], strides = [1, 1]} : vector<9x128xf32> to vector<1x128xf32>
    %171 = vector.shape_cast %170 : vector<1x128xf32> to vector<128xf32>
    %172 = vector.shape_cast %171 : vector<128xf32> to vector<1x1x128xf32>
    %173 = vector.broadcast %172 : vector<1x1x128xf32> to vector<8x16x128xf32>
    %174 = arith.addf %169, %173 : vector<8x16x128xf32>
    %175 = arith.mulf %11, %174 : vector<8x16x128xf32>
    %176 = arith.subf %175, %101 : vector<8x16x128xf32>
    %177 = math.exp %176 : vector<8x16x128xf32>
    %178 = arith.addf %165, %177 : vector<8x16x128xf32>
    %179 = vector.extract_strided_slice %29 {offsets = [1, 0, 0], sizes = [8, 16, 128], strides = [1, 1, 1]} : vector<10x16x128xf32> to vector<8x16x128xf32>
    %180 = arith.mulf %177, %179 : vector<8x16x128xf32>
    %181 = arith.addf %168, %180 : vector<8x16x128xf32>
    %182 = vector.extract_strided_slice %14 {offsets = [2, 0, 0], sizes = [8, 16, 128], strides = [1, 1, 1]} : vector<10x16x128xf32> to vector<8x16x128xf32>
    %183 = vector.extract_strided_slice %30 {offsets = [6, 0], sizes = [1, 128], strides = [1, 1]} : vector<9x128xf32> to vector<1x128xf32>
    %184 = vector.shape_cast %183 : vector<1x128xf32> to vector<128xf32>
    %185 = vector.shape_cast %184 : vector<128xf32> to vector<1x1x128xf32>
    %186 = vector.broadcast %185 : vector<1x1x128xf32> to vector<8x16x128xf32>
    %187 = arith.addf %182, %186 : vector<8x16x128xf32>
    %188 = arith.mulf %11, %187 : vector<8x16x128xf32>
    %189 = arith.subf %188, %101 : vector<8x16x128xf32>
    %190 = math.exp %189 : vector<8x16x128xf32>
    %191 = arith.addf %178, %190 : vector<8x16x128xf32>
    %192 = vector.extract_strided_slice %23 {offsets = [2, 0, 0], sizes = [8, 16, 128], strides = [1, 1, 1]} : vector<10x16x128xf32> to vector<8x16x128xf32>
    %193 = arith.mulf %190, %192 : vector<8x16x128xf32>
    %194 = arith.addf %181, %193 : vector<8x16x128xf32>
    %195 = vector.extract_strided_slice %17 {offsets = [2, 0, 0], sizes = [8, 16, 128], strides = [1, 1, 1]} : vector<10x16x128xf32> to vector<8x16x128xf32>
    %196 = vector.extract_strided_slice %30 {offsets = [7, 0], sizes = [1, 128], strides = [1, 1]} : vector<9x128xf32> to vector<1x128xf32>
    %197 = vector.shape_cast %196 : vector<1x128xf32> to vector<128xf32>
    %198 = vector.shape_cast %197 : vector<128xf32> to vector<1x1x128xf32>
    %199 = vector.broadcast %198 : vector<1x1x128xf32> to vector<8x16x128xf32>
    %200 = arith.addf %195, %199 : vector<8x16x128xf32>
    %201 = arith.mulf %11, %200 : vector<8x16x128xf32>
    %202 = arith.subf %201, %101 : vector<8x16x128xf32>
    %203 = math.exp %202 : vector<8x16x128xf32>
    %204 = arith.addf %191, %203 : vector<8x16x128xf32>
    %205 = vector.extract_strided_slice %26 {offsets = [2, 0, 0], sizes = [8, 16, 128], strides = [1, 1, 1]} : vector<10x16x128xf32> to vector<8x16x128xf32>
    %206 = arith.mulf %203, %205 : vector<8x16x128xf32>
    %207 = arith.addf %194, %206 : vector<8x16x128xf32>
    %208 = vector.extract_strided_slice %20 {offsets = [2, 0, 0], sizes = [8, 16, 128], strides = [1, 1, 1]} : vector<10x16x128xf32> to vector<8x16x128xf32>
    %209 = vector.extract_strided_slice %30 {offsets = [8, 0], sizes = [1, 128], strides = [1, 1]} : vector<9x128xf32> to vector<1x128xf32>
    %210 = vector.shape_cast %209 : vector<1x128xf32> to vector<128xf32>
    %211 = vector.shape_cast %210 : vector<128xf32> to vector<1x1x128xf32>
    %212 = vector.broadcast %211 : vector<1x1x128xf32> to vector<8x16x128xf32>
    %213 = arith.addf %208, %212 : vector<8x16x128xf32>
    %214 = arith.mulf %11, %213 : vector<8x16x128xf32>
    %215 = arith.subf %214, %101 : vector<8x16x128xf32>
    %216 = math.exp %215 : vector<8x16x128xf32>
    %217 = arith.addf %204, %216 : vector<8x16x128xf32>
    %218 = vector.extract_strided_slice %29 {offsets = [2, 0, 0], sizes = [8, 16, 128], strides = [1, 1, 1]} : vector<10x16x128xf32> to vector<8x16x128xf32>
    %219 = arith.mulf %216, %218 : vector<8x16x128xf32>
    %220 = arith.addf %207, %219 : vector<8x16x128xf32>
    %221 = tpu.reciprocal %217 {approx = true} : vector<8x16x128xf32> -> vector<8x16x128xf32>
    %222 = arith.mulf %217, %221 : vector<8x16x128xf32>
    %cst_13 = arith.constant 2.000000e+00 : f32
    %223 = vector.broadcast %cst_13 : f32 to vector<8x16x128xf32>
    %224 = arith.subf %223, %222 : vector<8x16x128xf32>
    %225 = arith.mulf %221, %224 : vector<8x16x128xf32>
    %226 = arith.mulf %220, %225 : vector<8x16x128xf32>
    %227 = vector.shape_cast %226 : vector<8x16x128xf32> to vector<1x8x16x128xf32>
    %c0_14 = arith.constant 0 : index
    %c0_15 = arith.constant 0 : index
    %c0_16 = arith.constant 0 : index
    %c0_17 = arith.constant 0 : index
    %228 = vector.load %arg6[%c0_14, %c0_15, %c0_16, %c0_17] : memref<1x8x16x128xf32, #tpu.memory_space<vmem>>, vector<1x8x16x128xf32>
    tpu.vector_store %arg6[%c0_14, %c0_15, %c0_16, %c0_17], %227 {strides = array<i32>} : memref<1x8x16x128xf32, #tpu.memory_space<vmem>>, vector<1x8x16x128xf32>,
    return
  }
  func.func @transform_0(%arg0: i32, %arg1: i32) -> (i32, i32, i32, i32) {
    %c0_i32 = arith.constant 0 : i32
    %c0_i32_0 = arith.constant 0 : i32
    %c0_i32_1 = arith.constant 0 : i32
    return %arg0, %arg1, %c0_i32, %c0_i32_0 : i32, i32, i32, i32
  }
  func.func @transform_1(%arg0: i32, %arg1: i32) -> (i32, i32, i32, i32) {
    %c1_i32 = arith.constant 1 : i32
    %0 = arith.addi %arg1, %c1_i32 : i32
    %c4_i32 = arith.constant 4 : i32
    %1 = arith.muli %0, %c4_i32 : i32
    %c0_i32 = arith.constant 0 : i32
    %c0_i32_0 = arith.constant 0 : i32
    %c0_i32_1 = arith.constant 0 : i32
    return %arg0, %1, %c0_i32, %c0_i32_0 : i32, i32, i32, i32
  }
  func.func @transform_2(%arg0: i32, %arg1: i32) -> (i32, i32) {
    %c0_i32 = arith.constant 0 : i32
    %c0_i32_0 = arith.constant 0 : i32
    %c0_i32_1 = arith.constant 0 : i32
    return %c0_i32, %c0_i32_0 : i32, i32
  }
  func.func @transform_3(%arg0: i32, %arg1: i32) -> (i32, i32) {
    %c0_i32 = arith.constant 0 : i32
    %c0_i32_0 = arith.constant 0 : i32
    %c0_i32_1 = arith.constant 0 : i32
    return %c0_i32, %c0_i32_0 : i32, i32
  }
  func.func @transform_4(%arg0: i32, %arg1: i32) -> (i32, i32, i32, i32) {
    %c0_i32 = arith.constant 0 : i32
    %c0_i32_0 = arith.constant 0 : i32
    %c0_i32_1 = arith.constant 0 : i32
    return %arg0, %arg1, %c0_i32, %c0_i32_0 : i32, i32, i32, i32
  }
}

</mosaic_0001>

<llo_original>
// kernel: tpu_custom_call.1
$region0: #{tpu_custom_call.1}
  #allocation0 [shape = 'u32[]', space=smem, size = 0x4, offset = 0x4, fixed_abs, tag = 'smem constant byte address 0x4 - core index']
  #allocation1 [shape = 'u32[72,128]{1,0:T(1,128)}', space=vmem, size = 0x9000, scoped, tag = 'internal scratch']
  %s0 = inlined_call_operand.hbm [shape: f32[2,18,24,32], index: 0, kind: input, shape index: {}]
  %s1 = inlined_call_operand.hbm [shape: f32[2,18,24,32], index: 1, kind: input, shape index: {}]
  %s2 = inlined_call_operand.hbm [shape: f32[32,384], index: 2, kind: input, shape index: {}]
  %s3 = inlined_call_operand.hbm [shape: f32[9,128], index: 3, kind: input, shape index: {}]
  %s4 = inlined_call_operand.hbm [shape: f32[2,16,16,128], index: 4, kind: output, shape index: {}]
  %s5 = sld [smem:[#allocation0]]
  $region65: #{tpu_custom_call.1} parent=0
    _
  %s7 = ssub.s32 1, %s5
  %s8 = scalar_select 0, %s7, %s5
  $region1: #{tpu_custom_call.1} parent=0
    #allocation2 [shape = 'u8[196608]{0}', space=vmem, size = 0x30000, scoped, tag = 'input window, operand 0']
    #allocation3 [shape = 's32[2]{0}', space=sflag, size = 0x8, scoped, tag = 'scoped memory for tpu_custom_call.1']
    #allocation4 [shape = 's32[2]{0}', space=sflag, size = 0x8, scoped, tag = 'scoped memory for tpu_custom_call.1']
    #allocation5 [shape = 'u8[49152]{0}', space=vmem, size = 0xc000, scoped, tag = 'input window, operand 1']
    #allocation6 [shape = 's32[2]{0}', space=sflag, size = 0x8, scoped, tag = 'scoped memory for tpu_custom_call.1']
    #allocation7 [shape = 'u8[49152]{0}', space=vmem, size = 0xc000, scoped, tag = 'input window, operand 2, single buffered']
    #allocation8 [shape = 'u8[8192]{0}', space=vmem, size = 0x2000, scoped, tag = 'input window, operand 3, single buffered']
    #allocation9 [shape = 's32[1]{0}', space=sflag, size = 0x4, scoped, tag = 'scoped memory for tpu_custom_call.1']
    #allocation10 [shape = 'u8[131072]{0}', space=vmem, size = 0x20000, scoped, tag = 'output window, operand 0']
    %9 = vsyncpa [#allocation3], 0
    %s10 = scalar_lea.sflag [#allocation3], 1
    %11 = vsyncpa %s10, 0
    %12 = vsyncpa [#allocation6], 0
    %s13 = scalar_lea.sflag [#allocation6], 1
    %14 = vsyncpa %s13, 0
    %15 = vsyncpa [#allocation9], 0
    %16 = vsyncpa [#allocation4], 0
    %s17 = scalar_lea.sflag [#allocation4], 1
    %18 = vsyncpa %s17, 0
    loop: start=0, step=1, limit=6
    $region2: #{tpu_custom_call.1} parent=1 // loop_pre_header
      _
    $region3: #{tpu_custom_call.1} parent=1 // loop_header
      %s20 = sphi 0, %s24
      %p21 = scmp.ge.s32.totalorder %s20, 6
      %s27 = sphi 0, %s39
      %s28 = sphi 0, %s35
      %s29 = sphi 0, %s27
      %s30 = sphi 0, %s28
      %s31 = sphi 0, %s29
      %s32 = sphi 0, %s30
      %s44 = sphi 0, %s46
      %s47 = sphi 0, %s44
      %s48 = sphi 0, %s47
      %s64 = sphi 0, %s48
      %s76 = sphi 0, %s78
      %s79 = sphi 0, %s76
      %s80 = sphi 0, %s79
      %s96 = sphi 0, %s80
      %s100 = sphi 0, %s100
      %s102 = sphi 0, %s100
      %s103 = sphi 0, %s102
      %s117 = sphi 0, %s103
      %s121 = sphi 0, %s121
      %s123 = sphi 0, %s121
      %s124 = sphi 0, %s123
      %s138 = sphi 0, %s124
      %s146 = sphi 0, %s148
      %s149 = sphi 0, %s146
      %s150 = sphi 0, %s149
      %s166 = sphi 0, %s150
    $region4: #{tpu_custom_call.1} parent=1 // loop_header_branch
      %23 = sbr.rel (%p21) target = $region8
    $region5: #{tpu_custom_call.1} parent=1 // loop_body
      %s25 = ssub.s32 %s20, 1
      %s26 = ssub.s32 %s20, 2
      %s33 = sadd.s32 1, %s28
      %p34 = scmp.ge.s32.totalorder %s33, 2
      %s35 = scalar_select %p34, 0, %s33
      %s36 = sadd.s32 1, %s27
      %s37 = scalar_select %p34, %s36, %s27
      %p38 = scmp.ge.s32.totalorder %s37, 2
      %s39 = scalar_select %p38, 0, %s37
      %s40 = ssub.s32 %s27, %s39
      %s41 = ssub.s32 %s28, %s35
      %s42 = sor.u32 %s40, %s41
      %p43 = scmp.eq.s32.totalorder %s42, 0
      %s45 = sadd.s32 %s44, 1
      %s46 = scalar_select %p43, %s44, %s45
      %p49 = pneg %p43
      %p50 = scmp.eq.s32.totalorder %s20, 3
      %p51 = por %p49, %p50
      %p52 = scmp.ne.s32.totalorder %s44, %s47
      %p53 = scmp.eq.s32.totalorder %s20, 0
      %p54 = por %p52, %p53
      %p55 = scmp.ne.s32.totalorder %s44, %s47
      %p56 = scmp.eq.s32.totalorder %s25, 3
      %p57 = por %p55, %p56
      %p58 = scmp.ne.s32.totalorder %s47, %s48
      %p59 = scmp.eq.s32.totalorder %s25, 0
      %p60 = por %p58, %p59
      %p61 = scmp.ne.s32.totalorder %s47, %s48
      %p62 = scmp.eq.s32.totalorder %s26, 3
      %p63 = por %p61, %p62
      %p65 = scmp.ne.s32.totalorder %s48, %s64
      %p66 = scmp.eq.s32.totalorder %s26, 0
      %p67 = por %p65, %p66
      %s68 = sadd.s32 %s28, 1
      %s69 = smul.u32 %s68, 4
      %s70 = sadd.s32 %s35, 1
      %s71 = smul.u32 %s70, 4
      %s72 = ssub.s32 %s27, %s39
      %s73 = ssub.s32 %s69, %s71
      %s74 = sor.u32 %s72, %s73
      %p75 = scmp.eq.s32.totalorder %s74, 0
      %s77 = sadd.s32 %s76, 1
      %s78 = scalar_select %p75, %s76, %s77
      %p81 = pneg %p75
      %p82 = scmp.eq.s32.totalorder %s20, 3
      %p83 = por %p81, %p82
      %p84 = scmp.ne.s32.totalorder %s76, %s79
      %p85 = scmp.eq.s32.totalorder %s20, 0
      %p86 = por %p84, %p85
      %p87 = scmp.ne.s32.totalorder %s76, %s79
      %p88 = scmp.eq.s32.totalorder %s25, 3
      %p89 = por %p87, %p88
      %p90 = scmp.ne.s32.totalorder %s79, %s80
      %p91 = scmp.eq.s32.totalorder %s25, 0
      %p92 = por %p90, %p91
      %p93 = scmp.ne.s32.totalorder %s79, %s80
      %p94 = scmp.eq.s32.totalorder %s26, 3
      %p95 = por %p93, %p94
      %p97 = scmp.ne.s32.totalorder %s80, %s96
      %p98 = scmp.eq.s32.totalorder %s26, 0
      %p99 = por %p97, %p98
      %s101 = sadd.s32 %s100, 1
      %p104 = scmp.eq.s32.totalorder %s20, 3
      %p105 = scmp.ne.s32.totalorder %s100, %s102
      %p106 = scmp.eq.s32.totalorder %s20, 0
      %p107 = por %p105, %p106
      %p108 = scmp.ne.s32.totalorder %s100, %s102
      %p109 = scmp.eq.s32.totalorder %s25, 3
      %p110 = por %p108, %p109
      %p111 = scmp.ne.s32.totalorder %s102, %s103
      %p112 = scmp.eq.s32.totalorder %s25, 0
      %p113 = por %p111, %p112
      %p114 = scmp.ne.s32.totalorder %s102, %s103
      %p115 = scmp.eq.s32.totalorder %s26, 3
      %p116 = por %p114, %p115
      %p118 = scmp.ne.s32.totalorder %s103, %s117
      %p119 = scmp.eq.s32.totalorder %s26, 0
      %p120 = por %p118, %p119
      %s122 = sadd.s32 %s121, 1
      %p125 = scmp.eq.s32.totalorder %s20, 3
      %p126 = scmp.ne.s32.totalorder %s121, %s123
      %p127 = scmp.eq.s32.totalorder %s20, 0
      %p128 = por %p126, %p127
      %p129 = scmp.ne.s32.totalorder %s121, %s123
      %p130 = scmp.eq.s32.totalorder %s25, 3
      %p131 = por %p129, %p130
      %p132 = scmp.ne.s32.totalorder %s123, %s124
      %p133 = scmp.eq.s32.totalorder %s25, 0
      %p134 = por %p132, %p133
      %p135 = scmp.ne.s32.totalorder %s123, %s124
      %p136 = scmp.eq.s32.totalorder %s26, 3
      %p137 = por %p135, %p136
      %p139 = scmp.ne.s32.totalorder %s124, %s138
      %p140 = scmp.eq.s32.totalorder %s26, 0
      %p141 = por %p139, %p140
      %s142 = ssub.s32 %s27, %s39
      %s143 = ssub.s32 %s28, %s35
      %s144 = sor.u32 %s142, %s143
      %p145 = scmp.eq.s32.totalorder %s144, 0
      %s147 = sadd.s32 %s146, 1
      %s148 = scalar_select %p145, %s146, %s147
      %p151 = pneg %p145
      %p152 = scmp.eq.s32.totalorder %s20, 3
      %p153 = por %p151, %p152
      %p154 = scmp.ne.s32.totalorder %s146, %s149
      %p155 = scmp.eq.s32.totalorder %s20, 0
      %p156 = por %p154, %p155
      %p157 = scmp.ne.s32.totalorder %s146, %s149
      %p158 = scmp.eq.s32.totalorder %s25, 3
      %p159 = por %p157, %p158
      %p160 = scmp.ne.s32.totalorder %s149, %s150
      %p161 = scmp.eq.s32.totalorder %s25, 0
      %p162 = por %p160, %p161
      %p163 = scmp.ne.s32.totalorder %s149, %s150
      %p164 = scmp.eq.s32.totalorder %s26, 3
      %p165 = por %p163, %p164
      %p167 = scmp.ne.s32.totalorder %s150, %s166
      %p168 = scmp.eq.s32.totalorder %s26, 0
      %p169 = por %p167, %p168
      %p170 = scmp.le.s32.totalorder 1, %s20
      %p171 = scmp.lt.s32.totalorder %s20, 5
      %p172 = pnand %p170, %p171
      %p173 = pneg %p172
      // Predicated region
      $region9: #{tpu_custom_call.1} parent=5 // pred_check
        _
      $region10: #{tpu_custom_call.1} parent=5 // pred_check_branch
        %175 = sbr.rel (%p172) target = $region12
      $region11: #{tpu_custom_call.1} parent=5 // pred_region
        %s176 = ssub.s32 %s20, 1
        // Predicated region
        $region13: #{tpu_custom_call.1} parent=11 // pred_check
          %p177 = pneg %p113
        $region14: #{tpu_custom_call.1} parent=11 // pred_check_branch
          %179 = sbr.rel (%p177) target = $region16
        $region15: #{tpu_custom_call.1} parent=11 // pred_region
          %181 = vsyncadd [#allocation6], 0
          %s182 = sshll.u32 %s2, 4
          %s183 = int_to_ptr.hbm [resolvable:$true] %s182
          %s184 = sshll.u32 [#allocation7], 4
          %s185 = int_to_ptr.vmem [resolvable:$true] %s184
          %190 = dma.hbm_to_vmem [thread:$0]  %s183, 1536, %s185, [#allocation6], 384, 384, 24
        $region16: #{tpu_custom_call.1} parent=11 // pred_fallthru
          _
        // Predicated region
        $region17: #{tpu_custom_call.1} parent=11 // pred_check
          %p191 = pneg %p134
        $region18: #{tpu_custom_call.1} parent=11 // pred_check_branch
          %193 = sbr.rel (%p191) target = $region20
        $region19: #{tpu_custom_call.1} parent=11 // pred_region
          %195 = vsyncadd [#allocation9], 0
          %s196 = sshll.u32 %s3, 4
          %s197 = int_to_ptr.hbm [resolvable:$true] %s196
          %s198 = sshll.u32 [#allocation8], 4
          %s199 = int_to_ptr.vmem [resolvable:$true] %s198
          %204 = dma.hbm_to_vmem [thread:$0]  %s197, 256, %s199, [#allocation9], 128, 128, 8
        $region20: #{tpu_custom_call.1} parent=11 // pred_fallthru
          _
      $region12: #{tpu_custom_call.1} parent=5 // pred_fallthru
        _
      %p205 = scmp.lt.s32.totalorder %s20, 4
      // Predicated region
      $region21: #{tpu_custom_call.1} parent=5 // pred_check
        %p206 = pneg %p205
      $region22: #{tpu_custom_call.1} parent=5 // pred_check_branch
        %208 = sbr.rel (%p206) target = $region24
      $region23: #{tpu_custom_call.1} parent=5 // pred_region
        // Predicated region
        $region25: #{tpu_custom_call.1} parent=23 // pred_check
          %p209 = pneg %p54
        $region26: #{tpu_custom_call.1} parent=23 // pred_check_branch
          %211 = sbr.rel (%p209) target = $region28
        $region27: #{tpu_custom_call.1} parent=23 // pred_region
          %s212 = sand.u32 %s44, 1
          %s213 = scalar_lea.sflag [#allocation3], %s212
          %s214 = sand.u32 %s44, 1
          %s215 = smul.addr %s214, 192
          %s216 = scalar_lea.vmem [#allocation2], %s215
          %s217 = smul.u32 8, %s28
          %s218 = ssub.s32 18, %s217
          %p219 = scmp.lt.s32.totalorder %s218, 8
          %s220 = scalar_select %p219, %s218, 8
          %s221 = smul.u32 8, %s220
          %s222 = smul.u32 %s221, 3
          %s223 = ssub.s32 192, %s222
          %s224 = sshll.u32 %s223, 4
          %225 = vsyncadd %s213, %s224
          %p226 = scmp.ne.s32.totalorder 0, %s222
          %s227 = smul.addr %s217, 3
          %s228 = smul.addr %s27, 54
          %s229 = sadd.s32 %s227, %s228
          %s230 = smul.addr %s229, 8
          %s231 = scalar_lea.hbm %s0, %s230
          %s232 = smul.u32 %s220, 3
          %s233 = smul.u32 8, %s232
          %s234 = sshll.u32 %s231, 4
          %s235 = int_to_ptr.hbm [resolvable:$true] %s234
          %s236 = sshll.u32 %s216, 4
          %s237 = int_to_ptr.vmem [resolvable:$true] %s236
          %s238 = sshll.u32 %s233, 4
          %242 = dma.hbm_to_vmem [thread:$0]  (%p226), %s235, %s238, %s237, %s213, 128, 128, 8
        $region28: #{tpu_custom_call.1} parent=23 // pred_fallthru
          _
        // Predicated region
        $region29: #{tpu_custom_call.1} parent=23 // pred_check
          %p243 = pneg %p86
        $region30: #{tpu_custom_call.1} parent=23 // pred_check_branch
          %245 = sbr.rel (%p243) target = $region32
        $region31: #{tpu_custom_call.1} parent=23 // pred_region
          %s246 = sand.u32 %s20, 1
          %s247 = scalar_lea.sflag [#allocation6], %s246
          %s248 = sand.u32 %s76, 1
          %s249 = smul.addr %s248, 48
          %s250 = scalar_lea.vmem [#allocation5], %s249
          %s251 = sadd.s32 %s28, 1
          %s252 = smul.u32 %s251, 4
          %s253 = smul.u32 2, %s252
          %255 = vsyncadd %s247, 0
          %s256 = smul.addr %s253, 3
          %s257 = smul.addr %s27, 54
          %s258 = sadd.s32 %s256, %s257
          %s259 = smul.addr %s258, 8
          %s260 = scalar_lea.hbm %s1, %s259
          %s261 = sshll.u32 %s260, 4
          %s262 = int_to_ptr.hbm [resolvable:$true] %s261
          %s263 = sshll.u32 %s250, 4
          %s264 = int_to_ptr.vmem [resolvable:$true] %s263
          %269 = dma.hbm_to_vmem [thread:$0]  %s262, 768, %s264, %s247, 128, 128, 8
        $region32: #{tpu_custom_call.1} parent=23 // pred_fallthru
          _
      $region24: #{tpu_custom_call.1} parent=5 // pred_fallthru
        _
      %p270 = scmp.le.s32.totalorder 1, %s20
      %p271 = scmp.lt.s32.totalorder %s20, 5
      %p272 = pnand %p270, %p271
      %p273 = pneg %p272
      // Predicated region
      $region33: #{tpu_custom_call.1} parent=5 // pred_check
        _
      $region34: #{tpu_custom_call.1} parent=5 // pred_check_branch
        %275 = sbr.rel (%p272) target = $region36
      $region35: #{tpu_custom_call.1} parent=5 // pred_region
        %s276 = ssub.s32 %s20, 1
        %s277 = sand.u32 %s47, 1
        %s278 = scalar_lea.sflag [#allocation3], %s277
        %s279 = sand.u32 %s47, 1
        %s280 = smul.addr %s279, 192
        %s281 = scalar_lea.vmem [#allocation2], %s280
        // Predicated region
        $region37: #{tpu_custom_call.1} parent=35 // pred_check
          %p282 = pneg %p60
        $region38: #{tpu_custom_call.1} parent=35 // pred_check_branch
          %284 = sbr.rel (%p282) target = $region40
        $region39: #{tpu_custom_call.1} parent=35 // pred_region
          %286 = dma.done %s278, 3072
        $region40: #{tpu_custom_call.1} parent=35 // pred_fallthru
          _
        %s287 = sand.u32 %s25, 1
        %s288 = scalar_lea.sflag [#allocation6], %s287
        %s289 = sand.u32 %s79, 1
        %s290 = smul.addr %s289, 48
        %s291 = scalar_lea.vmem [#allocation5], %s290
        // Predicated region
        $region41: #{tpu_custom_call.1} parent=35 // pred_check
          %p292 = pneg %p92
        $region42: #{tpu_custom_call.1} parent=35 // pred_check_branch
          %294 = sbr.rel (%p292) target = $region44
        $region43: #{tpu_custom_call.1} parent=35 // pred_region
          %296 = dma.done %s288, 768
        $region44: #{tpu_custom_call.1} parent=35 // pred_fallthru
          _
        // Predicated region
        $region45: #{tpu_custom_call.1} parent=35 // pred_check
          %p297 = pneg %p113
        $region46: #{tpu_custom_call.1} parent=35 // pred_check_branch
          %299 = sbr.rel (%p297) target = $region48
        $region47: #{tpu_custom_call.1} parent=35 // pred_region
          %301 = dma.done [#allocation6], 1536
        $region48: #{tpu_custom_call.1} parent=35 // pred_fallthru
          _
        // Predicated region
        $region49: #{tpu_custom_call.1} parent=35 // pred_check
          %p302 = pneg %p134
        $region50: #{tpu_custom_call.1} parent=35 // pred_check_branch
          %304 = sbr.rel (%p302) target = $region52
        $region51: #{tpu_custom_call.1} parent=35 // pred_region
          %306 = dma.done [#allocation9], 256
        $region52: #{tpu_custom_call.1} parent=35 // pred_fallthru
          _
        %s307 = sand.u32 %s47, 1
        %s308 = scalar_lea.sflag [#allocation3], %s307
        %s309 = sand.u32 %s47, 1
        %s310 = smul.addr %s309, 192
        %s311 = scalar_lea.vmem [#allocation2], %s310
        %p312 = pneg %p60
        %p313 = pneg %p57
        %s314 = sand.u32 %s25, 1
        %s315 = scalar_lea.sflag [#allocation6], %s314
        %s316 = sand.u32 %s79, 1
        %s317 = smul.addr %s316, 48
        %s318 = scalar_lea.vmem [#allocation5], %s317
        %p319 = pneg %p92
        %p320 = pneg %p89
        %p321 = pneg %p113
        %p322 = pneg %p110
        %p323 = pneg %p134
        %p324 = pneg %p131
        %p325 = pneg %p162
        %p326 = pneg %p159
        %s327 = sand.u32 %s149, 1
        %s328 = scalar_lea.sflag [#allocation4], %s327
        %s329 = sand.u32 %s149, 1
        %s330 = smul.addr %s329, 128
        %s331 = scalar_lea.vmem [#allocation10], %s330
        %s332 = smul.u32 8, %s30
        %s333 = ssub.s32 18, %s332
        %p334 = scmp.lt.s32.totalorder %s333, 8
        %s335 = scalar_select %p334, %s333, 8
        %s336 = smul.u32 8, %s335
        %s337 = smul.u32 %s336, 3
        %s338 = sadd.s32 %s30, 1
        %s339 = smul.u32 %s338, 4
        %s340 = smul.u32 2, %s339
        %s341 = smul.u32 8, %s30
        %v342 = vld [vmem:[%s281] sm:$0xff]
        %v343 = vld [vmem:[%s281 + $0x8] sm:$0xff]
        %v344 = vld [vmem:[%s281 + $0x10] sm:$0xff]
        %v345 = vld [vmem:[%s281 + $0x18] sm:$0xff]
        %v346 = vld [vmem:[%s281 + $0x20] sm:$0xff]
        %v347 = vld [vmem:[%s281 + $0x28] sm:$0xff]
        %v348 = vld [vmem:[%s281 + $0x30] sm:$0xff]
        %v349 = vld [vmem:[%s281 + $0x38] sm:$0xff]
        %v350 = vld [vmem:[%s281 + $0x40] sm:$0xff]
        %v351 = vld [vmem:[%s281 + $0x48] sm:$0xff]
        %v352 = vld [vmem:[%s281 + $0x50] sm:$0xff]
        %v353 = vld [vmem:[%s281 + $0x58] sm:$0xff]
        %v354 = vld [vmem:[%s281 + $0x60] sm:$0xff]
        %v355 = vld [vmem:[%s281 + $0x68] sm:$0xff]
        %v356 = vld [vmem:[%s281 + $0x70] sm:$0xff]
        %v357 = vld [vmem:[%s281 + $0x78] sm:$0xff]
        %v358 = vld [vmem:[%s281 + $0x80] sm:$0xff]
        %v359 = vld [vmem:[%s281 + $0x88] sm:$0xff]
        %v360 = vld [vmem:[%s281 + $0x90] sm:$0xff]
        %v361 = vld [vmem:[%s281 + $0x98] sm:$0xff]
        %v362 = vld [vmem:[%s281 + $0xa0] sm:$0xff]
        %v363 = vld [vmem:[%s281 + $0xa8] sm:$0xff]
        %v364 = vld [vmem:[%s281 + $0xb0] sm:$0xff]
        %v365 = vld [vmem:[%s281 + $0xb8] sm:$0xff]
        %v366 = vld [vmem:[%s291] sm:$0xff]
        %v367 = vld [vmem:[%s291 + $0x8] sm:$0xff]
        %v368 = vld [vmem:[%s291 + $0x10] sm:$0xff]
        %v369 = vld [vmem:[%s291 + $0x18] sm:$0xff]
        %v370 = vld [vmem:[%s291 + $0x20] sm:$0xff]
        %v371 = vld [vmem:[%s291 + $0x28] sm:$0xff]
        %v372 = vld [vmem:[#allocation7] sm:$0xff]
        %v373 = vld [vmem:[#allocation7 + $0x8] sm:$0xff]
        %v374 = vld [vmem:[#allocation7 + $0x10] sm:$0xff]
        %v375 = vld [vmem:[#allocation7 + $0x18] sm:$0xff]
        %v376 = vld [vmem:[#allocation7 + $0x20] sm:$0xff]
        %v377 = vld [vmem:[#allocation7 + $0x28] sm:$0xff]
        %v378 = vld [vmem:[#allocation7 + $0x30] sm:$0xff]
        %v379 = vld [vmem:[#allocation7 + $0x38] sm:$0xff]
        %v380 = vld [vmem:[#allocation7 + $0x40] sm:$0xff]
        %v381 = vld [vmem:[#allocation7 + $0x48] sm:$0xff]
        %v382 = vld [vmem:[#allocation7 + $0x50] sm:$0xff]
        %v383 = vld [vmem:[#allocation7 + $0x58] sm:$0xff]
        %vm384 = vcmask 261120
        %v386 = vsel %vm384, %v342, 0
        %v389 = vsel %vm384, %v343, 0
        %v392 = vsel %vm384, %v344, 0
        %v395 = vsel %vm384, %v345, 0
        %v398 = vsel %vm384, %v346, 0
        %v401 = vsel %vm384, %v347, 0
        %v404 = vsel %vm384, %v348, 0
        %v407 = vsel %vm384, %v349, 0
        %v410 = vsel %vm384, %v350, 0
        %v413 = vsel %vm384, %v351, 0
        %v416 = vsel %vm384, %v352, 0
        %v419 = vsel %vm384, %v353, 0
        %v422 = vsel %vm384, %v354, 0
        %v425 = vsel %vm384, %v355, 0
        %v428 = vsel %vm384, %v356, 0
        %v431 = vsel %vm384, %v357, 0
        %v434 = vsel %vm384, %v358, 0
        %v437 = vsel %vm384, %v359, 0
        %v440 = vsel %vm384, %v360, 0
        %v443 = vsel %vm384, %v361, 0
        %v446 = vsel %vm384, %v362, 0
        %v449 = vsel %vm384, %v363, 0
        %v452 = vsel %vm384, %v364, 0
        %v455 = vsel %vm384, %v365, 0
        %v458 = vsel %vm384, %v366, 0
        %v461 = vsel %vm384, %v367, 0
        %v464 = vsel %vm384, %v368, 0
        %v467 = vsel %vm384, %v369, 0
        %v470 = vsel %vm384, %v370, 0
        %v473 = vsel %vm384, %v371, 0
        %475 = vmatpush.msra.mxu0 0.0
        %476 = vmatpush.msra.mxu0 0.0
        %477 = vmatpush.msra.mxu0 0.0
        %478 = vmatpush.msra.mxu0 0.0
        %479 = vmatpush.msra.mxu0 0.0
        %480 = vmatpush.msra.mxu0 0.0
        %481 = vmatpush.msra.mxu0 0.0
        %482 = vmatpush.msra.mxu0 0.0
        %483 = vmatpush.msra.mxu0 0.0
        %484 = vmatpush.msra.mxu0 0.0
        %485 = vmatpush.msra.mxu0 0.0
        %486 = vmatpush.msra.mxu0 0.0
        %487 = vmatpush.msra.mxu0 %v381
        %488 = vmatpush.msra.mxu0 %v378
        %489 = vmatpush.msra.mxu0 %v375
        %490 = vmatpush.msra.mxu0 %v372
        %491 = vmatmul.f32.gmra.mxu0 %v386
        %v492 = vpop.f32.mrf.mxu0
        %493 = vmatmul.f32.gmra.mxu0 %v389
        %v494 = vpop.f32.mrf.mxu0
        %495 = vmatmul.f32.gmra.mxu0 %v392
        %v496 = vpop.f32.mrf.mxu0
        %497 = vmatmul.f32.gmra.mxu0 %v395
        %v498 = vpop.f32.mrf.mxu0
        %v499 = vadd.f32 0.0, %v498
        %500 = vmatmul.f32.gmra.mxu0 %v398
        %v501 = vpop.f32.mrf.mxu0
        %v502 = vadd.f32 0.0, %v501
        %503 = vmatmul.f32.gmra.mxu0 %v401
        %v504 = vpop.f32.mrf.mxu0
        %v505 = vadd.f32 0.0, %v504
        %506 = vmatmul.f32.gmra.mxu0 %v404
        %v507 = vpop.f32.mrf.mxu0
        %v508 = vadd.f32 0.0, %v507
        %509 = vmatmul.f32.gmra.mxu0 %v407
        %v510 = vpop.f32.mrf.mxu0
        %v511 = vadd.f32 0.0, %v510
        %512 = vmatmul.f32.gmra.mxu0 %v410
        %v513 = vpop.f32.mrf.mxu0
        %v514 = vadd.f32 0.0, %v513
        %515 = vmatmul.f32.gmra.mxu0 %v413
        %v516 = vpop.f32.mrf.mxu0
        %v517 = vadd.f32 0.0, %v516
        %518 = vmatmul.f32.gmra.mxu0 %v416
        %v519 = vpop.f32.mrf.mxu0
        %v520 = vadd.f32 0.0, %v519
        %521 = vmatmul.f32.gmra.mxu0 %v419
        %v522 = vpop.f32.mrf.mxu0
        %v523 = vadd.f32 0.0, %v522
        %524 = vmatmul.f32.gmra.mxu0 %v422
        %v525 = vpop.f32.mrf.mxu0
        %v526 = vadd.f32 0.0, %v525
        %527 = vmatmul.f32.gmra.mxu0 %v425
        %v528 = vpop.f32.mrf.mxu0
        %v529 = vadd.f32 0.0, %v528
        %530 = vmatmul.f32.gmra.mxu0 %v428
        %v531 = vpop.f32.mrf.mxu0
        %v532 = vadd.f32 0.0, %v531
        %533 = vmatmul.f32.gmra.mxu0 %v431
        %v534 = vpop.f32.mrf.mxu0
        %v535 = vadd.f32 0.0, %v534
        %536 = vmatmul.f32.gmra.mxu0 %v434
        %v537 = vpop.f32.mrf.mxu0
        %v538 = vadd.f32 0.0, %v537
        %539 = vmatmul.f32.gmra.mxu0 %v437
        %v540 = vpop.f32.mrf.mxu0
        %v541 = vadd.f32 0.0, %v540
        %542 = vmatmul.f32.gmra.mxu0 %v440
        %v543 = vpop.f32.mrf.mxu0
        %v544 = vadd.f32 0.0, %v543
        %545 = vmatmul.f32.gmra.mxu0 %v443
        %v546 = vpop.f32.mrf.mxu0
        %v547 = vadd.f32 0.0, %v546
        %548 = vmatmul.f32.gmra.mxu0 %v446
        %v549 = vpop.f32.mrf.mxu0
        %v550 = vadd.f32 0.0, %v549
        %551 = vmatmul.f32.gmra.mxu0 %v449
        %v552 = vpop.f32.mrf.mxu0
        %v553 = vadd.f32 0.0, %v552
        %554 = vmatmul.f32.gmra.mxu0 %v452
        %v555 = vpop.f32.mrf.mxu0
        %v556 = vadd.f32 0.0, %v555
        %557 = vmatmul.f32.gmra.mxu0 %v455
        %v558 = vpop.f32.mrf.mxu0
        %v559 = vadd.f32 0.0, %v558
        %560 = vmatmul.f32.gmra.mxu0 %v458
        %v561 = vpop.f32.mrf.mxu0
        %v562 = vadd.f32 0.0, %v561
        %563 = vmatmul.f32.gmra.mxu0 %v461
        %v564 = vpop.f32.mrf.mxu0
        %v565 = vadd.f32 0.0, %v564
        %566 = vmatmul.f32.gmra.mxu0 %v464
        %v567 = vpop.f32.mrf.mxu0
        %v568 = vadd.f32 0.0, %v567
        %569 = vmatmul.f32.gmra.mxu0 %v467
        %v570 = vpop.f32.mrf.mxu0
        %571 = vmatmul.f32.gmra.mxu0 %v470
        %v572 = vpop.f32.mrf.mxu0
        %573 = vmatmul.f32.gmra.mxu0 %v473
        %v574 = vpop.f32.mrf.mxu0
        %575 = vdwg.mxu0
        %576 = vmatpush.msra.mxu0 0.0
        %577 = vmatpush.msra.mxu0 0.0
        %578 = vmatpush.msra.mxu0 0.0
        %579 = vmatpush.msra.mxu0 0.0
        %580 = vmatpush.msra.mxu0 0.0
        %581 = vmatpush.msra.mxu0 0.0
        %582 = vmatpush.msra.mxu0 0.0
        %583 = vmatpush.msra.mxu0 0.0
        %584 = vmatpush.msra.mxu0 0.0
        %585 = vmatpush.msra.mxu0 0.0
        %586 = vmatpush.msra.mxu0 0.0
        %587 = vmatpush.msra.mxu0 0.0
        %588 = vmatpush.msra.mxu0 %v382
        %589 = vmatpush.msra.mxu0 %v379
        %590 = vmatpush.msra.mxu0 %v376
        %591 = vmatpush.msra.mxu0 %v373
        %592 = vmatmul.f32.gmra.mxu0 %v386
        %v593 = vpop.f32.mrf.mxu0
        %v594 = vadd.f32 0.0, %v593
        %595 = vmatmul.f32.gmra.mxu0 %v389
        %v596 = vpop.f32.mrf.mxu0
        %v597 = vadd.f32 0.0, %v596
        %598 = vmatmul.f32.gmra.mxu0 %v392
        %v599 = vpop.f32.mrf.mxu0
        %v600 = vadd.f32 0.0, %v599
        %601 = vmatmul.f32.gmra.mxu0 %v395
        %v602 = vpop.f32.mrf.mxu0
        %v603 = vadd.f32 0.0, %v602
        %604 = vmatmul.f32.gmra.mxu0 %v398
        %v605 = vpop.f32.mrf.mxu0
        %v606 = vadd.f32 0.0, %v605
        %607 = vmatmul.f32.gmra.mxu0 %v401
        %v608 = vpop.f32.mrf.mxu0
        %v609 = vadd.f32 0.0, %v608
        %610 = vmatmul.f32.gmra.mxu0 %v404
        %v611 = vpop.f32.mrf.mxu0
        %v612 = vadd.f32 0.0, %v611
        %613 = vmatmul.f32.gmra.mxu0 %v407
        %v614 = vpop.f32.mrf.mxu0
        %v615 = vadd.f32 0.0, %v614
        %616 = vmatmul.f32.gmra.mxu0 %v410
        %v617 = vpop.f32.mrf.mxu0
        %v618 = vadd.f32 0.0, %v617
        %619 = vmatmul.f32.gmra.mxu0 %v413
        %v620 = vpop.f32.mrf.mxu0
        %v621 = vadd.f32 0.0, %v620
        %622 = vmatmul.f32.gmra.mxu0 %v416
        %v623 = vpop.f32.mrf.mxu0
        %v624 = vadd.f32 0.0, %v623
        %625 = vmatmul.f32.gmra.mxu0 %v419
        %v626 = vpop.f32.mrf.mxu0
        %v627 = vadd.f32 0.0, %v626
        %628 = vmatmul.f32.gmra.mxu0 %v422
        %v629 = vpop.f32.mrf.mxu0
        %v630 = vadd.f32 0.0, %v629
        %631 = vmatmul.f32.gmra.mxu0 %v425
        %v632 = vpop.f32.mrf.mxu0
        %v633 = vadd.f32 0.0, %v632
        %634 = vmatmul.f32.gmra.mxu0 %v428
        %v635 = vpop.f32.mrf.mxu0
        %v636 = vadd.f32 0.0, %v635
        %637 = vmatmul.f32.gmra.mxu0 %v431
        %v638 = vpop.f32.mrf.mxu0
        %v639 = vadd.f32 0.0, %v638
        %640 = vmatmul.f32.gmra.mxu0 %v434
        %v641 = vpop.f32.mrf.mxu0
        %v642 = vadd.f32 0.0, %v641
        %643 = vmatmul.f32.gmra.mxu0 %v437
        %v644 = vpop.f32.mrf.mxu0
        %v645 = vadd.f32 0.0, %v644
        %646 = vmatmul.f32.gmra.mxu0 %v440
        %v647 = vpop.f32.mrf.mxu0
        %v648 = vadd.f32 0.0, %v647
        %649 = vmatmul.f32.gmra.mxu0 %v443
        %v650 = vpop.f32.mrf.mxu0
        %v651 = vadd.f32 0.0, %v650
        %652 = vmatmul.f32.gmra.mxu0 %v446
        %v653 = vpop.f32.mrf.mxu0
        %v654 = vadd.f32 0.0, %v653
        %655 = vmatmul.f32.gmra.mxu0 %v449
        %v656 = vpop.f32.mrf.mxu0
        %v657 = vadd.f32 0.0, %v656
        %658 = vmatmul.f32.gmra.mxu0 %v452
        %v659 = vpop.f32.mrf.mxu0
        %v660 = vadd.f32 0.0, %v659
        %661 = vmatmul.f32.gmra.mxu0 %v455
        %v662 = vpop.f32.mrf.mxu0
        %v663 = vadd.f32 0.0, %v662
        %664 = vmatmul.f32.gmra.mxu0 %v458
        %v665 = vpop.f32.mrf.mxu0
        %v666 = vadd.f32 0.0, %v665
        %667 = vmatmul.f32.gmra.mxu0 %v461
        %v668 = vpop.f32.mrf.mxu0
        %v669 = vadd.f32 0.0, %v668
        %670 = vmatmul.f32.gmra.mxu0 %v464
        %v671 = vpop.f32.mrf.mxu0
        %v672 = vadd.f32 0.0, %v671
        %673 = vmatmul.f32.gmra.mxu0 %v467
        %v674 = vpop.f32.mrf.mxu0
        %v675 = vadd.f32 0.0, %v674
        %676 = vmatmul.f32.gmra.mxu0 %v470
        %v677 = vpop.f32.mrf.mxu0
        %v678 = vadd.f32 0.0, %v677
        %679 = vmatmul.f32.gmra.mxu0 %v473
        %v680 = vpop.f32.mrf.mxu0
        %v681 = vadd.f32 0.0, %v680
        %682 = vdwg.mxu0
        %683 = vmatpush.msra.mxu0 0.0
        %684 = vmatpush.msra.mxu0 0.0
        %685 = vmatpush.msra.mxu0 0.0
        %686 = vmatpush.msra.mxu0 0.0
        %687 = vmatpush.msra.mxu0 0.0
        %688 = vmatpush.msra.mxu0 0.0
        %689 = vmatpush.msra.mxu0 0.0
        %690 = vmatpush.msra.mxu0 0.0
        %691 = vmatpush.msra.mxu0 0.0
        %692 = vmatpush.msra.mxu0 0.0
        %693 = vmatpush.msra.mxu0 0.0
        %694 = vmatpush.msra.mxu0 0.0
        %695 = vmatpush.msra.mxu0 %v383
        %696 = vmatpush.msra.mxu0 %v380
        %697 = vmatpush.msra.mxu0 %v377
        %698 = vmatpush.msra.mxu0 %v374
        %699 = vmatmul.f32.gmra.mxu0 %v386
        %v700 = vpop.f32.mrf.mxu0
        %v701 = vadd.f32 0.0, %v700
        %702 = vmatmul.f32.gmra.mxu0 %v389
        %v703 = vpop.f32.mrf.mxu0
        %v704 = vadd.f32 0.0, %v703
        %705 = vmatmul.f32.gmra.mxu0 %v392
        %v706 = vpop.f32.mrf.mxu0
        %v707 = vadd.f32 0.0, %v706
        %708 = vmatmul.f32.gmra.mxu0 %v395
        %v709 = vpop.f32.mrf.mxu0
        %v710 = vadd.f32 0.0, %v709
        %711 = vmatmul.f32.gmra.mxu0 %v398
        %v712 = vpop.f32.mrf.mxu0
        %v713 = vadd.f32 0.0, %v712
        %714 = vmatmul.f32.gmra.mxu0 %v401
        %v715 = vpop.f32.mrf.mxu0
        %v716 = vadd.f32 0.0, %v715
        %717 = vmatmul.f32.gmra.mxu0 %v404
        %v718 = vpop.f32.mrf.mxu0
        %v719 = vadd.f32 0.0, %v718
        %720 = vmatmul.f32.gmra.mxu0 %v407
        %v721 = vpop.f32.mrf.mxu0
        %v722 = vadd.f32 0.0, %v721
        %723 = vmatmul.f32.gmra.mxu0 %v410
        %v724 = vpop.f32.mrf.mxu0
        %v725 = vadd.f32 0.0, %v724
        %726 = vmatmul.f32.gmra.mxu0 %v413
        %v727 = vpop.f32.mrf.mxu0
        %v728 = vadd.f32 0.0, %v727
        %729 = vmatmul.f32.gmra.mxu0 %v416
        %v730 = vpop.f32.mrf.mxu0
        %v731 = vadd.f32 0.0, %v730
        %732 = vmatmul.f32.gmra.mxu0 %v419
        %v733 = vpop.f32.mrf.mxu0
        %v734 = vadd.f32 0.0, %v733
        %735 = vmatmul.f32.gmra.mxu0 %v422
        %v736 = vpop.f32.mrf.mxu0
        %v737 = vadd.f32 0.0, %v736
        %738 = vmatmul.f32.gmra.mxu0 %v425
        %v739 = vpop.f32.mrf.mxu0
        %v740 = vadd.f32 0.0, %v739
        %741 = vmatmul.f32.gmra.mxu0 %v428
        %v742 = vpop.f32.mrf.mxu0
        %v743 = vadd.f32 0.0, %v742
        %744 = vmatmul.f32.gmra.mxu0 %v431
        %v745 = vpop.f32.mrf.mxu0
        %v746 = vadd.f32 0.0, %v745
        %747 = vmatmul.f32.gmra.mxu0 %v434
        %v748 = vpop.f32.mrf.mxu0
        %v749 = vadd.f32 0.0, %v748
        %750 = vmatmul.f32.gmra.mxu0 %v437
        %v751 = vpop.f32.mrf.mxu0
        %v752 = vadd.f32 0.0, %v751
        %753 = vmatmul.f32.gmra.mxu0 %v440
        %v754 = vpop.f32.mrf.mxu0
        %v755 = vadd.f32 0.0, %v754
        %756 = vmatmul.f32.gmra.mxu0 %v443
        %v757 = vpop.f32.mrf.mxu0
        %v758 = vadd.f32 0.0, %v757
        %759 = vmatmul.f32.gmra.mxu0 %v446
        %v760 = vpop.f32.mrf.mxu0
        %v761 = vadd.f32 0.0, %v760
        %762 = vmatmul.f32.gmra.mxu0 %v449
        %v763 = vpop.f32.mrf.mxu0
        %v764 = vadd.f32 0.0, %v763
        %765 = vmatmul.f32.gmra.mxu0 %v452
        %v766 = vpop.f32.mrf.mxu0
        %v767 = vadd.f32 0.0, %v766
        %768 = vmatmul.f32.gmra.mxu0 %v455
        %v769 = vpop.f32.mrf.mxu0
        %v770 = vadd.f32 0.0, %v769
        %771 = vmatmul.f32.gmra.mxu0 %v458
        %v772 = vpop.f32.mrf.mxu0
        %v773 = vadd.f32 0.0, %v772
        %774 = vmatmul.f32.gmra.mxu0 %v461
        %v775 = vpop.f32.mrf.mxu0
        %v776 = vadd.f32 0.0, %v775
        %777 = vmatmul.f32.gmra.mxu0 %v464
        %v778 = vpop.f32.mrf.mxu0
        %v779 = vadd.f32 0.0, %v778
        %780 = vmatmul.f32.gmra.mxu0 %v467
        %v781 = vpop.f32.mrf.mxu0
        %v782 = vadd.f32 0.0, %v781
        %783 = vmatmul.f32.gmra.mxu0 %v470
        %v784 = vpop.f32.mrf.mxu0
        %v785 = vadd.f32 0.0, %v784
        %786 = vmatmul.f32.gmra.mxu0 %v473
        %v787 = vpop.f32.mrf.mxu0
        %v788 = vadd.f32 0.0, %v787
        %789 = vdwg.mxu0
        %v790 = vrot.slane %v499, 1
        %v791 = vrot.slane %v502, 1
        %v792 = vrot.slane %v505, 1
        %v793 = vrot.slane %v508, 1
        %v794 = vrot.slane %v511, 1
        %v795 = vrot.slane %v514, 1
        %v796 = vrot.slane %v517, 1
        %v797 = vrot.slane %v520, 1
        %v798 = vrot.slane %v523, 1
        %v799 = vrot.slane %v526, 1
        %v800 = vrot.slane %v529, 1
        %v801 = vrot.slane %v532, 1
        %v802 = vrot.slane %v535, 1
        %v803 = vrot.slane %v538, 1
        %v804 = vrot.slane %v541, 1
        %v805 = vrot.slane %v544, 1
        %v806 = vrot.slane %v547, 1
        %v807 = vrot.slane %v550, 1
        %v808 = vrot.slane %v553, 1
        %v809 = vrot.slane %v556, 1
        %v810 = vrot.slane %v559, 1
        %v811 = vrot.slane %v562, 1
        %v812 = vrot.slane %v565, 1
        %v813 = vrot.slane %v568, 1
        %v814 = vlaneseq
        %v815 = vshrl.u32 %v814, 7
        %vm816 = vcmp.lt.s32.totalorder %v815, 7
        %v817 = vsel %vm816, %v812, %v813
        %v818 = vsel %vm816, %v811, %v812
        %v819 = vsel %vm816, %v809, %v810
        %v820 = vsel %vm816, %v808, %v809
        %v821 = vsel %vm816, %v806, %v807
        %v822 = vsel %vm816, %v805, %v806
        %v823 = vsel %vm816, %v803, %v804
        %v824 = vsel %vm816, %v802, %v803
        %v825 = vsel %vm816, %v800, %v801
        %v826 = vsel %vm816, %v799, %v800
        %v827 = vsel %vm816, %v797, %v798
        %v828 = vsel %vm816, %v796, %v797
        %v829 = vsel %vm816, %v794, %v795
        %v830 = vsel %vm816, %v793, %v794
        %v831 = vsel %vm816, %v791, %v792
        %v832 = vsel %vm816, %v790, %v791
        %v833 = vrot.slane %v594, 1
        %v834 = vrot.slane %v597, 1
        %v835 = vrot.slane %v600, 1
        %v836 = vrot.slane %v603, 1
        %v837 = vrot.slane %v606, 1
        %v838 = vrot.slane %v609, 1
        %v839 = vrot.slane %v612, 1
        %v840 = vrot.slane %v615, 1
        %v841 = vrot.slane %v618, 1
        %v842 = vrot.slane %v621, 1
        %v843 = vrot.slane %v624, 1
        %v844 = vrot.slane %v627, 1
        %v845 = vrot.slane %v630, 1
        %v846 = vrot.slane %v633, 1
        %v847 = vrot.slane %v636, 1
        %v848 = vrot.slane %v639, 1
        %v849 = vrot.slane %v642, 1
        %v850 = vrot.slane %v645, 1
        %v851 = vrot.slane %v648, 1
        %v852 = vrot.slane %v651, 1
        %v853 = vrot.slane %v654, 1
        %v854 = vrot.slane %v657, 1
        %v855 = vrot.slane %v660, 1
        %v856 = vrot.slane %v663, 1
        %v857 = vrot.slane %v666, 1
        %v858 = vrot.slane %v669, 1
        %v859 = vrot.slane %v672, 1
        %v860 = vrot.slane %v675, 1
        %v861 = vrot.slane %v678, 1
        %v862 = vrot.slane %v681, 1
        %v863 = vsel %vm816, %v861, %v862
        %v864 = vsel %vm816, %v860, %v861
        %v865 = vsel %vm816, %v858, %v859
        %v866 = vsel %vm816, %v857, %v858
        %v867 = vsel %vm816, %v855, %v856
        %v868 = vsel %vm816, %v854, %v855
        %v869 = vsel %vm816, %v852, %v853
        %v870 = vsel %vm816, %v851, %v852
        %v871 = vsel %vm816, %v849, %v850
        %v872 = vsel %vm816, %v848, %v849
        %v873 = vsel %vm816, %v846, %v847
        %v874 = vsel %vm816, %v845, %v846
        %v875 = vsel %vm816, %v843, %v844
        %v876 = vsel %vm816, %v842, %v843
        %v877 = vsel %vm816, %v840, %v841
        %v878 = vsel %vm816, %v839, %v840
        %v879 = vsel %vm816, %v837, %v838
        %v880 = vsel %vm816, %v836, %v837
        %v881 = vsel %vm816, %v834, %v835
        %v882 = vsel %vm816, %v833, %v834
        %v883 = vrot.slane %v594, 2
        %v884 = vrot.slane %v597, 2
        %v885 = vrot.slane %v600, 2
        %v886 = vrot.slane %v603, 2
        %v887 = vrot.slane %v606, 2
        %v888 = vrot.slane %v609, 2
        %v889 = vrot.slane %v612, 2
        %v890 = vrot.slane %v615, 2
        %v891 = vrot.slane %v618, 2
        %v892 = vrot.slane %v621, 2
        %v893 = vrot.slane %v624, 2
        %v894 = vrot.slane %v627, 2
        %v895 = vrot.slane %v630, 2
        %v896 = vrot.slane %v633, 2
        %v897 = vrot.slane %v636, 2
        %v898 = vrot.slane %v639, 2
        %v899 = vrot.slane %v642, 2
        %v900 = vrot.slane %v645, 2
        %v901 = vrot.slane %v648, 2
        %v902 = vrot.slane %v651, 2
        %v903 = vrot.slane %v654, 2
        %v904 = vrot.slane %v657, 2
        %v905 = vrot.slane %v660, 2
        %v906 = vrot.slane %v663, 2
        %v907 = vrot.slane %v666, 2
        %v908 = vrot.slane %v669, 2
        %v909 = vrot.slane %v672, 2
        %v910 = vrot.slane %v675, 2
        %v911 = vrot.slane %v678, 2
        %v912 = vrot.slane %v681, 2
        %vm913 = vcmp.lt.s32.totalorder %v815, 6
        %v914 = vsel %vm913, %v911, %v912
        %v915 = vsel %vm913, %v910, %v911
        %v916 = vsel %vm913, %v908, %v909
        %v917 = vsel %vm913, %v907, %v908
        %v918 = vsel %vm913, %v905, %v906
        %v919 = vsel %vm913, %v904, %v905
        %v920 = vsel %vm913, %v902, %v903
        %v921 = vsel %vm913, %v901, %v902
        %v922 = vsel %vm913, %v899, %v900
        %v923 = vsel %vm913, %v898, %v899
        %v924 = vsel %vm913, %v896, %v897
        %v925 = vsel %vm913, %v895, %v896
        %v926 = vsel %vm913, %v893, %v894
        %v927 = vsel %vm913, %v892, %v893
        %v928 = vsel %vm913, %v890, %v891
        %v929 = vsel %vm913, %v889, %v890
        %v930 = vsel %vm913, %v887, %v888
        %v931 = vsel %vm913, %v886, %v887
        %v932 = vsel %vm913, %v884, %v885
        %v933 = vsel %vm913, %v883, %v884
        %v934 = vrot.slane %v701, 1
        %v935 = vrot.slane %v704, 1
        %v936 = vrot.slane %v707, 1
        %v937 = vrot.slane %v710, 1
        %v938 = vrot.slane %v713, 1
        %v939 = vrot.slane %v716, 1
        %v940 = vrot.slane %v719, 1
        %v941 = vrot.slane %v722, 1
        %v942 = vrot.slane %v725, 1
        %v943 = vrot.slane %v728, 1
        %v944 = vrot.slane %v731, 1
        %v945 = vrot.slane %v734, 1
        %v946 = vrot.slane %v737, 1
        %v947 = vrot.slane %v740, 1
        %v948 = vrot.slane %v743, 1
        %v949 = vrot.slane %v746, 1
        %v950 = vrot.slane %v749, 1
        %v951 = vrot.slane %v752, 1
        %v952 = vrot.slane %v755, 1
        %v953 = vrot.slane %v758, 1
        %v954 = vrot.slane %v761, 1
        %v955 = vrot.slane %v764, 1
        %v956 = vrot.slane %v767, 1
        %v957 = vrot.slane %v770, 1
        %v958 = vrot.slane %v773, 1
        %v959 = vrot.slane %v776, 1
        %v960 = vrot.slane %v779, 1
        %v961 = vrot.slane %v782, 1
        %v962 = vrot.slane %v785, 1
        %v963 = vrot.slane %v788, 1
        %v964 = vsel %vm816, %v962, %v963
        %v965 = vsel %vm816, %v961, %v962
        %v966 = vsel %vm816, %v959, %v960
        %v967 = vsel %vm816, %v958, %v959
        %v968 = vsel %vm816, %v956, %v957
        %v969 = vsel %vm816, %v955, %v956
        %v970 = vsel %vm816, %v953, %v954
        %v971 = vsel %vm816, %v952, %v953
        %v972 = vsel %vm816, %v950, %v951
        %v973 = vsel %vm816, %v949, %v950
        %v974 = vsel %vm816, %v947, %v948
        %v975 = vsel %vm816, %v946, %v947
        %v976 = vsel %vm816, %v944, %v945
        %v977 = vsel %vm816, %v943, %v944
        %v978 = vsel %vm816, %v941, %v942
        %v979 = vsel %vm816, %v940, %v941
        %v980 = vsel %vm816, %v938, %v939
        %v981 = vsel %vm816, %v937, %v938
        %v982 = vsel %vm816, %v935, %v936
        %v983 = vsel %vm816, %v934, %v935
        %v984 = vrot.slane %v701, 2
        %v985 = vrot.slane %v704, 2
        %v986 = vrot.slane %v707, 2
        %v987 = vrot.slane %v710, 2
        %v988 = vrot.slane %v713, 2
        %v989 = vrot.slane %v716, 2
        %v990 = vrot.slane %v719, 2
        %v991 = vrot.slane %v722, 2
        %v992 = vrot.slane %v725, 2
        %v993 = vrot.slane %v728, 2
        %v994 = vrot.slane %v731, 2
        %v995 = vrot.slane %v734, 2
        %v996 = vrot.slane %v737, 2
        %v997 = vrot.slane %v740, 2
        %v998 = vrot.slane %v743, 2
        %v999 = vrot.slane %v746, 2
        %v1000 = vrot.slane %v749, 2
        %v1001 = vrot.slane %v752, 2
        %v1002 = vrot.slane %v755, 2
        %v1003 = vrot.slane %v758, 2
        %v1004 = vrot.slane %v761, 2
        %v1005 = vrot.slane %v764, 2
        %v1006 = vrot.slane %v767, 2
        %v1007 = vrot.slane %v770, 2
        %v1008 = vrot.slane %v773, 2
        %v1009 = vrot.slane %v776, 2
        %v1010 = vrot.slane %v779, 2
        %v1011 = vrot.slane %v782, 2
        %v1012 = vrot.slane %v785, 2
        %v1013 = vrot.slane %v788, 2
        %v1014 = vsel %vm913, %v1012, %v1013
        %v1015 = vsel %vm913, %v1011, %v1012
        %v1016 = vsel %vm913, %v1009, %v1010
        %v1017 = vsel %vm913, %v1008, %v1009
        %v1018 = vsel %vm913, %v1006, %v1007
        %v1019 = vsel %vm913, %v1005, %v1006
        %v1020 = vsel %vm913, %v1003, %v1004
        %v1021 = vsel %vm913, %v1002, %v1003
        %v1022 = vsel %vm913, %v1000, %v1001
        %v1023 = vsel %vm913, %v999, %v1000
        %v1024 = vsel %vm913, %v997, %v998
        %v1025 = vsel %vm913, %v996, %v997
        %v1026 = vsel %vm913, %v994, %v995
        %v1027 = vsel %vm913, %v993, %v994
        %v1028 = vsel %vm913, %v991, %v992
        %v1029 = vsel %vm913, %v990, %v991
        %v1030 = vsel %vm913, %v988, %v989
        %v1031 = vsel %vm913, %v987, %v988
        %v1032 = vsel %vm913, %v985, %v986
        %v1033 = vsel %vm913, %v984, %v985
        %v1034 = vld [vmem:[#allocation8] sm:$0xff]
        %v1035 = vld [vmem:[#allocation8 + $0x8] sm:$0x1]
        %v1036 = vperm.slane %v1034, 0
        %v1037 = vadd.f32 %v594, %v1036
        %v1038 = vadd.f32 %v597, %v1036
        %v1039 = vadd.f32 %v603, %v1036
        %v1040 = vadd.f32 %v606, %v1036
        %v1041 = vadd.f32 %v612, %v1036
        %v1042 = vadd.f32 %v615, %v1036
        %v1043 = vadd.f32 %v621, %v1036
        %v1044 = vadd.f32 %v624, %v1036
        %v1045 = vadd.f32 %v630, %v1036
        %v1046 = vadd.f32 %v633, %v1036
        %v1047 = vadd.f32 %v639, %v1036
        %v1048 = vadd.f32 %v642, %v1036
        %v1049 = vadd.f32 %v648, %v1036
        %v1050 = vadd.f32 %v651, %v1036
        %v1051 = vadd.f32 %v657, %v1036
        %v1052 = vadd.f32 %v660, %v1036
        %v1053 = vmul.f32 %v832, %v1037
        %v1054 = vmul.f32 %v831, %v1038
        %v1055 = vmul.f32 %v830, %v1039
        %v1056 = vmul.f32 %v829, %v1040
        %v1057 = vmul.f32 %v828, %v1041
        %v1058 = vmul.f32 %v827, %v1042
        %v1059 = vmul.f32 %v826, %v1043
        %v1060 = vmul.f32 %v825, %v1044
        %v1061 = vmul.f32 %v824, %v1045
        %v1062 = vmul.f32 %v823, %v1046
        %v1063 = vmul.f32 %v822, %v1047
        %v1064 = vmul.f32 %v821, %v1048
        %v1065 = vmul.f32 %v820, %v1049
        %v1066 = vmul.f32 %v819, %v1050
        %v1067 = vmul.f32 %v818, %v1051
        %v1068 = vmul.f32 %v817, %v1052
        %v1069 = vperm.slane %v1034, 1
        %v1070 = vadd.f32 %v882, %v1069
        %v1071 = vadd.f32 %v881, %v1069
        %v1072 = vadd.f32 %v880, %v1069
        %v1073 = vadd.f32 %v879, %v1069
        %v1074 = vadd.f32 %v878, %v1069
        %v1075 = vadd.f32 %v877, %v1069
        %v1076 = vadd.f32 %v876, %v1069
        %v1077 = vadd.f32 %v875, %v1069
        %v1078 = vadd.f32 %v874, %v1069
        %v1079 = vadd.f32 %v873, %v1069
        %v1080 = vadd.f32 %v872, %v1069
        %v1081 = vadd.f32 %v871, %v1069
        %v1082 = vadd.f32 %v870, %v1069
        %v1083 = vadd.f32 %v869, %v1069
        %v1084 = vadd.f32 %v868, %v1069
        %v1085 = vadd.f32 %v867, %v1069
        %v1086 = vmul.f32 %v832, %v1070
        %v1087 = vmul.f32 %v831, %v1071
        %v1088 = vmul.f32 %v830, %v1072
        %v1089 = vmul.f32 %v829, %v1073
        %v1090 = vmul.f32 %v828, %v1074
        %v1091 = vmul.f32 %v827, %v1075
        %v1092 = vmul.f32 %v826, %v1076
        %v1093 = vmul.f32 %v825, %v1077
        %v1094 = vmul.f32 %v824, %v1078
        %v1095 = vmul.f32 %v823, %v1079
        %v1096 = vmul.f32 %v822, %v1080
        %v1097 = vmul.f32 %v821, %v1081
        %v1098 = vmul.f32 %v820, %v1082
        %v1099 = vmul.f32 %v819, %v1083
        %v1100 = vmul.f32 %v818, %v1084
        %v1101 = vmul.f32 %v817, %v1085
        %v1102 = vmax.f32 %v1053, %v1086
        %v1103 = vmax.f32 %v1054, %v1087
        %v1104 = vmax.f32 %v1055, %v1088
        %v1105 = vmax.f32 %v1056, %v1089
        %v1106 = vmax.f32 %v1057, %v1090
        %v1107 = vmax.f32 %v1058, %v1091
        %v1108 = vmax.f32 %v1059, %v1092
        %v1109 = vmax.f32 %v1060, %v1093
        %v1110 = vmax.f32 %v1061, %v1094
        %v1111 = vmax.f32 %v1062, %v1095
        %v1112 = vmax.f32 %v1063, %v1096
        %v1113 = vmax.f32 %v1064, %v1097
        %v1114 = vmax.f32 %v1065, %v1098
        %v1115 = vmax.f32 %v1066, %v1099
        %v1116 = vmax.f32 %v1067, %v1100
        %v1117 = vmax.f32 %v1068, %v1101
        %v1118 = vperm.slane %v1034, 2
        %v1119 = vadd.f32 %v933, %v1118
        %v1120 = vadd.f32 %v932, %v1118
        %v1121 = vadd.f32 %v931, %v1118
        %v1122 = vadd.f32 %v930, %v1118
        %v1123 = vadd.f32 %v929, %v1118
        %v1124 = vadd.f32 %v928, %v1118
        %v1125 = vadd.f32 %v927, %v1118
        %v1126 = vadd.f32 %v926, %v1118
        %v1127 = vadd.f32 %v925, %v1118
        %v1128 = vadd.f32 %v924, %v1118
        %v1129 = vadd.f32 %v923, %v1118
        %v1130 = vadd.f32 %v922, %v1118
        %v1131 = vadd.f32 %v921, %v1118
        %v1132 = vadd.f32 %v920, %v1118
        %v1133 = vadd.f32 %v919, %v1118
        %v1134 = vadd.f32 %v918, %v1118
        %v1135 = vmul.f32 %v832, %v1119
        %v1136 = vmul.f32 %v831, %v1120
        %v1137 = vmul.f32 %v830, %v1121
        %v1138 = vmul.f32 %v829, %v1122
        %v1139 = vmul.f32 %v828, %v1123
        %v1140 = vmul.f32 %v827, %v1124
        %v1141 = vmul.f32 %v826, %v1125
        %v1142 = vmul.f32 %v825, %v1126
        %v1143 = vmul.f32 %v824, %v1127
        %v1144 = vmul.f32 %v823, %v1128
        %v1145 = vmul.f32 %v822, %v1129
        %v1146 = vmul.f32 %v821, %v1130
        %v1147 = vmul.f32 %v820, %v1131
        %v1148 = vmul.f32 %v819, %v1132
        %v1149 = vmul.f32 %v818, %v1133
        %v1150 = vmul.f32 %v817, %v1134
        %v1151 = vmax.f32 %v1102, %v1135
        %v1152 = vmax.f32 %v1103, %v1136
        %v1153 = vmax.f32 %v1104, %v1137
        %v1154 = vmax.f32 %v1105, %v1138
        %v1155 = vmax.f32 %v1106, %v1139
        %v1156 = vmax.f32 %v1107, %v1140
        %v1157 = vmax.f32 %v1108, %v1141
        %v1158 = vmax.f32 %v1109, %v1142
        %v1159 = vmax.f32 %v1110, %v1143
        %v1160 = vmax.f32 %v1111, %v1144
        %v1161 = vmax.f32 %v1112, %v1145
        %v1162 = vmax.f32 %v1113, %v1146
        %v1163 = vmax.f32 %v1114, %v1147
        %v1164 = vmax.f32 %v1115, %v1148
        %v1165 = vmax.f32 %v1116, %v1149
        %v1166 = vmax.f32 %v1117, %v1150
        %v1167 = vperm.slane %v1034, 3
        %v1168 = vadd.f32 %v603, %v1167
        %v1169 = vadd.f32 %v606, %v1167
        %v1170 = vadd.f32 %v612, %v1167
        %v1171 = vadd.f32 %v615, %v1167
        %v1172 = vadd.f32 %v621, %v1167
        %v1173 = vadd.f32 %v624, %v1167
        %v1174 = vadd.f32 %v630, %v1167
        %v1175 = vadd.f32 %v633, %v1167
        %v1176 = vadd.f32 %v639, %v1167
        %v1177 = vadd.f32 %v642, %v1167
        %v1178 = vadd.f32 %v648, %v1167
        %v1179 = vadd.f32 %v651, %v1167
        %v1180 = vadd.f32 %v657, %v1167
        %v1181 = vadd.f32 %v660, %v1167
        %v1182 = vadd.f32 %v666, %v1167
        %v1183 = vadd.f32 %v669, %v1167
        %v1184 = vmul.f32 %v832, %v1168
        %v1185 = vmul.f32 %v831, %v1169
        %v1186 = vmul.f32 %v830, %v1170
        %v1187 = vmul.f32 %v829, %v1171
        %v1188 = vmul.f32 %v828, %v1172
        %v1189 = vmul.f32 %v827, %v1173
        %v1190 = vmul.f32 %v826, %v1174
        %v1191 = vmul.f32 %v825, %v1175
        %v1192 = vmul.f32 %v824, %v1176
        %v1193 = vmul.f32 %v823, %v1177
        %v1194 = vmul.f32 %v822, %v1178
        %v1195 = vmul.f32 %v821, %v1179
        %v1196 = vmul.f32 %v820, %v1180
        %v1197 = vmul.f32 %v819, %v1181
        %v1198 = vmul.f32 %v818, %v1182
        %v1199 = vmul.f32 %v817, %v1183
        %v1200 = vmax.f32 %v1151, %v1184
        %v1201 = vmax.f32 %v1152, %v1185
        %v1202 = vmax.f32 %v1153, %v1186
        %v1203 = vmax.f32 %v1154, %v1187
        %v1204 = vmax.f32 %v1155, %v1188
        %v1205 = vmax.f32 %v1156, %v1189
        %v1206 = vmax.f32 %v1157, %v1190
        %v1207 = vmax.f32 %v1158, %v1191
        %v1208 = vmax.f32 %v1159, %v1192
        %v1209 = vmax.f32 %v1160, %v1193
        %v1210 = vmax.f32 %v1161, %v1194
        %v1211 = vmax.f32 %v1162, %v1195
        %v1212 = vmax.f32 %v1163, %v1196
        %v1213 = vmax.f32 %v1164, %v1197
        %v1214 = vmax.f32 %v1165, %v1198
        %v1215 = vmax.f32 %v1166, %v1199
        %v1216 = vperm.slane %v1034, 4
        %v1217 = vadd.f32 %v880, %v1216
        %v1218 = vadd.f32 %v879, %v1216
        %v1219 = vadd.f32 %v878, %v1216
        %v1220 = vadd.f32 %v877, %v1216
        %v1221 = vadd.f32 %v876, %v1216
        %v1222 = vadd.f32 %v875, %v1216
        %v1223 = vadd.f32 %v874, %v1216
        %v1224 = vadd.f32 %v873, %v1216
        %v1225 = vadd.f32 %v872, %v1216
        %v1226 = vadd.f32 %v871, %v1216
        %v1227 = vadd.f32 %v870, %v1216
        %v1228 = vadd.f32 %v869, %v1216
        %v1229 = vadd.f32 %v868, %v1216
        %v1230 = vadd.f32 %v867, %v1216
        %v1231 = vadd.f32 %v866, %v1216
        %v1232 = vadd.f32 %v865, %v1216
        %v1233 = vmul.f32 %v832, %v1217
        %v1234 = vmul.f32 %v831, %v1218
        %v1235 = vmul.f32 %v830, %v1219
        %v1236 = vmul.f32 %v829, %v1220
        %v1237 = vmul.f32 %v828, %v1221
        %v1238 = vmul.f32 %v827, %v1222
        %v1239 = vmul.f32 %v826, %v1223
        %v1240 = vmul.f32 %v825, %v1224
        %v1241 = vmul.f32 %v824, %v1225
        %v1242 = vmul.f32 %v823, %v1226
        %v1243 = vmul.f32 %v822, %v1227
        %v1244 = vmul.f32 %v821, %v1228
        %v1245 = vmul.f32 %v820, %v1229
        %v1246 = vmul.f32 %v819, %v1230
        %v1247 = vmul.f32 %v818, %v1231
        %v1248 = vmul.f32 %v817, %v1232
        %v1249 = vmax.f32 %v1200, %v1233
        %v1250 = vmax.f32 %v1201, %v1234
        %v1251 = vmax.f32 %v1202, %v1235
        %v1252 = vmax.f32 %v1203, %v1236
        %v1253 = vmax.f32 %v1204, %v1237
        %v1254 = vmax.f32 %v1205, %v1238
        %v1255 = vmax.f32 %v1206, %v1239
        %v1256 = vmax.f32 %v1207, %v1240
        %v1257 = vmax.f32 %v1208, %v1241
        %v1258 = vmax.f32 %v1209, %v1242
        %v1259 = vmax.f32 %v1210, %v1243
        %v1260 = vmax.f32 %v1211, %v1244
        %v1261 = vmax.f32 %v1212, %v1245
        %v1262 = vmax.f32 %v1213, %v1246
        %v1263 = vmax.f32 %v1214, %v1247
        %v1264 = vmax.f32 %v1215, %v1248
        %v1265 = vperm.slane %v1034, 5
        %v1266 = vadd.f32 %v931, %v1265
        %v1267 = vadd.f32 %v930, %v1265
        %v1268 = vadd.f32 %v929, %v1265
        %v1269 = vadd.f32 %v928, %v1265
        %v1270 = vadd.f32 %v927, %v1265
        %v1271 = vadd.f32 %v926, %v1265
        %v1272 = vadd.f32 %v925, %v1265
        %v1273 = vadd.f32 %v924, %v1265
        %v1274 = vadd.f32 %v923, %v1265
        %v1275 = vadd.f32 %v922, %v1265
        %v1276 = vadd.f32 %v921, %v1265
        %v1277 = vadd.f32 %v920, %v1265
        %v1278 = vadd.f32 %v919, %v1265
        %v1279 = vadd.f32 %v918, %v1265
        %v1280 = vadd.f32 %v917, %v1265
        %v1281 = vadd.f32 %v916, %v1265
        %v1282 = vmul.f32 %v832, %v1266
        %v1283 = vmul.f32 %v831, %v1267
        %v1284 = vmul.f32 %v830, %v1268
        %v1285 = vmul.f32 %v829, %v1269
        %v1286 = vmul.f32 %v828, %v1270
        %v1287 = vmul.f32 %v827, %v1271
        %v1288 = vmul.f32 %v826, %v1272
        %v1289 = vmul.f32 %v825, %v1273
        %v1290 = vmul.f32 %v824, %v1274
        %v1291 = vmul.f32 %v823, %v1275
        %v1292 = vmul.f32 %v822, %v1276
        %v1293 = vmul.f32 %v821, %v1277
        %v1294 = vmul.f32 %v820, %v1278
        %v1295 = vmul.f32 %v819, %v1279
        %v1296 = vmul.f32 %v818, %v1280
        %v1297 = vmul.f32 %v817, %v1281
        %v1298 = vmax.f32 %v1249, %v1282
        %v1299 = vmax.f32 %v1250, %v1283
        %v1300 = vmax.f32 %v1251, %v1284
        %v1301 = vmax.f32 %v1252, %v1285
        %v1302 = vmax.f32 %v1253, %v1286
        %v1303 = vmax.f32 %v1254, %v1287
        %v1304 = vmax.f32 %v1255, %v1288
        %v1305 = vmax.f32 %v1256, %v1289
        %v1306 = vmax.f32 %v1257, %v1290
        %v1307 = vmax.f32 %v1258, %v1291
        %v1308 = vmax.f32 %v1259, %v1292
        %v1309 = vmax.f32 %v1260, %v1293
        %v1310 = vmax.f32 %v1261, %v1294
        %v1311 = vmax.f32 %v1262, %v1295
        %v1312 = vmax.f32 %v1263, %v1296
        %v1313 = vmax.f32 %v1264, %v1297
        %v1314 = vperm.slane %v1034, 6
        %v1315 = vadd.f32 %v612, %v1314
        %v1316 = vadd.f32 %v615, %v1314
        %v1317 = vadd.f32 %v621, %v1314
        %v1318 = vadd.f32 %v624, %v1314
        %v1319 = vadd.f32 %v630, %v1314
        %v1320 = vadd.f32 %v633, %v1314
        %v1321 = vadd.f32 %v639, %v1314
        %v1322 = vadd.f32 %v642, %v1314
        %v1323 = vadd.f32 %v648, %v1314
        %v1324 = vadd.f32 %v651, %v1314
        %v1325 = vadd.f32 %v657, %v1314
        %v1326 = vadd.f32 %v660, %v1314
        %v1327 = vadd.f32 %v666, %v1314
        %v1328 = vadd.f32 %v669, %v1314
        %v1329 = vadd.f32 %v675, %v1314
        %v1330 = vadd.f32 %v678, %v1314
        %v1331 = vmul.f32 %v832, %v1315
        %v1332 = vmul.f32 %v831, %v1316
        %v1333 = vmul.f32 %v830, %v1317
        %v1334 = vmul.f32 %v829, %v1318
        %v1335 = vmul.f32 %v828, %v1319
        %v1336 = vmul.f32 %v827, %v1320
        %v1337 = vmul.f32 %v826, %v1321
        %v1338 = vmul.f32 %v825, %v1322
        %v1339 = vmul.f32 %v824, %v1323
        %v1340 = vmul.f32 %v823, %v1324
        %v1341 = vmul.f32 %v822, %v1325
        %v1342 = vmul.f32 %v821, %v1326
        %v1343 = vmul.f32 %v820, %v1327
        %v1344 = vmul.f32 %v819, %v1328
        %v1345 = vmul.f32 %v818, %v1329
        %v1346 = vmul.f32 %v817, %v1330
        %v1347 = vmax.f32 %v1298, %v1331
        %v1348 = vmax.f32 %v1299, %v1332
        %v1349 = vmax.f32 %v1300, %v1333
        %v1350 = vmax.f32 %v1301, %v1334
        %v1351 = vmax.f32 %v1302, %v1335
        %v1352 = vmax.f32 %v1303, %v1336
        %v1353 = vmax.f32 %v1304, %v1337
        %v1354 = vmax.f32 %v1305, %v1338
        %v1355 = vmax.f32 %v1306, %v1339
        %v1356 = vmax.f32 %v1307, %v1340
        %v1357 = vmax.f32 %v1308, %v1341
        %v1358 = vmax.f32 %v1309, %v1342
        %v1359 = vmax.f32 %v1310, %v1343
        %v1360 = vmax.f32 %v1311, %v1344
        %v1361 = vmax.f32 %v1312, %v1345
        %v1362 = vmax.f32 %v1313, %v1346
        %v1363 = vperm.slane %v1034, 7
        %v1364 = vadd.f32 %v878, %v1363
        %v1365 = vadd.f32 %v877, %v1363
        %v1366 = vadd.f32 %v876, %v1363
        %v1367 = vadd.f32 %v875, %v1363
        %v1368 = vadd.f32 %v874, %v1363
        %v1369 = vadd.f32 %v873, %v1363
        %v1370 = vadd.f32 %v872, %v1363
        %v1371 = vadd.f32 %v871, %v1363
        %v1372 = vadd.f32 %v870, %v1363
        %v1373 = vadd.f32 %v869, %v1363
        %v1374 = vadd.f32 %v868, %v1363
        %v1375 = vadd.f32 %v867, %v1363
        %v1376 = vadd.f32 %v866, %v1363
        %v1377 = vadd.f32 %v865, %v1363
        %v1378 = vadd.f32 %v864, %v1363
        %v1379 = vadd.f32 %v863, %v1363
        %v1380 = vmul.f32 %v832, %v1364
        %v1381 = vmul.f32 %v831, %v1365
        %v1382 = vmul.f32 %v830, %v1366
        %v1383 = vmul.f32 %v829, %v1367
        %v1384 = vmul.f32 %v828, %v1368
        %v1385 = vmul.f32 %v827, %v1369
        %v1386 = vmul.f32 %v826, %v1370
        %v1387 = vmul.f32 %v825, %v1371
        %v1388 = vmul.f32 %v824, %v1372
        %v1389 = vmul.f32 %v823, %v1373
        %v1390 = vmul.f32 %v822, %v1374
        %v1391 = vmul.f32 %v821, %v1375
        %v1392 = vmul.f32 %v820, %v1376
        %v1393 = vmul.f32 %v819, %v1377
        %v1394 = vmul.f32 %v818, %v1378
        %v1395 = vmul.f32 %v817, %v1379
        %v1396 = vmax.f32 %v1347, %v1380
        %v1397 = vmax.f32 %v1348, %v1381
        %v1398 = vmax.f32 %v1349, %v1382
        %v1399 = vmax.f32 %v1350, %v1383
        %v1400 = vmax.f32 %v1351, %v1384
        %v1401 = vmax.f32 %v1352, %v1385
        %v1402 = vmax.f32 %v1353, %v1386
        %v1403 = vmax.f32 %v1354, %v1387
        %v1404 = vmax.f32 %v1355, %v1388
        %v1405 = vmax.f32 %v1356, %v1389
        %v1406 = vmax.f32 %v1357, %v1390
        %v1407 = vmax.f32 %v1358, %v1391
        %v1408 = vmax.f32 %v1359, %v1392
        %v1409 = vmax.f32 %v1360, %v1393
        %v1410 = vmax.f32 %v1361, %v1394
        %v1411 = vmax.f32 %v1362, %v1395
        %v1412 = vperm.slane %v1035, 0
        %v1413 = vadd.f32 %v929, %v1412
        %v1414 = vadd.f32 %v928, %v1412
        %v1415 = vadd.f32 %v927, %v1412
        %v1416 = vadd.f32 %v926, %v1412
        %v1417 = vadd.f32 %v925, %v1412
        %v1418 = vadd.f32 %v924, %v1412
        %v1419 = vadd.f32 %v923, %v1412
        %v1420 = vadd.f32 %v922, %v1412
        %v1421 = vadd.f32 %v921, %v1412
        %v1422 = vadd.f32 %v920, %v1412
        %v1423 = vadd.f32 %v919, %v1412
        %v1424 = vadd.f32 %v918, %v1412
        %v1425 = vadd.f32 %v917, %v1412
        %v1426 = vadd.f32 %v916, %v1412
        %v1427 = vadd.f32 %v915, %v1412
        %v1428 = vadd.f32 %v914, %v1412
        %v1429 = vmul.f32 %v832, %v1413
        %v1430 = vmul.f32 %v831, %v1414
        %v1431 = vmul.f32 %v830, %v1415
        %v1432 = vmul.f32 %v829, %v1416
        %v1433 = vmul.f32 %v828, %v1417
        %v1434 = vmul.f32 %v827, %v1418
        %v1435 = vmul.f32 %v826, %v1419
        %v1436 = vmul.f32 %v825, %v1420
        %v1437 = vmul.f32 %v824, %v1421
        %v1438 = vmul.f32 %v823, %v1422
        %v1439 = vmul.f32 %v822, %v1423
        %v1440 = vmul.f32 %v821, %v1424
        %v1441 = vmul.f32 %v820, %v1425
        %v1442 = vmul.f32 %v819, %v1426
        %v1443 = vmul.f32 %v818, %v1427
        %v1444 = vmul.f32 %v817, %v1428
        %v1445 = vmax.f32 %v1396, %v1429
        %v1446 = vmax.f32 %v1397, %v1430
        %v1447 = vmax.f32 %v1398, %v1431
        %v1448 = vmax.f32 %v1399, %v1432
        %v1449 = vmax.f32 %v1400, %v1433
        %v1450 = vmax.f32 %v1401, %v1434
        %v1451 = vmax.f32 %v1402, %v1435
        %v1452 = vmax.f32 %v1403, %v1436
        %v1453 = vmax.f32 %v1404, %v1437
        %v1454 = vmax.f32 %v1405, %v1438
        %v1455 = vmax.f32 %v1406, %v1439
        %v1456 = vmax.f32 %v1407, %v1440
        %v1457 = vmax.f32 %v1408, %v1441
        %v1458 = vmax.f32 %v1409, %v1442
        %v1459 = vmax.f32 %v1410, %v1443
        %v1460 = vmax.f32 %v1411, %v1444
        %v1461 = vsub.f32 %v1053, %v1445
        %v1462 = vsub.f32 %v1054, %v1446
        %v1463 = vsub.f32 %v1055, %v1447
        %v1464 = vsub.f32 %v1056, %v1448
        %v1465 = vsub.f32 %v1057, %v1449
        %v1466 = vsub.f32 %v1058, %v1450
        %v1467 = vsub.f32 %v1059, %v1451
        %v1468 = vsub.f32 %v1060, %v1452
        %v1469 = vsub.f32 %v1061, %v1453
        %v1470 = vsub.f32 %v1062, %v1454
        %v1471 = vsub.f32 %v1063, %v1455
        %v1472 = vsub.f32 %v1064, %v1456
        %v1473 = vsub.f32 %v1065, %v1457
        %v1474 = vsub.f32 %v1066, %v1458
        %v1475 = vsub.f32 %v1067, %v1459
        %v1476 = vsub.f32 %v1068, %v1460
        %v1477 = vmul.f32 %v1461, 1.442695
        %v1478 = vpow.pop %v1477
        %v1479 = vmul.f32 %v1462, 1.442695
        %v1480 = vpow.pop %v1479
        %v1481 = vmul.f32 %v1463, 1.442695
        %v1482 = vpow.pop %v1481
        %v1483 = vmul.f32 %v1464, 1.442695
        %v1484 = vpow.pop %v1483
        %v1485 = vmul.f32 %v1465, 1.442695
        %v1486 = vpow.pop %v1485
        %v1487 = vmul.f32 %v1466, 1.442695
        %v1488 = vpow.pop %v1487
        %v1489 = vmul.f32 %v1467, 1.442695
        %v1490 = vpow.pop %v1489
        %v1491 = vmul.f32 %v1468, 1.442695
        %v1492 = vpow.pop %v1491
        %v1493 = vmul.f32 %v1469, 1.442695
        %v1494 = vpow.pop %v1493
        %v1495 = vmul.f32 %v1470, 1.442695
        %v1496 = vpow.pop %v1495
        %v1497 = vmul.f32 %v1471, 1.442695
        %v1498 = vpow.pop %v1497
        %v1499 = vmul.f32 %v1472, 1.442695
        %v1500 = vpow.pop %v1499
        %v1501 = vmul.f32 %v1473, 1.442695
        %v1502 = vpow.pop %v1501
        %v1503 = vmul.f32 %v1474, 1.442695
        %v1504 = vpow.pop %v1503
        %v1505 = vmul.f32 %v1475, 1.442695
        %v1506 = vpow.pop %v1505
        %v1507 = vmul.f32 %v1476, 1.442695
        %v1508 = vpow.pop %v1507
        %v1509 = vadd.f32 %v1478, 0.0
        %v1510 = vadd.f32 %v1480, 0.0
        %v1511 = vadd.f32 %v1482, 0.0
        %v1512 = vadd.f32 %v1484, 0.0
        %v1513 = vadd.f32 %v1486, 0.0
        %v1514 = vadd.f32 %v1488, 0.0
        %v1515 = vadd.f32 %v1490, 0.0
        %v1516 = vadd.f32 %v1492, 0.0
        %v1517 = vadd.f32 %v1494, 0.0
        %v1518 = vadd.f32 %v1496, 0.0
        %v1519 = vadd.f32 %v1498, 0.0
        %v1520 = vadd.f32 %v1500, 0.0
        %v1521 = vadd.f32 %v1502, 0.0
        %v1522 = vadd.f32 %v1504, 0.0
        %v1523 = vadd.f32 %v1506, 0.0
        %v1524 = vadd.f32 %v1508, 0.0
        %v1525 = vmul.f32 %v1478, %v701
        %v1526 = vmul.f32 %v1480, %v704
        %v1527 = vmul.f32 %v1482, %v710
        %v1528 = vmul.f32 %v1484, %v713
        %v1529 = vmul.f32 %v1486, %v719
        %v1530 = vmul.f32 %v1488, %v722
        %v1531 = vmul.f32 %v1490, %v728
        %v1532 = vmul.f32 %v1492, %v731
        %v1533 = vmul.f32 %v1494, %v737
        %v1534 = vmul.f32 %v1496, %v740
        %v1535 = vmul.f32 %v1498, %v746
        %v1536 = vmul.f32 %v1500, %v749
        %v1537 = vmul.f32 %v1502, %v755
        %v1538 = vmul.f32 %v1504, %v758
        %v1539 = vmul.f32 %v1506, %v764
        %v1540 = vmul.f32 %v1508, %v767
        %v1541 = vadd.f32 %v1525, 0.0
        %v1542 = vadd.f32 %v1526, 0.0
        %v1543 = vadd.f32 %v1527, 0.0
        %v1544 = vadd.f32 %v1528, 0.0
        %v1545 = vadd.f32 %v1529, 0.0
        %v1546 = vadd.f32 %v1530, 0.0
        %v1547 = vadd.f32 %v1531, 0.0
        %v1548 = vadd.f32 %v1532, 0.0
        %v1549 = vadd.f32 %v1533, 0.0
        %v1550 = vadd.f32 %v1534, 0.0
        %v1551 = vadd.f32 %v1535, 0.0
        %v1552 = vadd.f32 %v1536, 0.0
        %v1553 = vadd.f32 %v1537, 0.0
        %v1554 = vadd.f32 %v1538, 0.0
        %v1555 = vadd.f32 %v1539, 0.0
        %v1556 = vadd.f32 %v1540, 0.0
        %v1557 = vsub.f32 %v1086, %v1445
        %v1558 = vsub.f32 %v1087, %v1446
        %v1559 = vsub.f32 %v1088, %v1447
        %v1560 = vsub.f32 %v1089, %v1448
        %v1561 = vsub.f32 %v1090, %v1449
        %v1562 = vsub.f32 %v1091, %v1450
        %v1563 = vsub.f32 %v1092, %v1451
        %v1564 = vsub.f32 %v1093, %v1452
        %v1565 = vsub.f32 %v1094, %v1453
        %v1566 = vsub.f32 %v1095, %v1454
        %v1567 = vsub.f32 %v1096, %v1455
        %v1568 = vsub.f32 %v1097, %v1456
        %v1569 = vsub.f32 %v1098, %v1457
        %v1570 = vsub.f32 %v1099, %v1458
        %v1571 = vsub.f32 %v1100, %v1459
        %v1572 = vsub.f32 %v1101, %v1460
        %v1573 = vmul.f32 %v1557, 1.442695
        %v1574 = vpow.pop %v1573
        %v1575 = vmul.f32 %v1558, 1.442695
        %v1576 = vpow.pop %v1575
        %v1577 = vmul.f32 %v1559, 1.442695
        %v1578 = vpow.pop %v1577
        %v1579 = vmul.f32 %v1560, 1.442695
        %v1580 = vpow.pop %v1579
        %v1581 = vmul.f32 %v1561, 1.442695
        %v1582 = vpow.pop %v1581
        %v1583 = vmul.f32 %v1562, 1.442695
        %v1584 = vpow.pop %v1583
        %v1585 = vmul.f32 %v1563, 1.442695
        %v1586 = vpow.pop %v1585
        %v1587 = vmul.f32 %v1564, 1.442695
        %v1588 = vpow.pop %v1587
        %v1589 = vmul.f32 %v1565, 1.442695
        %v1590 = vpow.pop %v1589
        %v1591 = vmul.f32 %v1566, 1.442695
        %v1592 = vpow.pop %v1591
        %v1593 = vmul.f32 %v1567, 1.442695
        %v1594 = vpow.pop %v1593
        %v1595 = vmul.f32 %v1568, 1.442695
        %v1596 = vpow.pop %v1595
        %v1597 = vmul.f32 %v1569, 1.442695
        %v1598 = vpow.pop %v1597
        %v1599 = vmul.f32 %v1570, 1.442695
        %v1600 = vpow.pop %v1599
        %v1601 = vmul.f32 %v1571, 1.442695
        %v1602 = vpow.pop %v1601
        %v1603 = vmul.f32 %v1572, 1.442695
        %v1604 = vpow.pop %v1603
        %v1605 = vadd.f32 %v1509, %v1574
        %v1606 = vadd.f32 %v1510, %v1576
        %v1607 = vadd.f32 %v1511, %v1578
        %v1608 = vadd.f32 %v1512, %v1580
        %v1609 = vadd.f32 %v1513, %v1582
        %v1610 = vadd.f32 %v1514, %v1584
        %v1611 = vadd.f32 %v1515, %v1586
        %v1612 = vadd.f32 %v1516, %v1588
        %v1613 = vadd.f32 %v1517, %v1590
        %v1614 = vadd.f32 %v1518, %v1592
        %v1615 = vadd.f32 %v1519, %v1594
        %v1616 = vadd.f32 %v1520, %v1596
        %v1617 = vadd.f32 %v1521, %v1598
        %v1618 = vadd.f32 %v1522, %v1600
        %v1619 = vadd.f32 %v1523, %v1602
        %v1620 = vadd.f32 %v1524, %v1604
        %v1621 = vmul.f32 %v1574, %v983
        %v1622 = vmul.f32 %v1576, %v982
        %v1623 = vmul.f32 %v1578, %v981
        %v1624 = vmul.f32 %v1580, %v980
        %v1625 = vmul.f32 %v1582, %v979
        %v1626 = vmul.f32 %v1584, %v978
        %v1627 = vmul.f32 %v1586, %v977
        %v1628 = vmul.f32 %v1588, %v976
        %v1629 = vmul.f32 %v1590, %v975
        %v1630 = vmul.f32 %v1592, %v974
        %v1631 = vmul.f32 %v1594, %v973
        %v1632 = vmul.f32 %v1596, %v972
        %v1633 = vmul.f32 %v1598, %v971
        %v1634 = vmul.f32 %v1600, %v970
        %v1635 = vmul.f32 %v1602, %v969
        %v1636 = vmul.f32 %v1604, %v968
        %v1637 = vadd.f32 %v1541, %v1621
        %v1638 = vadd.f32 %v1542, %v1622
        %v1639 = vadd.f32 %v1543, %v1623
        %v1640 = vadd.f32 %v1544, %v1624
        %v1641 = vadd.f32 %v1545, %v1625
        %v1642 = vadd.f32 %v1546, %v1626
        %v1643 = vadd.f32 %v1547, %v1627
        %v1644 = vadd.f32 %v1548, %v1628
        %v1645 = vadd.f32 %v1549, %v1629
        %v1646 = vadd.f32 %v1550, %v1630
        %v1647 = vadd.f32 %v1551, %v1631
        %v1648 = vadd.f32 %v1552, %v1632
        %v1649 = vadd.f32 %v1553, %v1633
        %v1650 = vadd.f32 %v1554, %v1634
        %v1651 = vadd.f32 %v1555, %v1635
        %v1652 = vadd.f32 %v1556, %v1636
        %v1653 = vsub.f32 %v1135, %v1445
        %v1654 = vsub.f32 %v1136, %v1446
        %v1655 = vsub.f32 %v1137, %v1447
        %v1656 = vsub.f32 %v1138, %v1448
        %v1657 = vsub.f32 %v1139, %v1449
        %v1658 = vsub.f32 %v1140, %v1450
        %v1659 = vsub.f32 %v1141, %v1451
        %v1660 = vsub.f32 %v1142, %v1452
        %v1661 = vsub.f32 %v1143, %v1453
        %v1662 = vsub.f32 %v1144, %v1454
        %v1663 = vsub.f32 %v1145, %v1455
        %v1664 = vsub.f32 %v1146, %v1456
        %v1665 = vsub.f32 %v1147, %v1457
        %v1666 = vsub.f32 %v1148, %v1458
        %v1667 = vsub.f32 %v1149, %v1459
        %v1668 = vsub.f32 %v1150, %v1460
        %v1669 = vmul.f32 %v1653, 1.442695
        %v1670 = vpow.pop %v1669
        %v1671 = vmul.f32 %v1654, 1.442695
        %v1672 = vpow.pop %v1671
        %v1673 = vmul.f32 %v1655, 1.442695
        %v1674 = vpow.pop %v1673
        %v1675 = vmul.f32 %v1656, 1.442695
        %v1676 = vpow.pop %v1675
        %v1677 = vmul.f32 %v1657, 1.442695
        %v1678 = vpow.pop %v1677
        %v1679 = vmul.f32 %v1658, 1.442695
        %v1680 = vpow.pop %v1679
        %v1681 = vmul.f32 %v1659, 1.442695
        %v1682 = vpow.pop %v1681
        %v1683 = vmul.f32 %v1660, 1.442695
        %v1684 = vpow.pop %v1683
        %v1685 = vmul.f32 %v1661, 1.442695
        %v1686 = vpow.pop %v1685
        %v1687 = vmul.f32 %v1662, 1.442695
        %v1688 = vpow.pop %v1687
        %v1689 = vmul.f32 %v1663, 1.442695
        %v1690 = vpow.pop %v1689
        %v1691 = vmul.f32 %v1664, 1.442695
        %v1692 = vpow.pop %v1691
        %v1693 = vmul.f32 %v1665, 1.442695
        %v1694 = vpow.pop %v1693
        %v1695 = vmul.f32 %v1666, 1.442695
        %v1696 = vpow.pop %v1695
        %v1697 = vmul.f32 %v1667, 1.442695
        %v1698 = vpow.pop %v1697
        %v1699 = vmul.f32 %v1668, 1.442695
        %v1700 = vpow.pop %v1699
        %v1701 = vadd.f32 %v1605, %v1670
        %v1702 = vadd.f32 %v1606, %v1672
        %v1703 = vadd.f32 %v1607, %v1674
        %v1704 = vadd.f32 %v1608, %v1676
        %v1705 = vadd.f32 %v1609, %v1678
        %v1706 = vadd.f32 %v1610, %v1680
        %v1707 = vadd.f32 %v1611, %v1682
        %v1708 = vadd.f32 %v1612, %v1684
        %v1709 = vadd.f32 %v1613, %v1686
        %v1710 = vadd.f32 %v1614, %v1688
        %v1711 = vadd.f32 %v1615, %v1690
        %v1712 = vadd.f32 %v1616, %v1692
        %v1713 = vadd.f32 %v1617, %v1694
        %v1714 = vadd.f32 %v1618, %v1696
        %v1715 = vadd.f32 %v1619, %v1698
        %v1716 = vadd.f32 %v1620, %v1700
        %v1717 = vmul.f32 %v1670, %v1033
        %v1718 = vmul.f32 %v1672, %v1032
        %v1719 = vmul.f32 %v1674, %v1031
        %v1720 = vmul.f32 %v1676, %v1030
        %v1721 = vmul.f32 %v1678, %v1029
        %v1722 = vmul.f32 %v1680, %v1028
        %v1723 = vmul.f32 %v1682, %v1027
        %v1724 = vmul.f32 %v1684, %v1026
        %v1725 = vmul.f32 %v1686, %v1025
        %v1726 = vmul.f32 %v1688, %v1024
        %v1727 = vmul.f32 %v1690, %v1023
        %v1728 = vmul.f32 %v1692, %v1022
        %v1729 = vmul.f32 %v1694, %v1021
        %v1730 = vmul.f32 %v1696, %v1020
        %v1731 = vmul.f32 %v1698, %v1019
        %v1732 = vmul.f32 %v1700, %v1018
        %v1733 = vadd.f32 %v1637, %v1717
        %v1734 = vadd.f32 %v1638, %v1718
        %v1735 = vadd.f32 %v1639, %v1719
        %v1736 = vadd.f32 %v1640, %v1720
        %v1737 = vadd.f32 %v1641, %v1721
        %v1738 = vadd.f32 %v1642, %v1722
        %v1739 = vadd.f32 %v1643, %v1723
        %v1740 = vadd.f32 %v1644, %v1724
        %v1741 = vadd.f32 %v1645, %v1725
        %v1742 = vadd.f32 %v1646, %v1726
        %v1743 = vadd.f32 %v1647, %v1727
        %v1744 = vadd.f32 %v1648, %v1728
        %v1745 = vadd.f32 %v1649, %v1729
        %v1746 = vadd.f32 %v1650, %v1730
        %v1747 = vadd.f32 %v1651, %v1731
        %v1748 = vadd.f32 %v1652, %v1732
        %v1749 = vsub.f32 %v1184, %v1445
        %v1750 = vsub.f32 %v1185, %v1446
        %v1751 = vsub.f32 %v1186, %v1447
        %v1752 = vsub.f32 %v1187, %v1448
        %v1753 = vsub.f32 %v1188, %v1449
        %v1754 = vsub.f32 %v1189, %v1450
        %v1755 = vsub.f32 %v1190, %v1451
        %v1756 = vsub.f32 %v1191, %v1452
        %v1757 = vsub.f32 %v1192, %v1453
        %v1758 = vsub.f32 %v1193, %v1454
        %v1759 = vsub.f32 %v1194, %v1455
        %v1760 = vsub.f32 %v1195, %v1456
        %v1761 = vsub.f32 %v1196, %v1457
        %v1762 = vsub.f32 %v1197, %v1458
        %v1763 = vsub.f32 %v1198, %v1459
        %v1764 = vsub.f32 %v1199, %v1460
        %v1765 = vmul.f32 %v1749, 1.442695
        %v1766 = vpow.pop %v1765
        %v1767 = vmul.f32 %v1750, 1.442695
        %v1768 = vpow.pop %v1767
        %v1769 = vmul.f32 %v1751, 1.442695
        %v1770 = vpow.pop %v1769
        %v1771 = vmul.f32 %v1752, 1.442695
        %v1772 = vpow.pop %v1771
        %v1773 = vmul.f32 %v1753, 1.442695
        %v1774 = vpow.pop %v1773
        %v1775 = vmul.f32 %v1754, 1.442695
        %v1776 = vpow.pop %v1775
        %v1777 = vmul.f32 %v1755, 1.442695
        %v1778 = vpow.pop %v1777
        %v1779 = vmul.f32 %v1756, 1.442695
        %v1780 = vpow.pop %v1779
        %v1781 = vmul.f32 %v1757, 1.442695
        %v1782 = vpow.pop %v1781
        %v1783 = vmul.f32 %v1758, 1.442695
        %v1784 = vpow.pop %v1783
        %v1785 = vmul.f32 %v1759, 1.442695
        %v1786 = vpow.pop %v1785
        %v1787 = vmul.f32 %v1760, 1.442695
        %v1788 = vpow.pop %v1787
        %v1789 = vmul.f32 %v1761, 1.442695
        %v1790 = vpow.pop %v1789
        %v1791 = vmul.f32 %v1762, 1.442695
        %v1792 = vpow.pop %v1791
        %v1793 = vmul.f32 %v1763, 1.442695
        %v1794 = vpow.pop %v1793
        %v1795 = vmul.f32 %v1764, 1.442695
        %v1796 = vpow.pop %v1795
        %v1797 = vadd.f32 %v1701, %v1766
        %v1798 = vadd.f32 %v1702, %v1768
        %v1799 = vadd.f32 %v1703, %v1770
        %v1800 = vadd.f32 %v1704, %v1772
        %v1801 = vadd.f32 %v1705, %v1774
        %v1802 = vadd.f32 %v1706, %v1776
        %v1803 = vadd.f32 %v1707, %v1778
        %v1804 = vadd.f32 %v1708, %v1780
        %v1805 = vadd.f32 %v1709, %v1782
        %v1806 = vadd.f32 %v1710, %v1784
        %v1807 = vadd.f32 %v1711, %v1786
        %v1808 = vadd.f32 %v1712, %v1788
        %v1809 = vadd.f32 %v1713, %v1790
        %v1810 = vadd.f32 %v1714, %v1792
        %v1811 = vadd.f32 %v1715, %v1794
        %v1812 = vadd.f32 %v1716, %v1796
        %v1813 = vmul.f32 %v1766, %v710
        %v1814 = vmul.f32 %v1768, %v713
        %v1815 = vmul.f32 %v1770, %v719
        %v1816 = vmul.f32 %v1772, %v722
        %v1817 = vmul.f32 %v1774, %v728
        %v1818 = vmul.f32 %v1776, %v731
        %v1819 = vmul.f32 %v1778, %v737
        %v1820 = vmul.f32 %v1780, %v740
        %v1821 = vmul.f32 %v1782, %v746
        %v1822 = vmul.f32 %v1784, %v749
        %v1823 = vmul.f32 %v1786, %v755
        %v1824 = vmul.f32 %v1788, %v758
        %v1825 = vmul.f32 %v1790, %v764
        %v1826 = vmul.f32 %v1792, %v767
        %v1827 = vmul.f32 %v1794, %v773
        %v1828 = vmul.f32 %v1796, %v776
        %v1829 = vadd.f32 %v1733, %v1813
        %v1830 = vadd.f32 %v1734, %v1814
        %v1831 = vadd.f32 %v1735, %v1815
        %v1832 = vadd.f32 %v1736, %v1816
        %v1833 = vadd.f32 %v1737, %v1817
        %v1834 = vadd.f32 %v1738, %v1818
        %v1835 = vadd.f32 %v1739, %v1819
        %v1836 = vadd.f32 %v1740, %v1820
        %v1837 = vadd.f32 %v1741, %v1821
        %v1838 = vadd.f32 %v1742, %v1822
        %v1839 = vadd.f32 %v1743, %v1823
        %v1840 = vadd.f32 %v1744, %v1824
        %v1841 = vadd.f32 %v1745, %v1825
        %v1842 = vadd.f32 %v1746, %v1826
        %v1843 = vadd.f32 %v1747, %v1827
        %v1844 = vadd.f32 %v1748, %v1828
        %v1845 = vsub.f32 %v1233, %v1445
        %v1846 = vsub.f32 %v1234, %v1446
        %v1847 = vsub.f32 %v1235, %v1447
        %v1848 = vsub.f32 %v1236, %v1448
        %v1849 = vsub.f32 %v1237, %v1449
        %v1850 = vsub.f32 %v1238, %v1450
        %v1851 = vsub.f32 %v1239, %v1451
        %v1852 = vsub.f32 %v1240, %v1452
        %v1853 = vsub.f32 %v1241, %v1453
        %v1854 = vsub.f32 %v1242, %v1454
        %v1855 = vsub.f32 %v1243, %v1455
        %v1856 = vsub.f32 %v1244, %v1456
        %v1857 = vsub.f32 %v1245, %v1457
        %v1858 = vsub.f32 %v1246, %v1458
        %v1859 = vsub.f32 %v1247, %v1459
        %v1860 = vsub.f32 %v1248, %v1460
        %v1861 = vmul.f32 %v1845, 1.442695
        %v1862 = vpow.pop %v1861
        %v1863 = vmul.f32 %v1846, 1.442695
        %v1864 = vpow.pop %v1863
        %v1865 = vmul.f32 %v1847, 1.442695
        %v1866 = vpow.pop %v1865
        %v1867 = vmul.f32 %v1848, 1.442695
        %v1868 = vpow.pop %v1867
        %v1869 = vmul.f32 %v1849, 1.442695
        %v1870 = vpow.pop %v1869
        %v1871 = vmul.f32 %v1850, 1.442695
        %v1872 = vpow.pop %v1871
        %v1873 = vmul.f32 %v1851, 1.442695
        %v1874 = vpow.pop %v1873
        %v1875 = vmul.f32 %v1852, 1.442695
        %v1876 = vpow.pop %v1875
        %v1877 = vmul.f32 %v1853, 1.442695
        %v1878 = vpow.pop %v1877
        %v1879 = vmul.f32 %v1854, 1.442695
        %v1880 = vpow.pop %v1879
        %v1881 = vmul.f32 %v1855, 1.442695
        %v1882 = vpow.pop %v1881
        %v1883 = vmul.f32 %v1856, 1.442695
        %v1884 = vpow.pop %v1883
        %v1885 = vmul.f32 %v1857, 1.442695
        %v1886 = vpow.pop %v1885
        %v1887 = vmul.f32 %v1858, 1.442695
        %v1888 = vpow.pop %v1887
        %v1889 = vmul.f32 %v1859, 1.442695
        %v1890 = vpow.pop %v1889
        %v1891 = vmul.f32 %v1860, 1.442695
        %v1892 = vpow.pop %v1891
        %v1893 = vadd.f32 %v1797, %v1862
        %v1894 = vadd.f32 %v1798, %v1864
        %v1895 = vadd.f32 %v1799, %v1866
        %v1896 = vadd.f32 %v1800, %v1868
        %v1897 = vadd.f32 %v1801, %v1870
        %v1898 = vadd.f32 %v1802, %v1872
        %v1899 = vadd.f32 %v1803, %v1874
        %v1900 = vadd.f32 %v1804, %v1876
        %v1901 = vadd.f32 %v1805, %v1878
        %v1902 = vadd.f32 %v1806, %v1880
        %v1903 = vadd.f32 %v1807, %v1882
        %v1904 = vadd.f32 %v1808, %v1884
        %v1905 = vadd.f32 %v1809, %v1886
        %v1906 = vadd.f32 %v1810, %v1888
        %v1907 = vadd.f32 %v1811, %v1890
        %v1908 = vadd.f32 %v1812, %v1892
        %v1909 = vmul.f32 %v1862, %v981
        %v1910 = vmul.f32 %v1864, %v980
        %v1911 = vmul.f32 %v1866, %v979
        %v1912 = vmul.f32 %v1868, %v978
        %v1913 = vmul.f32 %v1870, %v977
        %v1914 = vmul.f32 %v1872, %v976
        %v1915 = vmul.f32 %v1874, %v975
        %v1916 = vmul.f32 %v1876, %v974
        %v1917 = vmul.f32 %v1878, %v973
        %v1918 = vmul.f32 %v1880, %v972
        %v1919 = vmul.f32 %v1882, %v971
        %v1920 = vmul.f32 %v1884, %v970
        %v1921 = vmul.f32 %v1886, %v969
        %v1922 = vmul.f32 %v1888, %v968
        %v1923 = vmul.f32 %v1890, %v967
        %v1924 = vmul.f32 %v1892, %v966
        %v1925 = vadd.f32 %v1829, %v1909
        %v1926 = vadd.f32 %v1830, %v1910
        %v1927 = vadd.f32 %v1831, %v1911
        %v1928 = vadd.f32 %v1832, %v1912
        %v1929 = vadd.f32 %v1833, %v1913
        %v1930 = vadd.f32 %v1834, %v1914
        %v1931 = vadd.f32 %v1835, %v1915
        %v1932 = vadd.f32 %v1836, %v1916
        %v1933 = vadd.f32 %v1837, %v1917
        %v1934 = vadd.f32 %v1838, %v1918
        %v1935 = vadd.f32 %v1839, %v1919
        %v1936 = vadd.f32 %v1840, %v1920
        %v1937 = vadd.f32 %v1841, %v1921
        %v1938 = vadd.f32 %v1842, %v1922
        %v1939 = vadd.f32 %v1843, %v1923
        %v1940 = vadd.f32 %v1844, %v1924
        %v1941 = vsub.f32 %v1282, %v1445
        %v1942 = vsub.f32 %v1283, %v1446
        %v1943 = vsub.f32 %v1284, %v1447
        %v1944 = vsub.f32 %v1285, %v1448
        %v1945 = vsub.f32 %v1286, %v1449
        %v1946 = vsub.f32 %v1287, %v1450
        %v1947 = vsub.f32 %v1288, %v1451
        %v1948 = vsub.f32 %v1289, %v1452
        %v1949 = vsub.f32 %v1290, %v1453
        %v1950 = vsub.f32 %v1291, %v1454
        %v1951 = vsub.f32 %v1292, %v1455
        %v1952 = vsub.f32 %v1293, %v1456
        %v1953 = vsub.f32 %v1294, %v1457
        %v1954 = vsub.f32 %v1295, %v1458
        %v1955 = vsub.f32 %v1296, %v1459
        %v1956 = vsub.f32 %v1297, %v1460
        %v1957 = vmul.f32 %v1941, 1.442695
        %v1958 = vpow.pop %v1957
        %v1959 = vmul.f32 %v1942, 1.442695
        %v1960 = vpow.pop %v1959
        %v1961 = vmul.f32 %v1943, 1.442695
        %v1962 = vpow.pop %v1961
        %v1963 = vmul.f32 %v1944, 1.442695
        %v1964 = vpow.pop %v1963
        %v1965 = vmul.f32 %v1945, 1.442695
        %v1966 = vpow.pop %v1965
        %v1967 = vmul.f32 %v1946, 1.442695
        %v1968 = vpow.pop %v1967
        %v1969 = vmul.f32 %v1947, 1.442695
        %v1970 = vpow.pop %v1969
        %v1971 = vmul.f32 %v1948, 1.442695
        %v1972 = vpow.pop %v1971
        %v1973 = vmul.f32 %v1949, 1.442695
        %v1974 = vpow.pop %v1973
        %v1975 = vmul.f32 %v1950, 1.442695
        %v1976 = vpow.pop %v1975
        %v1977 = vmul.f32 %v1951, 1.442695
        %v1978 = vpow.pop %v1977
        %v1979 = vmul.f32 %v1952, 1.442695
        %v1980 = vpow.pop %v1979
        %v1981 = vmul.f32 %v1953, 1.442695
        %v1982 = vpow.pop %v1981
        %v1983 = vmul.f32 %v1954, 1.442695
        %v1984 = vpow.pop %v1983
        %v1985 = vmul.f32 %v1955, 1.442695
        %v1986 = vpow.pop %v1985
        %v1987 = vmul.f32 %v1956, 1.442695
        %v1988 = vpow.pop %v1987
        %v1989 = vadd.f32 %v1893, %v1958
        %v1990 = vadd.f32 %v1894, %v1960
        %v1991 = vadd.f32 %v1895, %v1962
        %v1992 = vadd.f32 %v1896, %v1964
        %v1993 = vadd.f32 %v1897, %v1966
        %v1994 = vadd.f32 %v1898, %v1968
        %v1995 = vadd.f32 %v1899, %v1970
        %v1996 = vadd.f32 %v1900, %v1972
        %v1997 = vadd.f32 %v1901, %v1974
        %v1998 = vadd.f32 %v1902, %v1976
        %v1999 = vadd.f32 %v1903, %v1978
        %v2000 = vadd.f32 %v1904, %v1980
        %v2001 = vadd.f32 %v1905, %v1982
        %v2002 = vadd.f32 %v1906, %v1984
        %v2003 = vadd.f32 %v1907, %v1986
        %v2004 = vadd.f32 %v1908, %v1988
        %v2005 = vmul.f32 %v1958, %v1031
        %v2006 = vmul.f32 %v1960, %v1030
        %v2007 = vmul.f32 %v1962, %v1029
        %v2008 = vmul.f32 %v1964, %v1028
        %v2009 = vmul.f32 %v1966, %v1027
        %v2010 = vmul.f32 %v1968, %v1026
        %v2011 = vmul.f32 %v1970, %v1025
        %v2012 = vmul.f32 %v1972, %v1024
        %v2013 = vmul.f32 %v1974, %v1023
        %v2014 = vmul.f32 %v1976, %v1022
        %v2015 = vmul.f32 %v1978, %v1021
        %v2016 = vmul.f32 %v1980, %v1020
        %v2017 = vmul.f32 %v1982, %v1019
        %v2018 = vmul.f32 %v1984, %v1018
        %v2019 = vmul.f32 %v1986, %v1017
        %v2020 = vmul.f32 %v1988, %v1016
        %v2021 = vadd.f32 %v1925, %v2005
        %v2022 = vadd.f32 %v1926, %v2006
        %v2023 = vadd.f32 %v1927, %v2007
        %v2024 = vadd.f32 %v1928, %v2008
        %v2025 = vadd.f32 %v1929, %v2009
        %v2026 = vadd.f32 %v1930, %v2010
        %v2027 = vadd.f32 %v1931, %v2011
        %v2028 = vadd.f32 %v1932, %v2012
        %v2029 = vadd.f32 %v1933, %v2013
        %v2030 = vadd.f32 %v1934, %v2014
        %v2031 = vadd.f32 %v1935, %v2015
        %v2032 = vadd.f32 %v1936, %v2016
        %v2033 = vadd.f32 %v1937, %v2017
        %v2034 = vadd.f32 %v1938, %v2018
        %v2035 = vadd.f32 %v1939, %v2019
        %v2036 = vadd.f32 %v1940, %v2020
        %v2037 = vsub.f32 %v1331, %v1445
        %v2038 = vsub.f32 %v1332, %v1446
        %v2039 = vsub.f32 %v1333, %v1447
        %v2040 = vsub.f32 %v1334, %v1448
        %v2041 = vsub.f32 %v1335, %v1449
        %v2042 = vsub.f32 %v1336, %v1450
        %v2043 = vsub.f32 %v1337, %v1451
        %v2044 = vsub.f32 %v1338, %v1452
        %v2045 = vsub.f32 %v1339, %v1453
        %v2046 = vsub.f32 %v1340, %v1454
        %v2047 = vsub.f32 %v1341, %v1455
        %v2048 = vsub.f32 %v1342, %v1456
        %v2049 = vsub.f32 %v1343, %v1457
        %v2050 = vsub.f32 %v1344, %v1458
        %v2051 = vsub.f32 %v1345, %v1459
        %v2052 = vsub.f32 %v1346, %v1460
        %v2053 = vmul.f32 %v2037, 1.442695
        %v2054 = vpow.pop %v2053
        %v2055 = vmul.f32 %v2038, 1.442695
        %v2056 = vpow.pop %v2055
        %v2057 = vmul.f32 %v2039, 1.442695
        %v2058 = vpow.pop %v2057
        %v2059 = vmul.f32 %v2040, 1.442695
        %v2060 = vpow.pop %v2059
        %v2061 = vmul.f32 %v2041, 1.442695
        %v2062 = vpow.pop %v2061
        %v2063 = vmul.f32 %v2042, 1.442695
        %v2064 = vpow.pop %v2063
        %v2065 = vmul.f32 %v2043, 1.442695
        %v2066 = vpow.pop %v2065
        %v2067 = vmul.f32 %v2044, 1.442695
        %v2068 = vpow.pop %v2067
        %v2069 = vmul.f32 %v2045, 1.442695
        %v2070 = vpow.pop %v2069
        %v2071 = vmul.f32 %v2046, 1.442695
        %v2072 = vpow.pop %v2071
        %v2073 = vmul.f32 %v2047, 1.442695
        %v2074 = vpow.pop %v2073
        %v2075 = vmul.f32 %v2048, 1.442695
        %v2076 = vpow.pop %v2075
        %v2077 = vmul.f32 %v2049, 1.442695
        %v2078 = vpow.pop %v2077
        %v2079 = vmul.f32 %v2050, 1.442695
        %v2080 = vpow.pop %v2079
        %v2081 = vmul.f32 %v2051, 1.442695
        %v2082 = vpow.pop %v2081
        %v2083 = vmul.f32 %v2052, 1.442695
        %v2084 = vpow.pop %v2083
        %v2085 = vadd.f32 %v1989, %v2054
        %v2086 = vadd.f32 %v1990, %v2056
        %v2087 = vadd.f32 %v1991, %v2058
        %v2088 = vadd.f32 %v1992, %v2060
        %v2089 = vadd.f32 %v1993, %v2062
        %v2090 = vadd.f32 %v1994, %v2064
        %v2091 = vadd.f32 %v1995, %v2066
        %v2092 = vadd.f32 %v1996, %v2068
        %v2093 = vadd.f32 %v1997, %v2070
        %v2094 = vadd.f32 %v1998, %v2072
        %v2095 = vadd.f32 %v1999, %v2074
        %v2096 = vadd.f32 %v2000, %v2076
        %v2097 = vadd.f32 %v2001, %v2078
        %v2098 = vadd.f32 %v2002, %v2080
        %v2099 = vadd.f32 %v2003, %v2082
        %v2100 = vadd.f32 %v2004, %v2084
        %v2101 = vmul.f32 %v2054, %v719
        %v2102 = vmul.f32 %v2056, %v722
        %v2103 = vmul.f32 %v2058, %v728
        %v2104 = vmul.f32 %v2060, %v731
        %v2105 = vmul.f32 %v2062, %v737
        %v2106 = vmul.f32 %v2064, %v740
        %v2107 = vmul.f32 %v2066, %v746
        %v2108 = vmul.f32 %v2068, %v749
        %v2109 = vmul.f32 %v2070, %v755
        %v2110 = vmul.f32 %v2072, %v758
        %v2111 = vmul.f32 %v2074, %v764
        %v2112 = vmul.f32 %v2076, %v767
        %v2113 = vmul.f32 %v2078, %v773
        %v2114 = vmul.f32 %v2080, %v776
        %v2115 = vmul.f32 %v2082, %v782
        %v2116 = vmul.f32 %v2084, %v785
        %v2117 = vadd.f32 %v2021, %v2101
        %v2118 = vadd.f32 %v2022, %v2102
        %v2119 = vadd.f32 %v2023, %v2103
        %v2120 = vadd.f32 %v2024, %v2104
        %v2121 = vadd.f32 %v2025, %v2105
        %v2122 = vadd.f32 %v2026, %v2106
        %v2123 = vadd.f32 %v2027, %v2107
        %v2124 = vadd.f32 %v2028, %v2108
        %v2125 = vadd.f32 %v2029, %v2109
        %v2126 = vadd.f32 %v2030, %v2110
        %v2127 = vadd.f32 %v2031, %v2111
        %v2128 = vadd.f32 %v2032, %v2112
        %v2129 = vadd.f32 %v2033, %v2113
        %v2130 = vadd.f32 %v2034, %v2114
        %v2131 = vadd.f32 %v2035, %v2115
        %v2132 = vadd.f32 %v2036, %v2116
        %v2133 = vsub.f32 %v1380, %v1445
        %v2134 = vsub.f32 %v1381, %v1446
        %v2135 = vsub.f32 %v1382, %v1447
        %v2136 = vsub.f32 %v1383, %v1448
        %v2137 = vsub.f32 %v1384, %v1449
        %v2138 = vsub.f32 %v1385, %v1450
        %v2139 = vsub.f32 %v1386, %v1451
        %v2140 = vsub.f32 %v1387, %v1452
        %v2141 = vsub.f32 %v1388, %v1453
        %v2142 = vsub.f32 %v1389, %v1454
        %v2143 = vsub.f32 %v1390, %v1455
        %v2144 = vsub.f32 %v1391, %v1456
        %v2145 = vsub.f32 %v1392, %v1457
        %v2146 = vsub.f32 %v1393, %v1458
        %v2147 = vsub.f32 %v1394, %v1459
        %v2148 = vsub.f32 %v1395, %v1460
        %v2149 = vmul.f32 %v2133, 1.442695
        %v2150 = vpow.pop %v2149
        %v2151 = vmul.f32 %v2134, 1.442695
        %v2152 = vpow.pop %v2151
        %v2153 = vmul.f32 %v2135, 1.442695
        %v2154 = vpow.pop %v2153
        %v2155 = vmul.f32 %v2136, 1.442695
        %v2156 = vpow.pop %v2155
        %v2157 = vmul.f32 %v2137, 1.442695
        %v2158 = vpow.pop %v2157
        %v2159 = vmul.f32 %v2138, 1.442695
        %v2160 = vpow.pop %v2159
        %v2161 = vmul.f32 %v2139, 1.442695
        %v2162 = vpow.pop %v2161
        %v2163 = vmul.f32 %v2140, 1.442695
        %v2164 = vpow.pop %v2163
        %v2165 = vmul.f32 %v2141, 1.442695
        %v2166 = vpow.pop %v2165
        %v2167 = vmul.f32 %v2142, 1.442695
        %v2168 = vpow.pop %v2167
        %v2169 = vmul.f32 %v2143, 1.442695
        %v2170 = vpow.pop %v2169
        %v2171 = vmul.f32 %v2144, 1.442695
        %v2172 = vpow.pop %v2171
        %v2173 = vmul.f32 %v2145, 1.442695
        %v2174 = vpow.pop %v2173
        %v2175 = vmul.f32 %v2146, 1.442695
        %v2176 = vpow.pop %v2175
        %v2177 = vmul.f32 %v2147, 1.442695
        %v2178 = vpow.pop %v2177
        %v2179 = vmul.f32 %v2148, 1.442695
        %v2180 = vpow.pop %v2179
        %v2181 = vadd.f32 %v2085, %v2150
        %v2182 = vadd.f32 %v2086, %v2152
        %v2183 = vadd.f32 %v2087, %v2154
        %v2184 = vadd.f32 %v2088, %v2156
        %v2185 = vadd.f32 %v2089, %v2158
        %v2186 = vadd.f32 %v2090, %v2160
        %v2187 = vadd.f32 %v2091, %v2162
        %v2188 = vadd.f32 %v2092, %v2164
        %v2189 = vadd.f32 %v2093, %v2166
        %v2190 = vadd.f32 %v2094, %v2168
        %v2191 = vadd.f32 %v2095, %v2170
        %v2192 = vadd.f32 %v2096, %v2172
        %v2193 = vadd.f32 %v2097, %v2174
        %v2194 = vadd.f32 %v2098, %v2176
        %v2195 = vadd.f32 %v2099, %v2178
        %v2196 = vadd.f32 %v2100, %v2180
        %v2197 = vmul.f32 %v2150, %v979
        %v2198 = vmul.f32 %v2152, %v978
        %v2199 = vmul.f32 %v2154, %v977
        %v2200 = vmul.f32 %v2156, %v976
        %v2201 = vmul.f32 %v2158, %v975
        %v2202 = vmul.f32 %v2160, %v974
        %v2203 = vmul.f32 %v2162, %v973
        %v2204 = vmul.f32 %v2164, %v972
        %v2205 = vmul.f32 %v2166, %v971
        %v2206 = vmul.f32 %v2168, %v970
        %v2207 = vmul.f32 %v2170, %v969
        %v2208 = vmul.f32 %v2172, %v968
        %v2209 = vmul.f32 %v2174, %v967
        %v2210 = vmul.f32 %v2176, %v966
        %v2211 = vmul.f32 %v2178, %v965
        %v2212 = vmul.f32 %v2180, %v964
        %v2213 = vadd.f32 %v2117, %v2197
        %v2214 = vadd.f32 %v2118, %v2198
        %v2215 = vadd.f32 %v2119, %v2199
        %v2216 = vadd.f32 %v2120, %v2200
        %v2217 = vadd.f32 %v2121, %v2201
        %v2218 = vadd.f32 %v2122, %v2202
        %v2219 = vadd.f32 %v2123, %v2203
        %v2220 = vadd.f32 %v2124, %v2204
        %v2221 = vadd.f32 %v2125, %v2205
        %v2222 = vadd.f32 %v2126, %v2206
        %v2223 = vadd.f32 %v2127, %v2207
        %v2224 = vadd.f32 %v2128, %v2208
        %v2225 = vadd.f32 %v2129, %v2209
        %v2226 = vadd.f32 %v2130, %v2210
        %v2227 = vadd.f32 %v2131, %v2211
        %v2228 = vadd.f32 %v2132, %v2212
        %v2229 = vsub.f32 %v1429, %v1445
        %v2230 = vsub.f32 %v1430, %v1446
        %v2231 = vsub.f32 %v1431, %v1447
        %v2232 = vsub.f32 %v1432, %v1448
        %v2233 = vsub.f32 %v1433, %v1449
        %v2234 = vsub.f32 %v1434, %v1450
        %v2235 = vsub.f32 %v1435, %v1451
        %v2236 = vsub.f32 %v1436, %v1452
        %v2237 = vsub.f32 %v1437, %v1453
        %v2238 = vsub.f32 %v1438, %v1454
        %v2239 = vsub.f32 %v1439, %v1455
        %v2240 = vsub.f32 %v1440, %v1456
        %v2241 = vsub.f32 %v1441, %v1457
        %v2242 = vsub.f32 %v1442, %v1458
        %v2243 = vsub.f32 %v1443, %v1459
        %v2244 = vsub.f32 %v1444, %v1460
        %v2245 = vmul.f32 %v2229, 1.442695
        %v2246 = vpow.pop %v2245
        %v2247 = vmul.f32 %v2230, 1.442695
        %v2248 = vpow.pop %v2247
        %v2249 = vmul.f32 %v2231, 1.442695
        %v2250 = vpow.pop %v2249
        %v2251 = vmul.f32 %v2232, 1.442695
        %v2252 = vpow.pop %v2251
        %v2253 = vmul.f32 %v2233, 1.442695
        %v2254 = vpow.pop %v2253
        %v2255 = vmul.f32 %v2234, 1.442695
        %v2256 = vpow.pop %v2255
        %v2257 = vmul.f32 %v2235, 1.442695
        %v2258 = vpow.pop %v2257
        %v2259 = vmul.f32 %v2236, 1.442695
        %v2260 = vpow.pop %v2259
        %v2261 = vmul.f32 %v2237, 1.442695
        %v2262 = vpow.pop %v2261
        %v2263 = vmul.f32 %v2238, 1.442695
        %v2264 = vpow.pop %v2263
        %v2265 = vmul.f32 %v2239, 1.442695
        %v2266 = vpow.pop %v2265
        %v2267 = vmul.f32 %v2240, 1.442695
        %v2268 = vpow.pop %v2267
        %v2269 = vmul.f32 %v2241, 1.442695
        %v2270 = vpow.pop %v2269
        %v2271 = vmul.f32 %v2242, 1.442695
        %v2272 = vpow.pop %v2271
        %v2273 = vmul.f32 %v2243, 1.442695
        %v2274 = vpow.pop %v2273
        %v2275 = vmul.f32 %v2244, 1.442695
        %v2276 = vpow.pop %v2275
        %v2277 = vadd.f32 %v2181, %v2246
        %v2278 = vadd.f32 %v2182, %v2248
        %v2279 = vadd.f32 %v2183, %v2250
        %v2280 = vadd.f32 %v2184, %v2252
        %v2281 = vadd.f32 %v2185, %v2254
        %v2282 = vadd.f32 %v2186, %v2256
        %v2283 = vadd.f32 %v2187, %v2258
        %v2284 = vadd.f32 %v2188, %v2260
        %v2285 = vadd.f32 %v2189, %v2262
        %v2286 = vadd.f32 %v2190, %v2264
        %v2287 = vadd.f32 %v2191, %v2266
        %v2288 = vadd.f32 %v2192, %v2268
        %v2289 = vadd.f32 %v2193, %v2270
        %v2290 = vadd.f32 %v2194, %v2272
        %v2291 = vadd.f32 %v2195, %v2274
        %v2292 = vadd.f32 %v2196, %v2276
        %v2293 = vmul.f32 %v2246, %v1029
        %v2294 = vmul.f32 %v2248, %v1028
        %v2295 = vmul.f32 %v2250, %v1027
        %v2296 = vmul.f32 %v2252, %v1026
        %v2297 = vmul.f32 %v2254, %v1025
        %v2298 = vmul.f32 %v2256, %v1024
        %v2299 = vmul.f32 %v2258, %v1023
        %v2300 = vmul.f32 %v2260, %v1022
        %v2301 = vmul.f32 %v2262, %v1021
        %v2302 = vmul.f32 %v2264, %v1020
        %v2303 = vmul.f32 %v2266, %v1019
        %v2304 = vmul.f32 %v2268, %v1018
        %v2305 = vmul.f32 %v2270, %v1017
        %v2306 = vmul.f32 %v2272, %v1016
        %v2307 = vmul.f32 %v2274, %v1015
        %v2308 = vmul.f32 %v2276, %v1014
        %v2309 = vadd.f32 %v2213, %v2293
        %v2310 = vadd.f32 %v2214, %v2294
        %v2311 = vadd.f32 %v2215, %v2295
        %v2312 = vadd.f32 %v2216, %v2296
        %v2313 = vadd.f32 %v2217, %v2297
        %v2314 = vadd.f32 %v2218, %v2298
        %v2315 = vadd.f32 %v2219, %v2299
        %v2316 = vadd.f32 %v2220, %v2300
        %v2317 = vadd.f32 %v2221, %v2301
        %v2318 = vadd.f32 %v2222, %v2302
        %v2319 = vadd.f32 %v2223, %v2303
        %v2320 = vadd.f32 %v2224, %v2304
        %v2321 = vadd.f32 %v2225, %v2305
        %v2322 = vadd.f32 %v2226, %v2306
        %v2323 = vadd.f32 %v2227, %v2307
        %v2324 = vadd.f32 %v2228, %v2308
        %v2325 = vrcp.pop %v2277
        %v2326 = vrcp.pop %v2278
        %v2327 = vrcp.pop %v2279
        %v2328 = vrcp.pop %v2280
        %v2329 = vrcp.pop %v2281
        %v2330 = vrcp.pop %v2282
        %v2331 = vrcp.pop %v2283
        %v2332 = vrcp.pop %v2284
        %v2333 = vrcp.pop %v2285
        %v2334 = vrcp.pop %v2286
        %v2335 = vrcp.pop %v2287
        %v2336 = vrcp.pop %v2288
        %v2337 = vrcp.pop %v2289
        %v2338 = vrcp.pop %v2290
        %v2339 = vrcp.pop %v2291
        %v2340 = vrcp.pop %v2292
        %v2341 = vmul.f32 %v2277, %v2325
        %v2342 = vmul.f32 %v2278, %v2326
        %v2343 = vmul.f32 %v2279, %v2327
        %v2344 = vmul.f32 %v2280, %v2328
        %v2345 = vmul.f32 %v2281, %v2329
        %v2346 = vmul.f32 %v2282, %v2330
        %v2347 = vmul.f32 %v2283, %v2331
        %v2348 = vmul.f32 %v2284, %v2332
        %v2349 = vmul.f32 %v2285, %v2333
        %v2350 = vmul.f32 %v2286, %v2334
        %v2351 = vmul.f32 %v2287, %v2335
        %v2352 = vmul.f32 %v2288, %v2336
        %v2353 = vmul.f32 %v2289, %v2337
        %v2354 = vmul.f32 %v2290, %v2338
        %v2355 = vmul.f32 %v2291, %v2339
        %v2356 = vmul.f32 %v2292, %v2340
        %v2357 = vsub.f32 2.0, %v2341
        %v2358 = vsub.f32 2.0, %v2342
        %v2359 = vsub.f32 2.0, %v2343
        %v2360 = vsub.f32 2.0, %v2344
        %v2361 = vsub.f32 2.0, %v2345
        %v2362 = vsub.f32 2.0, %v2346
        %v2363 = vsub.f32 2.0, %v2347
        %v2364 = vsub.f32 2.0, %v2348
        %v2365 = vsub.f32 2.0, %v2349
        %v2366 = vsub.f32 2.0, %v2350
        %v2367 = vsub.f32 2.0, %v2351
        %v2368 = vsub.f32 2.0, %v2352
        %v2369 = vsub.f32 2.0, %v2353
        %v2370 = vsub.f32 2.0, %v2354
        %v2371 = vsub.f32 2.0, %v2355
        %v2372 = vsub.f32 2.0, %v2356
        %v2373 = vmul.f32 %v2325, %v2357
        %v2374 = vmul.f32 %v2326, %v2358
        %v2375 = vmul.f32 %v2327, %v2359
        %v2376 = vmul.f32 %v2328, %v2360
        %v2377 = vmul.f32 %v2329, %v2361
        %v2378 = vmul.f32 %v2330, %v2362
        %v2379 = vmul.f32 %v2331, %v2363
        %v2380 = vmul.f32 %v2332, %v2364
        %v2381 = vmul.f32 %v2333, %v2365
        %v2382 = vmul.f32 %v2334, %v2366
        %v2383 = vmul.f32 %v2335, %v2367
        %v2384 = vmul.f32 %v2336, %v2368
        %v2385 = vmul.f32 %v2337, %v2369
        %v2386 = vmul.f32 %v2338, %v2370
        %v2387 = vmul.f32 %v2339, %v2371
        %v2388 = vmul.f32 %v2340, %v2372
        %v2389 = vmul.f32 %v2309, %v2373
        %v2390 = vmul.f32 %v2310, %v2374
        %v2391 = vmul.f32 %v2311, %v2375
        %v2392 = vmul.f32 %v2312, %v2376
        %v2393 = vmul.f32 %v2313, %v2377
        %v2394 = vmul.f32 %v2314, %v2378
        %v2395 = vmul.f32 %v2315, %v2379
        %v2396 = vmul.f32 %v2316, %v2380
        %v2397 = vmul.f32 %v2317, %v2381
        %v2398 = vmul.f32 %v2318, %v2382
        %v2399 = vmul.f32 %v2319, %v2383
        %v2400 = vmul.f32 %v2320, %v2384
        %v2401 = vmul.f32 %v2321, %v2385
        %v2402 = vmul.f32 %v2322, %v2386
        %v2403 = vmul.f32 %v2323, %v2387
        %v2404 = vmul.f32 %v2324, %v2388
        %2405 = vst [vmem:[%s331] sm:$0xff] %v2389
        %2406 = vst [vmem:[%s331 + $0x8] sm:$0xff] %v2390
        %2407 = vst [vmem:[%s331 + $0x10] sm:$0xff] %v2391
        %2408 = vst [vmem:[%s331 + $0x18] sm:$0xff] %v2392
        %2409 = vst [vmem:[%s331 + $0x20] sm:$0xff] %v2393
        %2410 = vst [vmem:[%s331 + $0x28] sm:$0xff] %v2394
        %2411 = vst [vmem:[%s331 + $0x30] sm:$0xff] %v2395
        %2412 = vst [vmem:[%s331 + $0x38] sm:$0xff] %v2396
        %2413 = vst [vmem:[%s331 + $0x40] sm:$0xff] %v2397
        %2414 = vst [vmem:[%s331 + $0x48] sm:$0xff] %v2398
        %2415 = vst [vmem:[%s331 + $0x50] sm:$0xff] %v2399
        %2416 = vst [vmem:[%s331 + $0x58] sm:$0xff] %v2400
        %2417 = vst [vmem:[%s331 + $0x60] sm:$0xff] %v2401
        %2418 = vst [vmem:[%s331 + $0x68] sm:$0xff] %v2402
        %2419 = vst [vmem:[%s331 + $0x70] sm:$0xff] %v2403
        %2420 = vst [vmem:[%s331 + $0x78] sm:$0xff] %v2404
        %s2421 = sand.u32 %s149, 1
        %s2422 = scalar_lea.sflag [#allocation4], %s2421
        %s2423 = sand.u32 %s149, 1
        %s2424 = smul.addr %s2423, 128
        %s2425 = scalar_lea.vmem [#allocation10], %s2424
        // Predicated region
        $region53: #{tpu_custom_call.1} parent=35 // pred_check
          %p2426 = pneg %p159
        $region54: #{tpu_custom_call.1} parent=35 // pred_check_branch
          %2428 = sbr.rel (%p2426) target = $region56
        $region55: #{tpu_custom_call.1} parent=35 // pred_region
          %s2429 = smul.u32 8, %s30
          %2431 = vsyncadd %s2422, 0
          %s2432 = smul.addr %s2429, 2
          %s2433 = smul.addr %s29, 32
          %s2434 = sadd.s32 %s2432, %s2433
          %s2435 = smul.addr %s2434, 8
          %s2436 = scalar_lea.hbm %s4, %s2435
          %s2437 = sshll.u32 %s2425, 4
          %s2438 = int_to_ptr.vmem [resolvable:$true] %s2437
          %s2439 = sshll.u32 %s2436, 4
          %s2440 = int_to_ptr.hbm [resolvable:$true] %s2439
          %2445 = dma.vmem_to_hbm [thread:$0]  %s2438, 2048, %s2440, %s2422, 128, 128, 8
        $region56: #{tpu_custom_call.1} parent=35 // pred_fallthru
          _
      $region36: #{tpu_custom_call.1} parent=5 // pred_fallthru
        _
      %p2446 = scmp.le.s32.totalorder 2, %s20
      // Predicated region
      $region57: #{tpu_custom_call.1} parent=5 // pred_check
        %p2447 = pneg %p2446
      $region58: #{tpu_custom_call.1} parent=5 // pred_check_branch
        %2449 = sbr.rel (%p2447) target = $region60
      $region59: #{tpu_custom_call.1} parent=5 // pred_region
        %s2450 = ssub.s32 %s20, 2
        // Predicated region
        $region61: #{tpu_custom_call.1} parent=59 // pred_check
          %p2451 = pneg %p165
        $region62: #{tpu_custom_call.1} parent=59 // pred_check_branch
          %2453 = sbr.rel (%p2451) target = $region64
        $region63: #{tpu_custom_call.1} parent=59 // pred_region
          %s2454 = sand.u32 %s150, 1
          %s2455 = scalar_lea.sflag [#allocation4], %s2454
          %s2456 = sand.u32 %s150, 1
          %s2457 = smul.addr %s2456, 128
          %s2458 = scalar_lea.vmem [#allocation10], %s2457
          %2460 = dma.done %s2455, 2048
        $region64: #{tpu_custom_call.1} parent=59 // pred_fallthru
          _
      $region60: #{tpu_custom_call.1} parent=5 // pred_fallthru
        _
    $region6: #{tpu_custom_call.1} parent=1 // loop_footer
      %s24 = sadd.s32 1, %s20
    $region7: #{tpu_custom_call.1} parent=1 // loop_footer_branch
      %19 = sbr.rel target = $region3
    $region8: #{tpu_custom_call.1} parent=1 // loop_exit
      _
    %2461 = vsyncpa [#allocation3], 1
    %s2462 = scalar_lea.sflag [#allocation3], 1
    %2463 = vsyncpa %s2462, 1
    %2464 = vsyncpa [#allocation6], 1
    %s2465 = scalar_lea.sflag [#allocation6], 1
    %2466 = vsyncpa %s2465, 1
    %2467 = vsyncpa [#allocation9], 1
    %2468 = vsyncpa [#allocation4], 1
    %s2469 = scalar_lea.sflag [#allocation4], 1
    %2470 = vsyncpa %s2469, 1

// kernel: tpu_custom_call.1
$region0: #{tpu_custom_call.1}
  #allocation0 [shape = 'u32[]', space=smem, size = 0x4, offset = 0x4, fixed_abs, tag = 'smem constant byte address 0x4 - core index']
  #allocation1 [shape = 'u32[72,128]{1,0:T(1,128)}', space=vmem, size = 0x9000, scoped, tag = 'internal scratch']
  %s0 = inlined_call_operand.hbm [shape: f32[2,18,24,32], index: 0, kind: input, shape index: {}]
  %s1 = inlined_call_operand.hbm [shape: f32[2,18,24,32], index: 1, kind: input, shape index: {}]
  %s2 = inlined_call_operand.hbm [shape: f32[32,384], index: 2, kind: input, shape index: {}]
  %s3 = inlined_call_operand.hbm [shape: f32[9,128], index: 3, kind: input, shape index: {}]
  %s4 = inlined_call_operand.hbm [shape: f32[2,16,16,128], index: 4, kind: output, shape index: {}]
  %s5 = sld [smem:[#allocation0]]
  $region65: #{tpu_custom_call.1} parent=0
    _
  %s7 = ssub.s32 1, %s5
  %s8 = scalar_select 0, %s7, %s5
  $region1: #{tpu_custom_call.1} parent=0
    #allocation2 [shape = 'u8[196608]{0}', space=vmem, size = 0x30000, scoped, tag = 'input window, operand 0']
    #allocation3 [shape = 's32[2]{0}', space=sflag, size = 0x8, scoped, tag = 'scoped memory for tpu_custom_call.1']
    #allocation4 [shape = 's32[2]{0}', space=sflag, size = 0x8, scoped, tag = 'scoped memory for tpu_custom_call.1']
    #allocation5 [shape = 'u8[49152]{0}', space=vmem, size = 0xc000, scoped, tag = 'input window, operand 1']
    #allocation6 [shape = 's32[2]{0}', space=sflag, size = 0x8, scoped, tag = 'scoped memory for tpu_custom_call.1']
    #allocation7 [shape = 'u8[49152]{0}', space=vmem, size = 0xc000, scoped, tag = 'input window, operand 2, single buffered']
    #allocation8 [shape = 'u8[8192]{0}', space=vmem, size = 0x2000, scoped, tag = 'input window, operand 3, single buffered']
    #allocation9 [shape = 's32[1]{0}', space=sflag, size = 0x4, scoped, tag = 'scoped memory for tpu_custom_call.1']
    #allocation10 [shape = 'u8[131072]{0}', space=vmem, size = 0x20000, scoped, tag = 'output window, operand 0']
    %9 = vsyncpa [#allocation3], 0
    %s10 = scalar_lea.sflag [#allocation3], 1
    %11 = vsyncpa %s10, 0
    %12 = vsyncpa [#allocation6], 0
    %s13 = scalar_lea.sflag [#allocation6], 1
    %14 = vsyncpa %s13, 0
    %15 = vsyncpa [#allocation9], 0
    %16 = vsyncpa [#allocation4], 0
    %s17 = scalar_lea.sflag [#allocation4], 1
    %18 = vsyncpa %s17, 0
    loop: start=0, step=1, limit=6
    $region2: #{tpu_custom_call.1} parent=1 // loop_pre_header
      _
    $region3: #{tpu_custom_call.1} parent=1 // loop_header
      %s20 = sphi 0, %s24
      %p21 = scmp.ge.s32.totalorder %s20, 6
      %s27 = sphi 0, %s39
      %s28 = sphi 0, %s35
      %s29 = sphi 0, %s27
      %s30 = sphi 0, %s28
      %s31 = sphi 0, %s29
      %s32 = sphi 0, %s30
      %s44 = sphi 0, %s46
      %s47 = sphi 0, %s44
      %s48 = sphi 0, %s47
      %s64 = sphi 0, %s48
      %s76 = sphi 0, %s78
      %s79 = sphi 0, %s76
      %s80 = sphi 0, %s79
      %s96 = sphi 0, %s80
      %s100 = sphi 0, %s100
      %s102 = sphi 0, %s100
      %s103 = sphi 0, %s102
      %s117 = sphi 0, %s103
      %s121 = sphi 0, %s121
      %s123 = sphi 0, %s121
      %s124 = sphi 0, %s123
      %s138 = sphi 0, %s124
      %s146 = sphi 0, %s148
      %s149 = sphi 0, %s146
      %s150 = sphi 0, %s149
      %s166 = sphi 0, %s150
    $region4: #{tpu_custom_call.1} parent=1 // loop_header_branch
      %23 = sbr.rel (%p21) target = $region8
    $region5: #{tpu_custom_call.1} parent=1 // loop_body
      %s25 = ssub.s32 %s20, 1
      %s26 = ssub.s32 %s20, 2
      %s33 = sadd.s32 1, %s28
      %p34 = scmp.ge.s32.totalorder %s33, 2
      %s35 = scalar_select %p34, 0, %s33
      %s36 = sadd.s32 1, %s27
      %s37 = scalar_select %p34, %s36, %s27
      %p38 = scmp.ge.s32.totalorder %s37, 2
      %s39 = scalar_select %p38, 0, %s37
      %s40 = ssub.s32 %s27, %s39
      %s41 = ssub.s32 %s28, %s35
      %s42 = sor.u32 %s40, %s41
      %p43 = scmp.eq.s32.totalorder %s42, 0
      %s45 = sadd.s32 %s44, 1
      %s46 = scalar_select %p43, %s44, %s45
      %p49 = pneg %p43
      %p50 = scmp.eq.s32.totalorder %s20, 3
      %p51 = por %p49, %p50
      %p52 = scmp.ne.s32.totalorder %s44, %s47
      %p53 = scmp.eq.s32.totalorder %s20, 0
      %p54 = por %p52, %p53
      %p55 = scmp.ne.s32.totalorder %s44, %s47
      %p56 = scmp.eq.s32.totalorder %s25, 3
      %p57 = por %p55, %p56
      %p58 = scmp.ne.s32.totalorder %s47, %s48
      %p59 = scmp.eq.s32.totalorder %s25, 0
      %p60 = por %p58, %p59
      %p61 = scmp.ne.s32.totalorder %s47, %s48
      %p62 = scmp.eq.s32.totalorder %s26, 3
      %p63 = por %p61, %p62
      %p65 = scmp.ne.s32.totalorder %s48, %s64
      %p66 = scmp.eq.s32.totalorder %s26, 0
      %p67 = por %p65, %p66
      %s68 = sadd.s32 %s28, 1
      %s69 = smul.u32 %s68, 4
      %s70 = sadd.s32 %s35, 1
      %s71 = smul.u32 %s70, 4
      %s72 = ssub.s32 %s27, %s39
      %s73 = ssub.s32 %s69, %s71
      %s74 = sor.u32 %s72, %s73
      %p75 = scmp.eq.s32.totalorder %s74, 0
      %s77 = sadd.s32 %s76, 1
      %s78 = scalar_select %p75, %s76, %s77
      %p81 = pneg %p75
      %p82 = scmp.eq.s32.totalorder %s20, 3
      %p83 = por %p81, %p82
      %p84 = scmp.ne.s32.totalorder %s76, %s79
      %p85 = scmp.eq.s32.totalorder %s20, 0
      %p86 = por %p84, %p85
      %p87 = scmp.ne.s32.totalorder %s76, %s79
      %p88 = scmp.eq.s32.totalorder %s25, 3
      %p89 = por %p87, %p88
      %p90 = scmp.ne.s32.totalorder %s79, %s80
      %p91 = scmp.eq.s32.totalorder %s25, 0
      %p92 = por %p90, %p91
      %p93 = scmp.ne.s32.totalorder %s79, %s80
      %p94 = scmp.eq.s32.totalorder %s26, 3
      %p95 = por %p93, %p94
      %p97 = scmp.ne.s32.totalorder %s80, %s96
      %p98 = scmp.eq.s32.totalorder %s26, 0
      %p99 = por %p97, %p98
      %s101 = sadd.s32 %s100, 1
      %p104 = scmp.eq.s32.totalorder %s20, 3
      %p105 = scmp.ne.s32.totalorder %s100, %s102
      %p106 = scmp.eq.s32.totalorder %s20, 0
      %p107 = por %p105, %p106
      %p108 = scmp.ne.s32.totalorder %s100, %s102
      %p109 = scmp.eq.s32.totalorder %s25, 3
      %p110 = por %p108, %p109
      %p111 = scmp.ne.s32.totalorder %s102, %s103
      %p112 = scmp.eq.s32.totalorder %s25, 0
      %p113 = por %p111, %p112
      %p114 = scmp.ne.s32.totalorder %s102, %s103
      %p115 = scmp.eq.s32.totalorder %s26, 3
      %p116 = por %p114, %p115
      %p118 = scmp.ne.s32.totalorder %s103, %s117
      %p119 = scmp.eq.s32.totalorder %s26, 0
      %p120 = por %p118, %p119
      %s122 = sadd.s32 %s121, 1
      %p125 = scmp.eq.s32.totalorder %s20, 3
      %p126 = scmp.ne.s32.totalorder %s121, %s123
      %p127 = scmp.eq.s32.totalorder %s20, 0
      %p128 = por %p126, %p127
      %p129 = scmp.ne.s32.totalorder %s121, %s123
      %p130 = scmp.eq.s32.totalorder %s25, 3
      %p131 = por %p129, %p130
      %p132 = scmp.ne.s32.totalorder %s123, %s124
      %p133 = scmp.eq.s32.totalorder %s25, 0
      %p134 = por %p132, %p133
      %p135 = scmp.ne.s32.totalorder %s123, %s124
      %p136 = scmp.eq.s32.totalorder %s26, 3
      %p137 = por %p135, %p136
      %p139 = scmp.ne.s32.totalorder %s124, %s138
      %p140 = scmp.eq.s32.totalorder %s26, 0
      %p141 = por %p139, %p140
      %s142 = ssub.s32 %s27, %s39
      %s143 = ssub.s32 %s28, %s35
      %s144 = sor.u32 %s142, %s143
      %p145 = scmp.eq.s32.totalorder %s144, 0
      %s147 = sadd.s32 %s146, 1
      %s148 = scalar_select %p145, %s146, %s147
      %p151 = pneg %p145
      %p152 = scmp.eq.s32.totalorder %s20, 3
      %p153 = por %p151, %p152
      %p154 = scmp.ne.s32.totalorder %s146, %s149
      %p155 = scmp.eq.s32.totalorder %s20, 0
      %p156 = por %p154, %p155
      %p157 = scmp.ne.s32.totalorder %s146, %s149
      %p158 = scmp.eq.s32.totalorder %s25, 3
      %p159 = por %p157, %p158
      %p160 = scmp.ne.s32.totalorder %s149, %s150
      %p161 = scmp.eq.s32.totalorder %s25, 0
      %p162 = por %p160, %p161
      %p163 = scmp.ne.s32.totalorder %s149, %s150
      %p164 = scmp.eq.s32.totalorder %s26, 3
      %p165 = por %p163, %p164
      %p167 = scmp.ne.s32.totalorder %s150, %s166
      %p168 = scmp.eq.s32.totalorder %s26, 0
      %p169 = por %p167, %p168
      %p170 = scmp.le.s32.totalorder 1, %s20
      %p171 = scmp.lt.s32.totalorder %s20, 5
      %p172 = pnand %p170, %p171
      %p173 = pneg %p172
      // Predicated region
      $region9: #{tpu_custom_call.1} parent=5 // pred_check
        _
      $region10: #{tpu_custom_call.1} parent=5 // pred_check_branch
        %175 = sbr.rel (%p172) target = $region12
      $region11: #{tpu_custom_call.1} parent=5 // pred_region
        %s176 = ssub.s32 %s20, 1
        // Predicated region
        $region13: #{tpu_custom_call.1} parent=11 // pred_check
          %p177 = pneg %p113
        $region14: #{tpu_custom_call.1} parent=11 // pred_check_branch
          %179 = sbr.rel (%p177) target = $region16
        $region15: #{tpu_custom_call.1} parent=11 // pred_region
          %181 = vsyncadd [#allocation6], 0
          %s182 = sshll.u32 %s2, 4
          %s183 = int_to_ptr.hbm [resolvable:$true] %s182
          %s184 = sshll.u32 [#allocation7], 4
          %s185 = int_to_ptr.vmem [resolvable:$true] %s184
          %190 = dma.hbm_to_vmem [thread:$0]  %s183, 1536, %s185, [#allocation6], 384, 384, 24
        $region16: #{tpu_custom_call.1} parent=11 // pred_fallthru
          _
        // Predicated region
        $region17: #{tpu_custom_call.1} parent=11 // pred_check
          %p191 = pneg %p134
        $region18: #{tpu_custom_call.1} parent=11 // pred_check_branch
          %193 = sbr.rel (%p191) target = $region20
        $region19: #{tpu_custom_call.1} parent=11 // pred_region
          %195 = vsyncadd [#allocation9], 0
          %s196 = sshll.u32 %s3, 4
          %s197 = int_to_ptr.hbm [resolvable:$true] %s196
          %s198 = sshll.u32 [#allocation8], 4
          %s199 = int_to_ptr.vmem [resolvable:$true] %s198
          %204 = dma.hbm_to_vmem [thread:$0]  %s197, 256, %s199, [#allocation9], 128, 128, 8
        $region20: #{tpu_custom_call.1} parent=11 // pred_fallthru
          _
      $region12: #{tpu_custom_call.1} parent=5 // pred_fallthru
        _
      %p205 = scmp.lt.s32.totalorder %s20, 4
      // Predicated region
      $region21: #{tpu_custom_call.1} parent=5 // pred_check
        %p206 = pneg %p205
      $region22: #{tpu_custom_call.1} parent=5 // pred_check_branch
        %208 = sbr.rel (%p206) target = $region24
      $region23: #{tpu_custom_call.1} parent=5 // pred_region
        // Predicated region
        $region25: #{tpu_custom_call.1} parent=23 // pred_check
          %p209 = pneg %p54
        $region26: #{tpu_custom_call.1} parent=23 // pred_check_branch
          %211 = sbr.rel (%p209) target = $region28
        $region27: #{tpu_custom_call.1} parent=23 // pred_region
          %s212 = sand.u32 %s44, 1
          %s213 = scalar_lea.sflag [#allocation3], %s212
          %s214 = sand.u32 %s44, 1
          %s215 = smul.addr %s214, 192
          %s216 = scalar_lea.vmem [#allocation2], %s215
          %s217 = smul.u32 8, %s28
          %s218 = ssub.s32 18, %s217
          %p219 = scmp.lt.s32.totalorder %s218, 8
          %s220 = scalar_select %p219, %s218, 8
          %s221 = smul.u32 8, %s220
          %s222 = smul.u32 %s221, 3
          %s223 = ssub.s32 192, %s222
          %s224 = sshll.u32 %s223, 4
          %225 = vsyncadd %s213, %s224
          %p226 = scmp.ne.s32.totalorder 0, %s222
          %s227 = smul.addr %s217, 3
          %s228 = smul.addr %s27, 54
          %s229 = sadd.s32 %s227, %s228
          %s230 = smul.addr %s229, 8
          %s231 = scalar_lea.hbm %s0, %s230
          %s232 = smul.u32 %s220, 3
          %s233 = smul.u32 8, %s232
          %s234 = sshll.u32 %s231, 4
          %s235 = int_to_ptr.hbm [resolvable:$true] %s234
          %s236 = sshll.u32 %s216, 4
          %s237 = int_to_ptr.vmem [resolvable:$true] %s236
          %s238 = sshll.u32 %s233, 4
          %242 = dma.hbm_to_vmem [thread:$0]  (%p226), %s235, %s238, %s237, %s213, 128, 128, 8
        $region28: #{tpu_custom_call.1} parent=23 // pred_fallthru
          _
        // Predicated region
        $region29: #{tpu_custom_call.1} parent=23 // pred_check
          %p243 = pneg %p86
        $region30: #{tpu_custom_call.1} parent=23 // pred_check_branch
          %245 = sbr.rel (%p243) target = $region32
        $region31: #{tpu_custom_call.1} parent=23 // pred_region
          %s246 = sand.u32 %s20, 1
          %s247 = scalar_lea.sflag [#allocation6], %s246
          %s248 = sand.u32 %s76, 1
          %s249 = smul.addr %s248, 48
          %s250 = scalar_lea.vmem [#allocation5], %s249
          %s251 = sadd.s32 %s28, 1
          %s252 = smul.u32 %s251, 4
          %s253 = smul.u32 2, %s252
          %255 = vsyncadd %s247, 0
          %s256 = smul.addr %s253, 3
          %s257 = smul.addr %s27, 54
          %s258 = sadd.s32 %s256, %s257
          %s259 = smul.addr %s258, 8
          %s260 = scalar_lea.hbm %s1, %s259
          %s261 = sshll.u32 %s260, 4
          %s262 = int_to_ptr.hbm [resolvable:$true] %s261
          %s263 = sshll.u32 %s250, 4
          %s264 = int_to_ptr.vmem [resolvable:$true] %s263
          %269 = dma.hbm_to_vmem [thread:$0]  %s262, 768, %s264, %s247, 128, 128, 8
        $region32: #{tpu_custom_call.1} parent=23 // pred_fallthru
          _
      $region24: #{tpu_custom_call.1} parent=5 // pred_fallthru
        _
      %p270 = scmp.le.s32.totalorder 1, %s20
      %p271 = scmp.lt.s32.totalorder %s20, 5
      %p272 = pnand %p270, %p271
      %p273 = pneg %p272
      // Predicated region
      $region33: #{tpu_custom_call.1} parent=5 // pred_check
        _
      $region34: #{tpu_custom_call.1} parent=5 // pred_check_branch
        %275 = sbr.rel (%p272) target = $region36
      $region35: #{tpu_custom_call.1} parent=5 // pred_region
        %s276 = ssub.s32 %s20, 1
        %s277 = sand.u32 %s47, 1
        %s278 = scalar_lea.sflag [#allocation3], %s277
        %s279 = sand.u32 %s47, 1
        %s280 = smul.addr %s279, 192
        %s281 = scalar_lea.vmem [#allocation2], %s280
        // Predicated region
        $region37: #{tpu_custom_call.1} parent=35 // pred_check
          %p282 = pneg %p60
        $region38: #{tpu_custom_call.1} parent=35 // pred_check_branch
          %284 = sbr.rel (%p282) target = $region40
        $region39: #{tpu_custom_call.1} parent=35 // pred_region
          %286 = dma.done %s278, 3072
        $region40: #{tpu_custom_call.1} parent=35 // pred_fallthru
          _
        %s287 = sand.u32 %s25, 1
        %s288 = scalar_lea.sflag [#allocation6], %s287
        %s289 = sand.u32 %s79, 1
        %s290 = smul.addr %s289, 48
        %s291 = scalar_lea.vmem [#allocation5], %s290
        // Predicated region
        $region41: #{tpu_custom_call.1} parent=35 // pred_check
          %p292 = pneg %p92
        $region42: #{tpu_custom_call.1} parent=35 // pred_check_branch
          %294 = sbr.rel (%p292) target = $region44
        $region43: #{tpu_custom_call.1} parent=35 // pred_region
          %296 = dma.done %s288, 768
        $region44: #{tpu_custom_call.1} parent=35 // pred_fallthru
          _
        // Predicated region
        $region45: #{tpu_custom_call.1} parent=35 // pred_check
          %p297 = pneg %p113
        $region46: #{tpu_custom_call.1} parent=35 // pred_check_branch
          %299 = sbr.rel (%p297) target = $region48
        $region47: #{tpu_custom_call.1} parent=35 // pred_region
          %301 = dma.done [#allocation6], 1536
        $region48: #{tpu_custom_call.1} parent=35 // pred_fallthru
          _
        // Predicated region
        $region49: #{tpu_custom_call.1} parent=35 // pred_check
          %p302 = pneg %p134
        $region50: #{tpu_custom_call.1} parent=35 // pred_check_branch
          %304 = sbr.rel (%p302) target = $region52
        $region51: #{tpu_custom_call.1} parent=35 // pred_region
          %306 = dma.done [#allocation9], 256
        $region52: #{tpu_custom_call.1} parent=35 // pred_fallthru
          _
        %s307 = sand.u32 %s47, 1
        %s308 = scalar_lea.sflag [#allocation3], %s307
        %s309 = sand.u32 %s47, 1
        %s310 = smul.addr %s309, 192
        %s311 = scalar_lea.vmem [#allocation2], %s310
        %p312 = pneg %p60
        %p313 = pneg %p57
        %s314 = sand.u32 %s25, 1
        %s315 = scalar_lea.sflag [#allocation6], %s314
        %s316 = sand.u32 %s79, 1
        %s317 = smul.addr %s316, 48
        %s318 = scalar_lea.vmem [#allocation5], %s317
        %p319 = pneg %p92
        %p320 = pneg %p89
        %p321 = pneg %p113
        %p322 = pneg %p110
        %p323 = pneg %p134
        %p324 = pneg %p131
        %p325 = pneg %p162
        %p326 = pneg %p159
        %s327 = sand.u32 %s149, 1
        %s328 = scalar_lea.sflag [#allocation4], %s327
        %s329 = sand.u32 %s149, 1
        %s330 = smul.addr %s329, 128
        %s331 = scalar_lea.vmem [#allocation10], %s330
        %s332 = smul.u32 8, %s30
        %s333 = ssub.s32 18, %s332
        %p334 = scmp.lt.s32.totalorder %s333, 8
        %s335 = scalar_select %p334, %s333, 8
        %s336 = smul.u32 8, %s335
        %s337 = smul.u32 %s336, 3
        %s338 = sadd.s32 %s30, 1
        %s339 = smul.u32 %s338, 4
        %s340 = smul.u32 2, %s339
        %s341 = smul.u32 8, %s30
        %v342 = vld [vmem:[%s281] sm:$0xff]
        %v343 = vld [vmem:[%s281 + $0x8] sm:$0xff]
        %v344 = vld [vmem:[%s281 + $0x10] sm:$0xff]
        %v345 = vld [vmem:[%s281 + $0x18] sm:$0xff]
        %v346 = vld [vmem:[%s281 + $0x20] sm:$0xff]
        %v347 = vld [vmem:[%s281 + $0x28] sm:$0xff]
        %v348 = vld [vmem:[%s281 + $0x30] sm:$0xff]
        %v349 = vld [vmem:[%s281 + $0x38] sm:$0xff]
        %v350 = vld [vmem:[%s281 + $0x40] sm:$0xff]
        %v351 = vld [vmem:[%s281 + $0x48] sm:$0xff]
        %v352 = vld [vmem:[%s281 + $0x50] sm:$0xff]
        %v353 = vld [vmem:[%s281 + $0x58] sm:$0xff]
        %v354 = vld [vmem:[%s281 + $0x60] sm:$0xff]
        %v355 = vld [vmem:[%s281 + $0x68] sm:$0xff]
        %v356 = vld [vmem:[%s281 + $0x70] sm:$0xff]
        %v357 = vld [vmem:[%s281 + $0x78] sm:$0xff]
        %v358 = vld [vmem:[%s281 + $0x80] sm:$0xff]
        %v359 = vld [vmem:[%s281 + $0x88] sm:$0xff]
        %v360 = vld [vmem:[%s281 + $0x90] sm:$0xff]
        %v361 = vld [vmem:[%s281 + $0x98] sm:$0xff]
        %v362 = vld [vmem:[%s281 + $0xa0] sm:$0xff]
        %v363 = vld [vmem:[%s281 + $0xa8] sm:$0xff]
        %v364 = vld [vmem:[%s281 + $0xb0] sm:$0xff]
        %v365 = vld [vmem:[%s281 + $0xb8] sm:$0xff]
        %v366 = vld [vmem:[%s291] sm:$0xff]
        %v367 = vld [vmem:[%s291 + $0x8] sm:$0xff]
        %v368 = vld [vmem:[%s291 + $0x10] sm:$0xff]
        %v369 = vld [vmem:[%s291 + $0x18] sm:$0xff]
        %v370 = vld [vmem:[%s291 + $0x20] sm:$0xff]
        %v371 = vld [vmem:[%s291 + $0x28] sm:$0xff]
        %v372 = vld [vmem:[#allocation7] sm:$0xff]
        %v373 = vld [vmem:[#allocation7 + $0x8] sm:$0xff]
        %v374 = vld [vmem:[#allocation7 + $0x10] sm:$0xff]
        %v375 = vld [vmem:[#allocation7 + $0x18] sm:$0xff]
        %v376 = vld [vmem:[#allocation7 + $0x20] sm:$0xff]
        %v377 = vld [vmem:[#allocation7 + $0x28] sm:$0xff]
        %v378 = vld [vmem:[#allocation7 + $0x30] sm:$0xff]
        %v379 = vld [vmem:[#allocation7 + $0x38] sm:$0xff]
        %v380 = vld [vmem:[#allocation7 + $0x40] sm:$0xff]
        %v381 = vld [vmem:[#allocation7 + $0x48] sm:$0xff]
        %v382 = vld [vmem:[#allocation7 + $0x50] sm:$0xff]
        %v383 = vld [vmem:[#allocation7 + $0x58] sm:$0xff]
        %vm384 = vcmask 261120
        %v386 = vsel %vm384, %v342, 0
        %v389 = vsel %vm384, %v343, 0
        %v392 = vsel %vm384, %v344, 0
        %v395 = vsel %vm384, %v345, 0
        %v398 = vsel %vm384, %v346, 0
        %v401 = vsel %vm384, %v347, 0
        %v404 = vsel %vm384, %v348, 0
        %v407 = vsel %vm384, %v349, 0
        %v410 = vsel %vm384, %v350, 0
        %v413 = vsel %vm384, %v351, 0
        %v416 = vsel %vm384, %v352, 0
        %v419 = vsel %vm384, %v353, 0
        %v422 = vsel %vm384, %v354, 0
        %v425 = vsel %vm384, %v355, 0
        %v428 = vsel %vm384, %v356, 0
        %v431 = vsel %vm384, %v357, 0
        %v434 = vsel %vm384, %v358, 0
        %v437 = vsel %vm384, %v359, 0
        %v440 = vsel %vm384, %v360, 0
        %v443 = vsel %vm384, %v361, 0
        %v446 = vsel %vm384, %v362, 0
        %v449 = vsel %vm384, %v363, 0
        %v452 = vsel %vm384, %v364, 0
        %v455 = vsel %vm384, %v365, 0
        %v458 = vsel %vm384, %v366, 0
        %v461 = vsel %vm384, %v367, 0
        %v464 = vsel %vm384, %v368, 0
        %v467 = vsel %vm384, %v369, 0
        %v470 = vsel %vm384, %v370, 0
        %v473 = vsel %vm384, %v371, 0
        %475 = vmatpush.msra.mxu0 0.0
        %476 = vmatpush.msra.mxu0 0.0
        %477 = vmatpush.msra.mxu0 0.0
        %478 = vmatpush.msra.mxu0 0.0
        %479 = vmatpush.msra.mxu0 0.0
        %480 = vmatpush.msra.mxu0 0.0
        %481 = vmatpush.msra.mxu0 0.0
        %482 = vmatpush.msra.mxu0 0.0
        %483 = vmatpush.msra.mxu0 0.0
        %484 = vmatpush.msra.mxu0 0.0
        %485 = vmatpush.msra.mxu0 0.0
        %486 = vmatpush.msra.mxu0 0.0
        %487 = vmatpush.msra.mxu0 %v381
        %488 = vmatpush.msra.mxu0 %v378
        %489 = vmatpush.msra.mxu0 %v375
        %490 = vmatpush.msra.mxu0 %v372
        %491 = vmatmul.f32.gmra.mxu0 %v386
        %v492 = vpop.f32.mrf.mxu0
        %493 = vmatmul.f32.gmra.mxu0 %v389
        %v494 = vpop.f32.mrf.mxu0
        %495 = vmatmul.f32.gmra.mxu0 %v392
        %v496 = vpop.f32.mrf.mxu0
        %497 = vmatmul.f32.gmra.mxu0 %v395
        %v498 = vpop.f32.mrf.mxu0
        %v499 = vadd.f32 0.0, %v498
        %500 = vmatmul.f32.gmra.mxu0 %v398
        %v501 = vpop.f32.mrf.mxu0
        %v502 = vadd.f32 0.0, %v501
        %503 = vmatmul.f32.gmra.mxu0 %v401
        %v504 = vpop.f32.mrf.mxu0
        %v505 = vadd.f32 0.0, %v504
        %506 = vmatmul.f32.gmra.mxu0 %v404
        %v507 = vpop.f32.mrf.mxu0
        %v508 = vadd.f32 0.0, %v507
        %509 = vmatmul.f32.gmra.mxu0 %v407
        %v510 = vpop.f32.mrf.mxu0
        %v511 = vadd.f32 0.0, %v510
        %512 = vmatmul.f32.gmra.mxu0 %v410
        %v513 = vpop.f32.mrf.mxu0
        %v514 = vadd.f32 0.0, %v513
        %515 = vmatmul.f32.gmra.mxu0 %v413
        %v516 = vpop.f32.mrf.mxu0
        %v517 = vadd.f32 0.0, %v516
        %518 = vmatmul.f32.gmra.mxu0 %v416
        %v519 = vpop.f32.mrf.mxu0
        %v520 = vadd.f32 0.0, %v519
        %521 = vmatmul.f32.gmra.mxu0 %v419
        %v522 = vpop.f32.mrf.mxu0
        %v523 = vadd.f32 0.0, %v522
        %524 = vmatmul.f32.gmra.mxu0 %v422
        %v525 = vpop.f32.mrf.mxu0
        %v526 = vadd.f32 0.0, %v525
        %527 = vmatmul.f32.gmra.mxu0 %v425
        %v528 = vpop.f32.mrf.mxu0
        %v529 = vadd.f32 0.0, %v528
        %530 = vmatmul.f32.gmra.mxu0 %v428
        %v531 = vpop.f32.mrf.mxu0
        %v532 = vadd.f32 0.0, %v531
        %533 = vmatmul.f32.gmra.mxu0 %v431
        %v534 = vpop.f32.mrf.mxu0
        %v535 = vadd.f32 0.0, %v534
        %536 = vmatmul.f32.gmra.mxu0 %v434
        %v537 = vpop.f32.mrf.mxu0
        %v538 = vadd.f32 0.0, %v537
        %539 = vmatmul.f32.gmra.mxu0 %v437
        %v540 = vpop.f32.mrf.mxu0
        %v541 = vadd.f32 0.0, %v540
        %542 = vmatmul.f32.gmra.mxu0 %v440
        %v543 = vpop.f32.mrf.mxu0
        %v544 = vadd.f32 0.0, %v543
        %545 = vmatmul.f32.gmra.mxu0 %v443
        %v546 = vpop.f32.mrf.mxu0
        %v547 = vadd.f32 0.0, %v546
        %548 = vmatmul.f32.gmra.mxu0 %v446
        %v549 = vpop.f32.mrf.mxu0
        %v550 = vadd.f32 0.0, %v549
        %551 = vmatmul.f32.gmra.mxu0 %v449
        %v552 = vpop.f32.mrf.mxu0
        %v553 = vadd.f32 0.0, %v552
        %554 = vmatmul.f32.gmra.mxu0 %v452
        %v555 = vpop.f32.mrf.mxu0
        %v556 = vadd.f32 0.0, %v555
        %557 = vmatmul.f32.gmra.mxu0 %v455
        %v558 = vpop.f32.mrf.mxu0
        %v559 = vadd.f32 0.0, %v558
        %560 = vmatmul.f32.gmra.mxu0 %v458
        %v561 = vpop.f32.mrf.mxu0
        %v562 = vadd.f32 0.0, %v561
        %563 = vmatmul.f32.gmra.mxu0 %v461
        %v564 = vpop.f32.mrf.mxu0
        %v565 = vadd.f32 0.0, %v564
        %566 = vmatmul.f32.gmra.mxu0 %v464
        %v567 = vpop.f32.mrf.mxu0
        %v568 = vadd.f32 0.0, %v567
        %569 = vmatmul.f32.gmra.mxu0 %v467
        %v570 = vpop.f32.mrf.mxu0
        %571 = vmatmul.f32.gmra.mxu0 %v470
        %v572 = vpop.f32.mrf.mxu0
        %573 = vmatmul.f32.gmra.mxu0 %v473
        %v574 = vpop.f32.mrf.mxu0
        %575 = vdwg.mxu0
        %576 = vmatpush.msra.mxu0 0.0
        %577 = vmatpush.msra.mxu0 0.0
        %578 = vmatpush.msra.mxu0 0.0
        %579 = vmatpush.msra.mxu0 0.0
        %580 = vmatpush.msra.mxu0 0.0
        %581 = vmatpush.msra.mxu0 0.0
        %582 = vmatpush.msra.mxu0 0.0
        %583 = vmatpush.msra.mxu0 0.0
        %584 = vmatpush.msra.mxu0 0.0
        %585 = vmatpush.msra.mxu0 0.0
        %586 = vmatpush.msra.mxu0 0.0
        %587 = vmatpush.msra.mxu0 0.0
        %588 = vmatpush.msra.mxu0 %v382
        %589 = vmatpush.msra.mxu0 %v379
        %590 = vmatpush.msra.mxu0 %v376
        %591 = vmatpush.msra.mxu0 %v373
        %592 = vmatmul.f32.gmra.mxu0 %v386
        %v593 = vpop.f32.mrf.mxu0
        %v594 = vadd.f32 0.0, %v593
        %595 = vmatmul.f32.gmra.mxu0 %v389
        %v596 = vpop.f32.mrf.mxu0
        %v597 = vadd.f32 0.0, %v596
        %598 = vmatmul.f32.gmra.mxu0 %v392
        %v599 = vpop.f32.mrf.mxu0
        %v600 = vadd.f32 0.0, %v599
        %601 = vmatmul.f32.gmra.mxu0 %v395
        %v602 = vpop.f32.mrf.mxu0
        %v603 = vadd.f32 0.0, %v602
        %604 = vmatmul.f32.gmra.mxu0 %v398
        %v605 = vpop.f32.mrf.mxu0
        %v606 = vadd.f32 0.0, %v605
        %607 = vmatmul.f32.gmra.mxu0 %v401
        %v608 = vpop.f32.mrf.mxu0
        %v609 = vadd.f32 0.0, %v608
        %610 = vmatmul.f32.gmra.mxu0 %v404
        %v611 = vpop.f32.mrf.mxu0
        %v612 = vadd.f32 0.0, %v611
        %613 = vmatmul.f32.gmra.mxu0 %v407
        %v614 = vpop.f32.mrf.mxu0
        %v615 = vadd.f32 0.0, %v614
        %616 = vmatmul.f32.gmra.mxu0 %v410
        %v617 = vpop.f32.mrf.mxu0
        %v618 = vadd.f32 0.0, %v617
        %619 = vmatmul.f32.gmra.mxu0 %v413
        %v620 = vpop.f32.mrf.mxu0
        %v621 = vadd.f32 0.0, %v620
        %622 = vmatmul.f32.gmra.mxu0 %v416
        %v623 = vpop.f32.mrf.mxu0
        %v624 = vadd.f32 0.0, %v623
        %625 = vmatmul.f32.gmra.mxu0 %v419
        %v626 = vpop.f32.mrf.mxu0
        %v627 = vadd.f32 0.0, %v626
        %628 = vmatmul.f32.gmra.mxu0 %v422
        %v629 = vpop.f32.mrf.mxu0
        %v630 = vadd.f32 0.0, %v629
        %631 = vmatmul.f32.gmra.mxu0 %v425
        %v632 = vpop.f32.mrf.mxu0
        %v633 = vadd.f32 0.0, %v632
        %634 = vmatmul.f32.gmra.mxu0 %v428
        %v635 = vpop.f32.mrf.mxu0
        %v636 = vadd.f32 0.0, %v635
        %637 = vmatmul.f32.gmra.mxu0 %v431
        %v638 = vpop.f32.mrf.mxu0
        %v639 = vadd.f32 0.0, %v638
        %640 = vmatmul.f32.gmra.mxu0 %v434
        %v641 = vpop.f32.mrf.mxu0
        %v642 = vadd.f32 0.0, %v641
        %643 = vmatmul.f32.gmra.mxu0 %v437
        %v644 = vpop.f32.mrf.mxu0
        %v645 = vadd.f32 0.0, %v644
        %646 = vmatmul.f32.gmra.mxu0 %v440
        %v647 = vpop.f32.mrf.mxu0
        %v648 = vadd.f32 0.0, %v647
        %649 = vmatmul.f32.gmra.mxu0 %v443
        %v650 = vpop.f32.mrf.mxu0
        %v651 = vadd.f32 0.0, %v650
        %652 = vmatmul.f32.gmra.mxu0 %v446
        %v653 = vpop.f32.mrf.mxu0
        %v654 = vadd.f32 0.0, %v653
        %655 = vmatmul.f32.gmra.mxu0 %v449
        %v656 = vpop.f32.mrf.mxu0
        %v657 = vadd.f32 0.0, %v656
        %658 = vmatmul.f32.gmra.mxu0 %v452
        %v659 = vpop.f32.mrf.mxu0
        %v660 = vadd.f32 0.0, %v659
        %661 = vmatmul.f32.gmra.mxu0 %v455
        %v662 = vpop.f32.mrf.mxu0
        %v663 = vadd.f32 0.0, %v662
        %664 = vmatmul.f32.gmra.mxu0 %v458
        %v665 = vpop.f32.mrf.mxu0
        %v666 = vadd.f32 0.0, %v665
        %667 = vmatmul.f32.gmra.mxu0 %v461
        %v668 = vpop.f32.mrf.mxu0
        %v669 = vadd.f32 0.0, %v668
        %670 = vmatmul.f32.gmra.mxu0 %v464
        %v671 = vpop.f32.mrf.mxu0
        %v672 = vadd.f32 0.0, %v671
        %673 = vmatmul.f32.gmra.mxu0 %v467
        %v674 = vpop.f32.mrf.mxu0
        %v675 = vadd.f32 0.0, %v674
        %676 = vmatmul.f32.gmra.mxu0 %v470
        %v677 = vpop.f32.mrf.mxu0
        %v678 = vadd.f32 0.0, %v677
        %679 = vmatmul.f32.gmra.mxu0 %v473
        %v680 = vpop.f32.mrf.mxu0
        %v681 = vadd.f32 0.0, %v680
        %682 = vdwg.mxu0
        %683 = vmatpush.msra.mxu0 0.0
        %684 = vmatpush.msra.mxu0 0.0
        %685 = vmatpush.msra.mxu0 0.0
        %686 = vmatpush.msra.mxu0 0.0
        %687 = vmatpush.msra.mxu0 0.0
        %688 = vmatpush.msra.mxu0 0.0
        %689 = vmatpush.msra.mxu0 0.0
        %690 = vmatpush.msra.mxu0 0.0
        %691 = vmatpush.msra.mxu0 0.0
        %692 = vmatpush.msra.mxu0 0.0
        %693 = vmatpush.msra.mxu0 0.0
        %694 = vmatpush.msra.mxu0 0.0
        %695 = vmatpush.msra.mxu0 %v383
        %696 = vmatpush.msra.mxu0 %v380
        %697 = vmatpush.msra.mxu0 %v377
        %698 = vmatpush.msra.mxu0 %v374
        %699 = vmatmul.f32.gmra.mxu0 %v386
        %v700 = vpop.f32.mrf.mxu0
        %v701 = vadd.f32 0.0, %v700
        %702 = vmatmul.f32.gmra.mxu0 %v389
        %v703 = vpop.f32.mrf.mxu0
        %v704 = vadd.f32 0.0, %v703
        %705 = vmatmul.f32.gmra.mxu0 %v392
        %v706 = vpop.f32.mrf.mxu0
        %v707 = vadd.f32 0.0, %v706
        %708 = vmatmul.f32.gmra.mxu0 %v395
        %v709 = vpop.f32.mrf.mxu0
        %v710 = vadd.f32 0.0, %v709
        %711 = vmatmul.f32.gmra.mxu0 %v398
        %v712 = vpop.f32.mrf.mxu0
        %v713 = vadd.f32 0.0, %v712
        %714 = vmatmul.f32.gmra.mxu0 %v401
        %v715 = vpop.f32.mrf.mxu0
        %v716 = vadd.f32 0.0, %v715
        %717 = vmatmul.f32.gmra.mxu0 %v404
        %v718 = vpop.f32.mrf.mxu0
        %v719 = vadd.f32 0.0, %v718
        %720 = vmatmul.f32.gmra.mxu0 %v407
        %v721 = vpop.f32.mrf.mxu0
        %v722 = vadd.f32 0.0, %v721
        %723 = vmatmul.f32.gmra.mxu0 %v410
        %v724 = vpop.f32.mrf.mxu0
        %v725 = vadd.f32 0.0, %v724
        %726 = vmatmul.f32.gmra.mxu0 %v413
        %v727 = vpop.f32.mrf.mxu0
        %v728 = vadd.f32 0.0, %v727
        %729 = vmatmul.f32.gmra.mxu0 %v416
        %v730 = vpop.f32.mrf.mxu0
        %v731 = vadd.f32 0.0, %v730
        %732 = vmatmul.f32.gmra.mxu0 %v419
        %v733 = vpop.f32.mrf.mxu0
        %v734 = vadd.f32 0.0, %v733
        %735 = vmatmul.f32.gmra.mxu0 %v422
        %v736 = vpop.f32.mrf.mxu0
        %v737 = vadd.f32 0.0, %v736
        %738 = vmatmul.f32.gmra.mxu0 %v425
        %v739 = vpop.f32.mrf.mxu0
        %v740 = vadd.f32 0.0, %v739
        %741 = vmatmul.f32.gmra.mxu0 %v428
        %v742 = vpop.f32.mrf.mxu0
        %v743 = vadd.f32 0.0, %v742
        %744 = vmatmul.f32.gmra.mxu0 %v431
        %v745 = vpop.f32.mrf.mxu0
        %v746 = vadd.f32 0.0, %v745
        %747 = vmatmul.f32.gmra.mxu0 %v434
        %v748 = vpop.f32.mrf.mxu0
        %v749 = vadd.f32 0.0, %v748
        %750 = vmatmul.f32.gmra.mxu0 %v437
        %v751 = vpop.f32.mrf.mxu0
        %v752 = vadd.f32 0.0, %v751
        %753 = vmatmul.f32.gmra.mxu0 %v440
        %v754 = vpop.f32.mrf.mxu0
        %v755 = vadd.f32 0.0, %v754
        %756 = vmatmul.f32.gmra.mxu0 %v443
        %v757 = vpop.f32.mrf.mxu0
        %v758 = vadd.f32 0.0, %v757
        %759 = vmatmul.f32.gmra.mxu0 %v446
        %v760 = vpop.f32.mrf.mxu0
        %v761 = vadd.f32 0.0, %v760
        %762 = vmatmul.f32.gmra.mxu0 %v449
        %v763 = vpop.f32.mrf.mxu0
        %v764 = vadd.f32 0.0, %v763
        %765 = vmatmul.f32.gmra.mxu0 %v452
        %v766 = vpop.f32.mrf.mxu0
        %v767 = vadd.f32 0.0, %v766
        %768 = vmatmul.f32.gmra.mxu0 %v455
        %v769 = vpop.f32.mrf.mxu0
        %v770 = vadd.f32 0.0, %v769
        %771 = vmatmul.f32.gmra.mxu0 %v458
        %v772 = vpop.f32.mrf.mxu0
        %v773 = vadd.f32 0.0, %v772
        %774 = vmatmul.f32.gmra.mxu0 %v461
        %v775 = vpop.f32.mrf.mxu0
        %v776 = vadd.f32 0.0, %v775
        %777 = vmatmul.f32.gmra.mxu0 %v464
        %v778 = vpop.f32.mrf.mxu0
        %v779 = vadd.f32 0.0, %v778
        %780 = vmatmul.f32.gmra.mxu0 %v467
        %v781 = vpop.f32.mrf.mxu0
        %v782 = vadd.f32 0.0, %v781
        %783 = vmatmul.f32.gmra.mxu0 %v470
        %v784 = vpop.f32.mrf.mxu0
        %v785 = vadd.f32 0.0, %v784
        %786 = vmatmul.f32.gmra.mxu0 %v473
        %v787 = vpop.f32.mrf.mxu0
        %v788 = vadd.f32 0.0, %v787
        %789 = vdwg.mxu0
        %v790 = vld [vmem:[#allocation8] sm:$0xff]
        %v791 = vld [vmem:[#allocation8 + $0x8] sm:$0x1]
        %v792 = vperm.slane %v790, 0
        %v793 = vadd.f32 %v594, %v792
        %v794 = vadd.f32 %v597, %v792
        %v795 = vadd.f32 %v603, %v792
        %v796 = vadd.f32 %v606, %v792
        %v797 = vadd.f32 %v612, %v792
        %v798 = vadd.f32 %v615, %v792
        %v799 = vadd.f32 %v621, %v792
        %v800 = vadd.f32 %v624, %v792
        %v801 = vadd.f32 %v630, %v792
        %v802 = vadd.f32 %v633, %v792
        %v803 = vadd.f32 %v639, %v792
        %v804 = vadd.f32 %v642, %v792
        %v805 = vadd.f32 %v648, %v792
        %v806 = vadd.f32 %v651, %v792
        %v807 = vadd.f32 %v657, %v792
        %v808 = vadd.f32 %v660, %v792
        %vm825 = vcmask 1040384
        %v826 = vrot.slane %v793, 7
        %v827 = vrot.slane %v794, 7
        %v828 = vsel %vm825, %v826, %v827
        %v829 = vrot.slane %v795, 7
        %v830 = vrot.slane %v796, 7
        %v831 = vsel %vm825, %v829, %v830
        %v832 = vrot.slane %v797, 7
        %v833 = vrot.slane %v798, 7
        %v834 = vsel %vm825, %v832, %v833
        %v835 = vrot.slane %v799, 7
        %v836 = vrot.slane %v800, 7
        %v837 = vsel %vm825, %v835, %v836
        %v838 = vrot.slane %v801, 7
        %v839 = vrot.slane %v802, 7
        %v840 = vsel %vm825, %v838, %v839
        %v841 = vrot.slane %v803, 7
        %v842 = vrot.slane %v804, 7
        %v843 = vsel %vm825, %v841, %v842
        %v844 = vrot.slane %v805, 7
        %v845 = vrot.slane %v806, 7
        %v846 = vsel %vm825, %v844, %v845
        %v847 = vrot.slane %v807, 7
        %v848 = vrot.slane %v808, 7
        %v849 = vsel %vm825, %v847, %v848
        %v874 = vmul.f32 %v499, %v826
        %v875 = vmul.f32 %v502, %v828
        %v876 = vmul.f32 %v505, %v827
        %v877 = vmul.f32 %v508, %v829
        %v878 = vmul.f32 %v511, %v831
        %v879 = vmul.f32 %v514, %v830
        %v880 = vmul.f32 %v517, %v832
        %v881 = vmul.f32 %v520, %v834
        %v882 = vmul.f32 %v523, %v833
        %v883 = vmul.f32 %v526, %v835
        %v884 = vmul.f32 %v529, %v837
        %v885 = vmul.f32 %v532, %v836
        %v886 = vmul.f32 %v535, %v838
        %v887 = vmul.f32 %v538, %v840
        %v888 = vmul.f32 %v541, %v839
        %v889 = vmul.f32 %v544, %v841
        %v890 = vmul.f32 %v547, %v843
        %v891 = vmul.f32 %v550, %v842
        %v892 = vmul.f32 %v553, %v844
        %v893 = vmul.f32 %v556, %v846
        %v894 = vmul.f32 %v559, %v845
        %v895 = vmul.f32 %v562, %v847
        %v896 = vmul.f32 %v565, %v849
        %v897 = vmul.f32 %v568, %v848
        %v898 = vperm.slane %v790, 1
        %v899 = vadd.f32 %v594, %v898
        %v900 = vadd.f32 %v597, %v898
        %v901 = vadd.f32 %v600, %v898
        %v902 = vadd.f32 %v603, %v898
        %v903 = vadd.f32 %v606, %v898
        %v904 = vadd.f32 %v609, %v898
        %v905 = vadd.f32 %v612, %v898
        %v906 = vadd.f32 %v615, %v898
        %v907 = vadd.f32 %v618, %v898
        %v908 = vadd.f32 %v621, %v898
        %v909 = vadd.f32 %v624, %v898
        %v910 = vadd.f32 %v627, %v898
        %v911 = vadd.f32 %v630, %v898
        %v912 = vadd.f32 %v633, %v898
        %v913 = vadd.f32 %v636, %v898
        %v914 = vadd.f32 %v639, %v898
        %v915 = vadd.f32 %v642, %v898
        %v916 = vadd.f32 %v645, %v898
        %v917 = vadd.f32 %v648, %v898
        %v918 = vadd.f32 %v651, %v898
        %v919 = vadd.f32 %v654, %v898
        %v920 = vadd.f32 %v657, %v898
        %v921 = vadd.f32 %v660, %v898
        %v922 = vadd.f32 %v663, %v898
        %v923 = vmul.f32 %v499, %v899
        %v924 = vmul.f32 %v502, %v900
        %v925 = vmul.f32 %v505, %v901
        %v926 = vmul.f32 %v508, %v902
        %v927 = vmul.f32 %v511, %v903
        %v928 = vmul.f32 %v514, %v904
        %v929 = vmul.f32 %v517, %v905
        %v930 = vmul.f32 %v520, %v906
        %v931 = vmul.f32 %v523, %v907
        %v932 = vmul.f32 %v526, %v908
        %v933 = vmul.f32 %v529, %v909
        %v934 = vmul.f32 %v532, %v910
        %v935 = vmul.f32 %v535, %v911
        %v936 = vmul.f32 %v538, %v912
        %v937 = vmul.f32 %v541, %v913
        %v938 = vmul.f32 %v544, %v914
        %v939 = vmul.f32 %v547, %v915
        %v940 = vmul.f32 %v550, %v916
        %v941 = vmul.f32 %v553, %v917
        %v942 = vmul.f32 %v556, %v918
        %v943 = vmul.f32 %v559, %v919
        %v944 = vmul.f32 %v562, %v920
        %v945 = vmul.f32 %v565, %v921
        %v946 = vmul.f32 %v568, %v922
        %v947 = vmax.f32 %v874, %v923
        %v948 = vmax.f32 %v875, %v924
        %v949 = vmax.f32 %v876, %v925
        %v950 = vmax.f32 %v877, %v926
        %v951 = vmax.f32 %v878, %v927
        %v952 = vmax.f32 %v879, %v928
        %v953 = vmax.f32 %v880, %v929
        %v954 = vmax.f32 %v881, %v930
        %v955 = vmax.f32 %v882, %v931
        %v956 = vmax.f32 %v883, %v932
        %v957 = vmax.f32 %v884, %v933
        %v958 = vmax.f32 %v885, %v934
        %v959 = vmax.f32 %v886, %v935
        %v960 = vmax.f32 %v887, %v936
        %v961 = vmax.f32 %v888, %v937
        %v962 = vmax.f32 %v889, %v938
        %v963 = vmax.f32 %v890, %v939
        %v964 = vmax.f32 %v891, %v940
        %v965 = vmax.f32 %v892, %v941
        %v966 = vmax.f32 %v893, %v942
        %v967 = vmax.f32 %v894, %v943
        %v968 = vmax.f32 %v895, %v944
        %v969 = vmax.f32 %v896, %v945
        %v970 = vmax.f32 %v897, %v946
        %v971 = vperm.slane %v790, 2
        %v972 = vadd.f32 %v594, %v971
        %v973 = vadd.f32 %v597, %v971
        %v974 = vadd.f32 %v600, %v971
        %v975 = vadd.f32 %v603, %v971
        %v976 = vadd.f32 %v606, %v971
        %v977 = vadd.f32 %v609, %v971
        %v978 = vadd.f32 %v612, %v971
        %v979 = vadd.f32 %v615, %v971
        %v980 = vadd.f32 %v618, %v971
        %v981 = vadd.f32 %v621, %v971
        %v982 = vadd.f32 %v624, %v971
        %v983 = vadd.f32 %v627, %v971
        %v984 = vadd.f32 %v630, %v971
        %v985 = vadd.f32 %v633, %v971
        %v986 = vadd.f32 %v636, %v971
        %v987 = vadd.f32 %v639, %v971
        %v988 = vadd.f32 %v642, %v971
        %v989 = vadd.f32 %v645, %v971
        %v990 = vadd.f32 %v648, %v971
        %v991 = vadd.f32 %v651, %v971
        %v992 = vadd.f32 %v654, %v971
        %v993 = vadd.f32 %v657, %v971
        %v994 = vadd.f32 %v660, %v971
        %v995 = vadd.f32 %v663, %v971
        %vm1020 = vcmask 1046528
        %v1021 = vrot.slane %v972, 1
        %v1022 = vrot.slane %v973, 1
        %v1023 = vsel %vm1020, %v1021, %v1022
        %v1024 = vrot.slane %v974, 1
        %v1025 = vsel %vm1020, %v1022, %v1024
        %v1026 = vrot.slane %v975, 1
        %v1027 = vrot.slane %v976, 1
        %v1028 = vsel %vm1020, %v1026, %v1027
        %v1029 = vrot.slane %v977, 1
        %v1030 = vsel %vm1020, %v1027, %v1029
        %v1031 = vrot.slane %v978, 1
        %v1032 = vrot.slane %v979, 1
        %v1033 = vsel %vm1020, %v1031, %v1032
        %v1034 = vrot.slane %v980, 1
        %v1035 = vsel %vm1020, %v1032, %v1034
        %v1036 = vrot.slane %v981, 1
        %v1037 = vrot.slane %v982, 1
        %v1038 = vsel %vm1020, %v1036, %v1037
        %v1039 = vrot.slane %v983, 1
        %v1040 = vsel %vm1020, %v1037, %v1039
        %v1041 = vrot.slane %v984, 1
        %v1042 = vrot.slane %v985, 1
        %v1043 = vsel %vm1020, %v1041, %v1042
        %v1044 = vrot.slane %v986, 1
        %v1045 = vsel %vm1020, %v1042, %v1044
        %v1046 = vrot.slane %v987, 1
        %v1047 = vrot.slane %v988, 1
        %v1048 = vsel %vm1020, %v1046, %v1047
        %v1049 = vrot.slane %v989, 1
        %v1050 = vsel %vm1020, %v1047, %v1049
        %v1051 = vrot.slane %v990, 1
        %v1052 = vrot.slane %v991, 1
        %v1053 = vsel %vm1020, %v1051, %v1052
        %v1054 = vrot.slane %v992, 1
        %v1055 = vsel %vm1020, %v1052, %v1054
        %v1056 = vrot.slane %v993, 1
        %v1057 = vrot.slane %v994, 1
        %v1058 = vsel %vm1020, %v1056, %v1057
        %v1059 = vrot.slane %v995, 1
        %v1060 = vsel %vm1020, %v1057, %v1059
        %v1085 = vmul.f32 %v499, %v1023
        %v1086 = vmul.f32 %v502, %v1025
        %v1087 = vmul.f32 %v505, %v1024
        %v1088 = vmul.f32 %v508, %v1028
        %v1089 = vmul.f32 %v511, %v1030
        %v1090 = vmul.f32 %v514, %v1029
        %v1091 = vmul.f32 %v517, %v1033
        %v1092 = vmul.f32 %v520, %v1035
        %v1093 = vmul.f32 %v523, %v1034
        %v1094 = vmul.f32 %v526, %v1038
        %v1095 = vmul.f32 %v529, %v1040
        %v1096 = vmul.f32 %v532, %v1039
        %v1097 = vmul.f32 %v535, %v1043
        %v1098 = vmul.f32 %v538, %v1045
        %v1099 = vmul.f32 %v541, %v1044
        %v1100 = vmul.f32 %v544, %v1048
        %v1101 = vmul.f32 %v547, %v1050
        %v1102 = vmul.f32 %v550, %v1049
        %v1103 = vmul.f32 %v553, %v1053
        %v1104 = vmul.f32 %v556, %v1055
        %v1105 = vmul.f32 %v559, %v1054
        %v1106 = vmul.f32 %v562, %v1058
        %v1107 = vmul.f32 %v565, %v1060
        %v1108 = vmul.f32 %v568, %v1059
        %v1109 = vmax.f32 %v947, %v1085
        %v1110 = vmax.f32 %v948, %v1086
        %v1111 = vmax.f32 %v949, %v1087
        %v1112 = vmax.f32 %v950, %v1088
        %v1113 = vmax.f32 %v951, %v1089
        %v1114 = vmax.f32 %v952, %v1090
        %v1115 = vmax.f32 %v953, %v1091
        %v1116 = vmax.f32 %v954, %v1092
        %v1117 = vmax.f32 %v955, %v1093
        %v1118 = vmax.f32 %v956, %v1094
        %v1119 = vmax.f32 %v957, %v1095
        %v1120 = vmax.f32 %v958, %v1096
        %v1121 = vmax.f32 %v959, %v1097
        %v1122 = vmax.f32 %v960, %v1098
        %v1123 = vmax.f32 %v961, %v1099
        %v1124 = vmax.f32 %v962, %v1100
        %v1125 = vmax.f32 %v963, %v1101
        %v1126 = vmax.f32 %v964, %v1102
        %v1127 = vmax.f32 %v965, %v1103
        %v1128 = vmax.f32 %v966, %v1104
        %v1129 = vmax.f32 %v967, %v1105
        %v1130 = vmax.f32 %v968, %v1106
        %v1131 = vmax.f32 %v969, %v1107
        %v1132 = vmax.f32 %v970, %v1108
        %v1133 = vperm.slane %v790, 3
        %v1134 = vadd.f32 %v603, %v1133
        %v1135 = vadd.f32 %v606, %v1133
        %v1136 = vadd.f32 %v612, %v1133
        %v1137 = vadd.f32 %v615, %v1133
        %v1138 = vadd.f32 %v621, %v1133
        %v1139 = vadd.f32 %v624, %v1133
        %v1140 = vadd.f32 %v630, %v1133
        %v1141 = vadd.f32 %v633, %v1133
        %v1142 = vadd.f32 %v639, %v1133
        %v1143 = vadd.f32 %v642, %v1133
        %v1144 = vadd.f32 %v648, %v1133
        %v1145 = vadd.f32 %v651, %v1133
        %v1146 = vadd.f32 %v657, %v1133
        %v1147 = vadd.f32 %v660, %v1133
        %v1148 = vadd.f32 %v666, %v1133
        %v1149 = vadd.f32 %v669, %v1133
        %v1166 = vrot.slane %v1134, 7
        %v1167 = vrot.slane %v1135, 7
        %v1168 = vsel %vm825, %v1166, %v1167
        %v1169 = vrot.slane %v1136, 7
        %v1170 = vrot.slane %v1137, 7
        %v1171 = vsel %vm825, %v1169, %v1170
        %v1172 = vrot.slane %v1138, 7
        %v1173 = vrot.slane %v1139, 7
        %v1174 = vsel %vm825, %v1172, %v1173
        %v1175 = vrot.slane %v1140, 7
        %v1176 = vrot.slane %v1141, 7
        %v1177 = vsel %vm825, %v1175, %v1176
        %v1178 = vrot.slane %v1142, 7
        %v1179 = vrot.slane %v1143, 7
        %v1180 = vsel %vm825, %v1178, %v1179
        %v1181 = vrot.slane %v1144, 7
        %v1182 = vrot.slane %v1145, 7
        %v1183 = vsel %vm825, %v1181, %v1182
        %v1184 = vrot.slane %v1146, 7
        %v1185 = vrot.slane %v1147, 7
        %v1186 = vsel %vm825, %v1184, %v1185
        %v1187 = vrot.slane %v1148, 7
        %v1188 = vrot.slane %v1149, 7
        %v1189 = vsel %vm825, %v1187, %v1188
        %v1214 = vmul.f32 %v499, %v1166
        %v1215 = vmul.f32 %v502, %v1168
        %v1216 = vmul.f32 %v505, %v1167
        %v1217 = vmul.f32 %v508, %v1169
        %v1218 = vmul.f32 %v511, %v1171
        %v1219 = vmul.f32 %v514, %v1170
        %v1220 = vmul.f32 %v517, %v1172
        %v1221 = vmul.f32 %v520, %v1174
        %v1222 = vmul.f32 %v523, %v1173
        %v1223 = vmul.f32 %v526, %v1175
        %v1224 = vmul.f32 %v529, %v1177
        %v1225 = vmul.f32 %v532, %v1176
        %v1226 = vmul.f32 %v535, %v1178
        %v1227 = vmul.f32 %v538, %v1180
        %v1228 = vmul.f32 %v541, %v1179
        %v1229 = vmul.f32 %v544, %v1181
        %v1230 = vmul.f32 %v547, %v1183
        %v1231 = vmul.f32 %v550, %v1182
        %v1232 = vmul.f32 %v553, %v1184
        %v1233 = vmul.f32 %v556, %v1186
        %v1234 = vmul.f32 %v559, %v1185
        %v1235 = vmul.f32 %v562, %v1187
        %v1236 = vmul.f32 %v565, %v1189
        %v1237 = vmul.f32 %v568, %v1188
        %v1238 = vmax.f32 %v1109, %v1214
        %v1239 = vmax.f32 %v1110, %v1215
        %v1240 = vmax.f32 %v1111, %v1216
        %v1241 = vmax.f32 %v1112, %v1217
        %v1242 = vmax.f32 %v1113, %v1218
        %v1243 = vmax.f32 %v1114, %v1219
        %v1244 = vmax.f32 %v1115, %v1220
        %v1245 = vmax.f32 %v1116, %v1221
        %v1246 = vmax.f32 %v1117, %v1222
        %v1247 = vmax.f32 %v1118, %v1223
        %v1248 = vmax.f32 %v1119, %v1224
        %v1249 = vmax.f32 %v1120, %v1225
        %v1250 = vmax.f32 %v1121, %v1226
        %v1251 = vmax.f32 %v1122, %v1227
        %v1252 = vmax.f32 %v1123, %v1228
        %v1253 = vmax.f32 %v1124, %v1229
        %v1254 = vmax.f32 %v1125, %v1230
        %v1255 = vmax.f32 %v1126, %v1231
        %v1256 = vmax.f32 %v1127, %v1232
        %v1257 = vmax.f32 %v1128, %v1233
        %v1258 = vmax.f32 %v1129, %v1234
        %v1259 = vmax.f32 %v1130, %v1235
        %v1260 = vmax.f32 %v1131, %v1236
        %v1261 = vmax.f32 %v1132, %v1237
        %v1262 = vperm.slane %v790, 4
        %v1263 = vadd.f32 %v603, %v1262
        %v1264 = vadd.f32 %v606, %v1262
        %v1265 = vadd.f32 %v609, %v1262
        %v1266 = vadd.f32 %v612, %v1262
        %v1267 = vadd.f32 %v615, %v1262
        %v1268 = vadd.f32 %v618, %v1262
        %v1269 = vadd.f32 %v621, %v1262
        %v1270 = vadd.f32 %v624, %v1262
        %v1271 = vadd.f32 %v627, %v1262
        %v1272 = vadd.f32 %v630, %v1262
        %v1273 = vadd.f32 %v633, %v1262
        %v1274 = vadd.f32 %v636, %v1262
        %v1275 = vadd.f32 %v639, %v1262
        %v1276 = vadd.f32 %v642, %v1262
        %v1277 = vadd.f32 %v645, %v1262
        %v1278 = vadd.f32 %v648, %v1262
        %v1279 = vadd.f32 %v651, %v1262
        %v1280 = vadd.f32 %v654, %v1262
        %v1281 = vadd.f32 %v657, %v1262
        %v1282 = vadd.f32 %v660, %v1262
        %v1283 = vadd.f32 %v663, %v1262
        %v1284 = vadd.f32 %v666, %v1262
        %v1285 = vadd.f32 %v669, %v1262
        %v1286 = vadd.f32 %v672, %v1262
        %v1287 = vmul.f32 %v499, %v1263
        %v1288 = vmul.f32 %v502, %v1264
        %v1289 = vmul.f32 %v505, %v1265
        %v1290 = vmul.f32 %v508, %v1266
        %v1291 = vmul.f32 %v511, %v1267
        %v1292 = vmul.f32 %v514, %v1268
        %v1293 = vmul.f32 %v517, %v1269
        %v1294 = vmul.f32 %v520, %v1270
        %v1295 = vmul.f32 %v523, %v1271
        %v1296 = vmul.f32 %v526, %v1272
        %v1297 = vmul.f32 %v529, %v1273
        %v1298 = vmul.f32 %v532, %v1274
        %v1299 = vmul.f32 %v535, %v1275
        %v1300 = vmul.f32 %v538, %v1276
        %v1301 = vmul.f32 %v541, %v1277
        %v1302 = vmul.f32 %v544, %v1278
        %v1303 = vmul.f32 %v547, %v1279
        %v1304 = vmul.f32 %v550, %v1280
        %v1305 = vmul.f32 %v553, %v1281
        %v1306 = vmul.f32 %v556, %v1282
        %v1307 = vmul.f32 %v559, %v1283
        %v1308 = vmul.f32 %v562, %v1284
        %v1309 = vmul.f32 %v565, %v1285
        %v1310 = vmul.f32 %v568, %v1286
        %v1311 = vmax.f32 %v1238, %v1287
        %v1312 = vmax.f32 %v1239, %v1288
        %v1313 = vmax.f32 %v1240, %v1289
        %v1314 = vmax.f32 %v1241, %v1290
        %v1315 = vmax.f32 %v1242, %v1291
        %v1316 = vmax.f32 %v1243, %v1292
        %v1317 = vmax.f32 %v1244, %v1293
        %v1318 = vmax.f32 %v1245, %v1294
        %v1319 = vmax.f32 %v1246, %v1295
        %v1320 = vmax.f32 %v1247, %v1296
        %v1321 = vmax.f32 %v1248, %v1297
        %v1322 = vmax.f32 %v1249, %v1298
        %v1323 = vmax.f32 %v1250, %v1299
        %v1324 = vmax.f32 %v1251, %v1300
        %v1325 = vmax.f32 %v1252, %v1301
        %v1326 = vmax.f32 %v1253, %v1302
        %v1327 = vmax.f32 %v1254, %v1303
        %v1328 = vmax.f32 %v1255, %v1304
        %v1329 = vmax.f32 %v1256, %v1305
        %v1330 = vmax.f32 %v1257, %v1306
        %v1331 = vmax.f32 %v1258, %v1307
        %v1332 = vmax.f32 %v1259, %v1308
        %v1333 = vmax.f32 %v1260, %v1309
        %v1334 = vmax.f32 %v1261, %v1310
        %v1335 = vperm.slane %v790, 5
        %v1336 = vadd.f32 %v603, %v1335
        %v1337 = vadd.f32 %v606, %v1335
        %v1338 = vadd.f32 %v609, %v1335
        %v1339 = vadd.f32 %v612, %v1335
        %v1340 = vadd.f32 %v615, %v1335
        %v1341 = vadd.f32 %v618, %v1335
        %v1342 = vadd.f32 %v621, %v1335
        %v1343 = vadd.f32 %v624, %v1335
        %v1344 = vadd.f32 %v627, %v1335
        %v1345 = vadd.f32 %v630, %v1335
        %v1346 = vadd.f32 %v633, %v1335
        %v1347 = vadd.f32 %v636, %v1335
        %v1348 = vadd.f32 %v639, %v1335
        %v1349 = vadd.f32 %v642, %v1335
        %v1350 = vadd.f32 %v645, %v1335
        %v1351 = vadd.f32 %v648, %v1335
        %v1352 = vadd.f32 %v651, %v1335
        %v1353 = vadd.f32 %v654, %v1335
        %v1354 = vadd.f32 %v657, %v1335
        %v1355 = vadd.f32 %v660, %v1335
        %v1356 = vadd.f32 %v663, %v1335
        %v1357 = vadd.f32 %v666, %v1335
        %v1358 = vadd.f32 %v669, %v1335
        %v1359 = vadd.f32 %v672, %v1335
        %v1384 = vrot.slane %v1336, 1
        %v1385 = vrot.slane %v1337, 1
        %v1386 = vsel %vm1020, %v1384, %v1385
        %v1387 = vrot.slane %v1338, 1
        %v1388 = vsel %vm1020, %v1385, %v1387
        %v1389 = vrot.slane %v1339, 1
        %v1390 = vrot.slane %v1340, 1
        %v1391 = vsel %vm1020, %v1389, %v1390
        %v1392 = vrot.slane %v1341, 1
        %v1393 = vsel %vm1020, %v1390, %v1392
        %v1394 = vrot.slane %v1342, 1
        %v1395 = vrot.slane %v1343, 1
        %v1396 = vsel %vm1020, %v1394, %v1395
        %v1397 = vrot.slane %v1344, 1
        %v1398 = vsel %vm1020, %v1395, %v1397
        %v1399 = vrot.slane %v1345, 1
        %v1400 = vrot.slane %v1346, 1
        %v1401 = vsel %vm1020, %v1399, %v1400
        %v1402 = vrot.slane %v1347, 1
        %v1403 = vsel %vm1020, %v1400, %v1402
        %v1404 = vrot.slane %v1348, 1
        %v1405 = vrot.slane %v1349, 1
        %v1406 = vsel %vm1020, %v1404, %v1405
        %v1407 = vrot.slane %v1350, 1
        %v1408 = vsel %vm1020, %v1405, %v1407
        %v1409 = vrot.slane %v1351, 1
        %v1410 = vrot.slane %v1352, 1
        %v1411 = vsel %vm1020, %v1409, %v1410
        %v1412 = vrot.slane %v1353, 1
        %v1413 = vsel %vm1020, %v1410, %v1412
        %v1414 = vrot.slane %v1354, 1
        %v1415 = vrot.slane %v1355, 1
        %v1416 = vsel %vm1020, %v1414, %v1415
        %v1417 = vrot.slane %v1356, 1
        %v1418 = vsel %vm1020, %v1415, %v1417
        %v1419 = vrot.slane %v1357, 1
        %v1420 = vrot.slane %v1358, 1
        %v1421 = vsel %vm1020, %v1419, %v1420
        %v1422 = vrot.slane %v1359, 1
        %v1423 = vsel %vm1020, %v1420, %v1422
        %v1448 = vmul.f32 %v499, %v1386
        %v1449 = vmul.f32 %v502, %v1388
        %v1450 = vmul.f32 %v505, %v1387
        %v1451 = vmul.f32 %v508, %v1391
        %v1452 = vmul.f32 %v511, %v1393
        %v1453 = vmul.f32 %v514, %v1392
        %v1454 = vmul.f32 %v517, %v1396
        %v1455 = vmul.f32 %v520, %v1398
        %v1456 = vmul.f32 %v523, %v1397
        %v1457 = vmul.f32 %v526, %v1401
        %v1458 = vmul.f32 %v529, %v1403
        %v1459 = vmul.f32 %v532, %v1402
        %v1460 = vmul.f32 %v535, %v1406
        %v1461 = vmul.f32 %v538, %v1408
        %v1462 = vmul.f32 %v541, %v1407
        %v1463 = vmul.f32 %v544, %v1411
        %v1464 = vmul.f32 %v547, %v1413
        %v1465 = vmul.f32 %v550, %v1412
        %v1466 = vmul.f32 %v553, %v1416
        %v1467 = vmul.f32 %v556, %v1418
        %v1468 = vmul.f32 %v559, %v1417
        %v1469 = vmul.f32 %v562, %v1421
        %v1470 = vmul.f32 %v565, %v1423
        %v1471 = vmul.f32 %v568, %v1422
        %v1472 = vmax.f32 %v1311, %v1448
        %v1473 = vmax.f32 %v1312, %v1449
        %v1474 = vmax.f32 %v1313, %v1450
        %v1475 = vmax.f32 %v1314, %v1451
        %v1476 = vmax.f32 %v1315, %v1452
        %v1477 = vmax.f32 %v1316, %v1453
        %v1478 = vmax.f32 %v1317, %v1454
        %v1479 = vmax.f32 %v1318, %v1455
        %v1480 = vmax.f32 %v1319, %v1456
        %v1481 = vmax.f32 %v1320, %v1457
        %v1482 = vmax.f32 %v1321, %v1458
        %v1483 = vmax.f32 %v1322, %v1459
        %v1484 = vmax.f32 %v1323, %v1460
        %v1485 = vmax.f32 %v1324, %v1461
        %v1486 = vmax.f32 %v1325, %v1462
        %v1487 = vmax.f32 %v1326, %v1463
        %v1488 = vmax.f32 %v1327, %v1464
        %v1489 = vmax.f32 %v1328, %v1465
        %v1490 = vmax.f32 %v1329, %v1466
        %v1491 = vmax.f32 %v1330, %v1467
        %v1492 = vmax.f32 %v1331, %v1468
        %v1493 = vmax.f32 %v1332, %v1469
        %v1494 = vmax.f32 %v1333, %v1470
        %v1495 = vmax.f32 %v1334, %v1471
        %v1496 = vperm.slane %v790, 6
        %v1497 = vadd.f32 %v612, %v1496
        %v1498 = vadd.f32 %v615, %v1496
        %v1499 = vadd.f32 %v621, %v1496
        %v1500 = vadd.f32 %v624, %v1496
        %v1501 = vadd.f32 %v630, %v1496
        %v1502 = vadd.f32 %v633, %v1496
        %v1503 = vadd.f32 %v639, %v1496
        %v1504 = vadd.f32 %v642, %v1496
        %v1505 = vadd.f32 %v648, %v1496
        %v1506 = vadd.f32 %v651, %v1496
        %v1507 = vadd.f32 %v657, %v1496
        %v1508 = vadd.f32 %v660, %v1496
        %v1509 = vadd.f32 %v666, %v1496
        %v1510 = vadd.f32 %v669, %v1496
        %v1511 = vadd.f32 %v675, %v1496
        %v1512 = vadd.f32 %v678, %v1496
        %v1529 = vrot.slane %v1497, 7
        %v1530 = vrot.slane %v1498, 7
        %v1531 = vsel %vm825, %v1529, %v1530
        %v1532 = vrot.slane %v1499, 7
        %v1533 = vrot.slane %v1500, 7
        %v1534 = vsel %vm825, %v1532, %v1533
        %v1535 = vrot.slane %v1501, 7
        %v1536 = vrot.slane %v1502, 7
        %v1537 = vsel %vm825, %v1535, %v1536
        %v1538 = vrot.slane %v1503, 7
        %v1539 = vrot.slane %v1504, 7
        %v1540 = vsel %vm825, %v1538, %v1539
        %v1541 = vrot.slane %v1505, 7
        %v1542 = vrot.slane %v1506, 7
        %v1543 = vsel %vm825, %v1541, %v1542
        %v1544 = vrot.slane %v1507, 7
        %v1545 = vrot.slane %v1508, 7
        %v1546 = vsel %vm825, %v1544, %v1545
        %v1547 = vrot.slane %v1509, 7
        %v1548 = vrot.slane %v1510, 7
        %v1549 = vsel %vm825, %v1547, %v1548
        %v1550 = vrot.slane %v1511, 7
        %v1551 = vrot.slane %v1512, 7
        %v1552 = vsel %vm825, %v1550, %v1551
        %v1577 = vmul.f32 %v499, %v1529
        %v1578 = vmul.f32 %v502, %v1531
        %v1579 = vmul.f32 %v505, %v1530
        %v1580 = vmul.f32 %v508, %v1532
        %v1581 = vmul.f32 %v511, %v1534
        %v1582 = vmul.f32 %v514, %v1533
        %v1583 = vmul.f32 %v517, %v1535
        %v1584 = vmul.f32 %v520, %v1537
        %v1585 = vmul.f32 %v523, %v1536
        %v1586 = vmul.f32 %v526, %v1538
        %v1587 = vmul.f32 %v529, %v1540
        %v1588 = vmul.f32 %v532, %v1539
        %v1589 = vmul.f32 %v535, %v1541
        %v1590 = vmul.f32 %v538, %v1543
        %v1591 = vmul.f32 %v541, %v1542
        %v1592 = vmul.f32 %v544, %v1544
        %v1593 = vmul.f32 %v547, %v1546
        %v1594 = vmul.f32 %v550, %v1545
        %v1595 = vmul.f32 %v553, %v1547
        %v1596 = vmul.f32 %v556, %v1549
        %v1597 = vmul.f32 %v559, %v1548
        %v1598 = vmul.f32 %v562, %v1550
        %v1599 = vmul.f32 %v565, %v1552
        %v1600 = vmul.f32 %v568, %v1551
        %v1601 = vmax.f32 %v1472, %v1577
        %v1602 = vmax.f32 %v1473, %v1578
        %v1603 = vmax.f32 %v1474, %v1579
        %v1604 = vmax.f32 %v1475, %v1580
        %v1605 = vmax.f32 %v1476, %v1581
        %v1606 = vmax.f32 %v1477, %v1582
        %v1607 = vmax.f32 %v1478, %v1583
        %v1608 = vmax.f32 %v1479, %v1584
        %v1609 = vmax.f32 %v1480, %v1585
        %v1610 = vmax.f32 %v1481, %v1586
        %v1611 = vmax.f32 %v1482, %v1587
        %v1612 = vmax.f32 %v1483, %v1588
        %v1613 = vmax.f32 %v1484, %v1589
        %v1614 = vmax.f32 %v1485, %v1590
        %v1615 = vmax.f32 %v1486, %v1591
        %v1616 = vmax.f32 %v1487, %v1592
        %v1617 = vmax.f32 %v1488, %v1593
        %v1618 = vmax.f32 %v1489, %v1594
        %v1619 = vmax.f32 %v1490, %v1595
        %v1620 = vmax.f32 %v1491, %v1596
        %v1621 = vmax.f32 %v1492, %v1597
        %v1622 = vmax.f32 %v1493, %v1598
        %v1623 = vmax.f32 %v1494, %v1599
        %v1624 = vmax.f32 %v1495, %v1600
        %v1625 = vperm.slane %v790, 7
        %v1626 = vadd.f32 %v612, %v1625
        %v1627 = vadd.f32 %v615, %v1625
        %v1628 = vadd.f32 %v618, %v1625
        %v1629 = vadd.f32 %v621, %v1625
        %v1630 = vadd.f32 %v624, %v1625
        %v1631 = vadd.f32 %v627, %v1625
        %v1632 = vadd.f32 %v630, %v1625
        %v1633 = vadd.f32 %v633, %v1625
        %v1634 = vadd.f32 %v636, %v1625
        %v1635 = vadd.f32 %v639, %v1625
        %v1636 = vadd.f32 %v642, %v1625
        %v1637 = vadd.f32 %v645, %v1625
        %v1638 = vadd.f32 %v648, %v1625
        %v1639 = vadd.f32 %v651, %v1625
        %v1640 = vadd.f32 %v654, %v1625
        %v1641 = vadd.f32 %v657, %v1625
        %v1642 = vadd.f32 %v660, %v1625
        %v1643 = vadd.f32 %v663, %v1625
        %v1644 = vadd.f32 %v666, %v1625
        %v1645 = vadd.f32 %v669, %v1625
        %v1646 = vadd.f32 %v672, %v1625
        %v1647 = vadd.f32 %v675, %v1625
        %v1648 = vadd.f32 %v678, %v1625
        %v1649 = vadd.f32 %v681, %v1625
        %v1650 = vmul.f32 %v499, %v1626
        %v1651 = vmul.f32 %v502, %v1627
        %v1652 = vmul.f32 %v505, %v1628
        %v1653 = vmul.f32 %v508, %v1629
        %v1654 = vmul.f32 %v511, %v1630
        %v1655 = vmul.f32 %v514, %v1631
        %v1656 = vmul.f32 %v517, %v1632
        %v1657 = vmul.f32 %v520, %v1633
        %v1658 = vmul.f32 %v523, %v1634
        %v1659 = vmul.f32 %v526, %v1635
        %v1660 = vmul.f32 %v529, %v1636
        %v1661 = vmul.f32 %v532, %v1637
        %v1662 = vmul.f32 %v535, %v1638
        %v1663 = vmul.f32 %v538, %v1639
        %v1664 = vmul.f32 %v541, %v1640
        %v1665 = vmul.f32 %v544, %v1641
        %v1666 = vmul.f32 %v547, %v1642
        %v1667 = vmul.f32 %v550, %v1643
        %v1668 = vmul.f32 %v553, %v1644
        %v1669 = vmul.f32 %v556, %v1645
        %v1670 = vmul.f32 %v559, %v1646
        %v1671 = vmul.f32 %v562, %v1647
        %v1672 = vmul.f32 %v565, %v1648
        %v1673 = vmul.f32 %v568, %v1649
        %v1674 = vmax.f32 %v1601, %v1650
        %v1675 = vmax.f32 %v1602, %v1651
        %v1676 = vmax.f32 %v1603, %v1652
        %v1677 = vmax.f32 %v1604, %v1653
        %v1678 = vmax.f32 %v1605, %v1654
        %v1679 = vmax.f32 %v1606, %v1655
        %v1680 = vmax.f32 %v1607, %v1656
        %v1681 = vmax.f32 %v1608, %v1657
        %v1682 = vmax.f32 %v1609, %v1658
        %v1683 = vmax.f32 %v1610, %v1659
        %v1684 = vmax.f32 %v1611, %v1660
        %v1685 = vmax.f32 %v1612, %v1661
        %v1686 = vmax.f32 %v1613, %v1662
        %v1687 = vmax.f32 %v1614, %v1663
        %v1688 = vmax.f32 %v1615, %v1664
        %v1689 = vmax.f32 %v1616, %v1665
        %v1690 = vmax.f32 %v1617, %v1666
        %v1691 = vmax.f32 %v1618, %v1667
        %v1692 = vmax.f32 %v1619, %v1668
        %v1693 = vmax.f32 %v1620, %v1669
        %v1694 = vmax.f32 %v1621, %v1670
        %v1695 = vmax.f32 %v1622, %v1671
        %v1696 = vmax.f32 %v1623, %v1672
        %v1697 = vmax.f32 %v1624, %v1673
        %v1698 = vperm.slane %v791, 0
        %v1699 = vadd.f32 %v612, %v1698
        %v1700 = vadd.f32 %v615, %v1698
        %v1701 = vadd.f32 %v618, %v1698
        %v1702 = vadd.f32 %v621, %v1698
        %v1703 = vadd.f32 %v624, %v1698
        %v1704 = vadd.f32 %v627, %v1698
        %v1705 = vadd.f32 %v630, %v1698
        %v1706 = vadd.f32 %v633, %v1698
        %v1707 = vadd.f32 %v636, %v1698
        %v1708 = vadd.f32 %v639, %v1698
        %v1709 = vadd.f32 %v642, %v1698
        %v1710 = vadd.f32 %v645, %v1698
        %v1711 = vadd.f32 %v648, %v1698
        %v1712 = vadd.f32 %v651, %v1698
        %v1713 = vadd.f32 %v654, %v1698
        %v1714 = vadd.f32 %v657, %v1698
        %v1715 = vadd.f32 %v660, %v1698
        %v1716 = vadd.f32 %v663, %v1698
        %v1717 = vadd.f32 %v666, %v1698
        %v1718 = vadd.f32 %v669, %v1698
        %v1719 = vadd.f32 %v672, %v1698
        %v1720 = vadd.f32 %v675, %v1698
        %v1721 = vadd.f32 %v678, %v1698
        %v1722 = vadd.f32 %v681, %v1698
        %v1747 = vrot.slane %v1699, 1
        %v1748 = vrot.slane %v1700, 1
        %v1749 = vsel %vm1020, %v1747, %v1748
        %v1750 = vrot.slane %v1701, 1
        %v1751 = vsel %vm1020, %v1748, %v1750
        %v1752 = vrot.slane %v1702, 1
        %v1753 = vrot.slane %v1703, 1
        %v1754 = vsel %vm1020, %v1752, %v1753
        %v1755 = vrot.slane %v1704, 1
        %v1756 = vsel %vm1020, %v1753, %v1755
        %v1757 = vrot.slane %v1705, 1
        %v1758 = vrot.slane %v1706, 1
        %v1759 = vsel %vm1020, %v1757, %v1758
        %v1760 = vrot.slane %v1707, 1
        %v1761 = vsel %vm1020, %v1758, %v1760
        %v1762 = vrot.slane %v1708, 1
        %v1763 = vrot.slane %v1709, 1
        %v1764 = vsel %vm1020, %v1762, %v1763
        %v1765 = vrot.slane %v1710, 1
        %v1766 = vsel %vm1020, %v1763, %v1765
        %v1767 = vrot.slane %v1711, 1
        %v1768 = vrot.slane %v1712, 1
        %v1769 = vsel %vm1020, %v1767, %v1768
        %v1770 = vrot.slane %v1713, 1
        %v1771 = vsel %vm1020, %v1768, %v1770
        %v1772 = vrot.slane %v1714, 1
        %v1773 = vrot.slane %v1715, 1
        %v1774 = vsel %vm1020, %v1772, %v1773
        %v1775 = vrot.slane %v1716, 1
        %v1776 = vsel %vm1020, %v1773, %v1775
        %v1777 = vrot.slane %v1717, 1
        %v1778 = vrot.slane %v1718, 1
        %v1779 = vsel %vm1020, %v1777, %v1778
        %v1780 = vrot.slane %v1719, 1
        %v1781 = vsel %vm1020, %v1778, %v1780
        %v1782 = vrot.slane %v1720, 1
        %v1783 = vrot.slane %v1721, 1
        %v1784 = vsel %vm1020, %v1782, %v1783
        %v1785 = vrot.slane %v1722, 1
        %v1786 = vsel %vm1020, %v1783, %v1785
        %v1811 = vmul.f32 %v499, %v1749
        %v1812 = vmul.f32 %v502, %v1751
        %v1813 = vmul.f32 %v505, %v1750
        %v1814 = vmul.f32 %v508, %v1754
        %v1815 = vmul.f32 %v511, %v1756
        %v1816 = vmul.f32 %v514, %v1755
        %v1817 = vmul.f32 %v517, %v1759
        %v1818 = vmul.f32 %v520, %v1761
        %v1819 = vmul.f32 %v523, %v1760
        %v1820 = vmul.f32 %v526, %v1764
        %v1821 = vmul.f32 %v529, %v1766
        %v1822 = vmul.f32 %v532, %v1765
        %v1823 = vmul.f32 %v535, %v1769
        %v1824 = vmul.f32 %v538, %v1771
        %v1825 = vmul.f32 %v541, %v1770
        %v1826 = vmul.f32 %v544, %v1774
        %v1827 = vmul.f32 %v547, %v1776
        %v1828 = vmul.f32 %v550, %v1775
        %v1829 = vmul.f32 %v553, %v1779
        %v1830 = vmul.f32 %v556, %v1781
        %v1831 = vmul.f32 %v559, %v1780
        %v1832 = vmul.f32 %v562, %v1784
        %v1833 = vmul.f32 %v565, %v1786
        %v1834 = vmul.f32 %v568, %v1785
        %v1835 = vmax.f32 %v1674, %v1811
        %v1836 = vmax.f32 %v1675, %v1812
        %v1837 = vmax.f32 %v1676, %v1813
        %v1838 = vmax.f32 %v1677, %v1814
        %v1839 = vmax.f32 %v1678, %v1815
        %v1840 = vmax.f32 %v1679, %v1816
        %v1841 = vmax.f32 %v1680, %v1817
        %v1842 = vmax.f32 %v1681, %v1818
        %v1843 = vmax.f32 %v1682, %v1819
        %v1844 = vmax.f32 %v1683, %v1820
        %v1845 = vmax.f32 %v1684, %v1821
        %v1846 = vmax.f32 %v1685, %v1822
        %v1847 = vmax.f32 %v1686, %v1823
        %v1848 = vmax.f32 %v1687, %v1824
        %v1849 = vmax.f32 %v1688, %v1825
        %v1850 = vmax.f32 %v1689, %v1826
        %v1851 = vmax.f32 %v1690, %v1827
        %v1852 = vmax.f32 %v1691, %v1828
        %v1853 = vmax.f32 %v1692, %v1829
        %v1854 = vmax.f32 %v1693, %v1830
        %v1855 = vmax.f32 %v1694, %v1831
        %v1856 = vmax.f32 %v1695, %v1832
        %v1857 = vmax.f32 %v1696, %v1833
        %v1858 = vmax.f32 %v1697, %v1834
        %v1859 = vsub.f32 %v874, %v1835
        %v1860 = vsub.f32 %v875, %v1836
        %v1861 = vsub.f32 %v876, %v1837
        %v1862 = vsub.f32 %v877, %v1838
        %v1863 = vsub.f32 %v878, %v1839
        %v1864 = vsub.f32 %v879, %v1840
        %v1865 = vsub.f32 %v880, %v1841
        %v1866 = vsub.f32 %v881, %v1842
        %v1867 = vsub.f32 %v882, %v1843
        %v1868 = vsub.f32 %v883, %v1844
        %v1869 = vsub.f32 %v884, %v1845
        %v1870 = vsub.f32 %v885, %v1846
        %v1871 = vsub.f32 %v886, %v1847
        %v1872 = vsub.f32 %v887, %v1848
        %v1873 = vsub.f32 %v888, %v1849
        %v1874 = vsub.f32 %v889, %v1850
        %v1875 = vsub.f32 %v890, %v1851
        %v1876 = vsub.f32 %v891, %v1852
        %v1877 = vsub.f32 %v892, %v1853
        %v1878 = vsub.f32 %v893, %v1854
        %v1879 = vsub.f32 %v894, %v1855
        %v1880 = vsub.f32 %v895, %v1856
        %v1881 = vsub.f32 %v896, %v1857
        %v1882 = vsub.f32 %v897, %v1858
        %v1883 = vmul.f32 %v1859, 1.442695
        %v1884 = vpow.pop %v1883
        %v1885 = vmul.f32 %v1860, 1.442695
        %v1886 = vpow.pop %v1885
        %v1887 = vmul.f32 %v1861, 1.442695
        %v1888 = vpow.pop %v1887
        %v1889 = vmul.f32 %v1862, 1.442695
        %v1890 = vpow.pop %v1889
        %v1891 = vmul.f32 %v1863, 1.442695
        %v1892 = vpow.pop %v1891
        %v1893 = vmul.f32 %v1864, 1.442695
        %v1894 = vpow.pop %v1893
        %v1895 = vmul.f32 %v1865, 1.442695
        %v1896 = vpow.pop %v1895
        %v1897 = vmul.f32 %v1866, 1.442695
        %v1898 = vpow.pop %v1897
        %v1899 = vmul.f32 %v1867, 1.442695
        %v1900 = vpow.pop %v1899
        %v1901 = vmul.f32 %v1868, 1.442695
        %v1902 = vpow.pop %v1901
        %v1903 = vmul.f32 %v1869, 1.442695
        %v1904 = vpow.pop %v1903
        %v1905 = vmul.f32 %v1870, 1.442695
        %v1906 = vpow.pop %v1905
        %v1907 = vmul.f32 %v1871, 1.442695
        %v1908 = vpow.pop %v1907
        %v1909 = vmul.f32 %v1872, 1.442695
        %v1910 = vpow.pop %v1909
        %v1911 = vmul.f32 %v1873, 1.442695
        %v1912 = vpow.pop %v1911
        %v1913 = vmul.f32 %v1874, 1.442695
        %v1914 = vpow.pop %v1913
        %v1915 = vmul.f32 %v1875, 1.442695
        %v1916 = vpow.pop %v1915
        %v1917 = vmul.f32 %v1876, 1.442695
        %v1918 = vpow.pop %v1917
        %v1919 = vmul.f32 %v1877, 1.442695
        %v1920 = vpow.pop %v1919
        %v1921 = vmul.f32 %v1878, 1.442695
        %v1922 = vpow.pop %v1921
        %v1923 = vmul.f32 %v1879, 1.442695
        %v1924 = vpow.pop %v1923
        %v1925 = vmul.f32 %v1880, 1.442695
        %v1926 = vpow.pop %v1925
        %v1927 = vmul.f32 %v1881, 1.442695
        %v1928 = vpow.pop %v1927
        %v1929 = vmul.f32 %v1882, 1.442695
        %v1930 = vpow.pop %v1929
        %v1931 = vadd.f32 %v1884, 0.0
        %v1932 = vadd.f32 %v1886, 0.0
        %v1933 = vadd.f32 %v1888, 0.0
        %v1934 = vadd.f32 %v1890, 0.0
        %v1935 = vadd.f32 %v1892, 0.0
        %v1936 = vadd.f32 %v1894, 0.0
        %v1937 = vadd.f32 %v1896, 0.0
        %v1938 = vadd.f32 %v1898, 0.0
        %v1939 = vadd.f32 %v1900, 0.0
        %v1940 = vadd.f32 %v1902, 0.0
        %v1941 = vadd.f32 %v1904, 0.0
        %v1942 = vadd.f32 %v1906, 0.0
        %v1943 = vadd.f32 %v1908, 0.0
        %v1944 = vadd.f32 %v1910, 0.0
        %v1945 = vadd.f32 %v1912, 0.0
        %v1946 = vadd.f32 %v1914, 0.0
        %v1947 = vadd.f32 %v1916, 0.0
        %v1948 = vadd.f32 %v1918, 0.0
        %v1949 = vadd.f32 %v1920, 0.0
        %v1950 = vadd.f32 %v1922, 0.0
        %v1951 = vadd.f32 %v1924, 0.0
        %v1952 = vadd.f32 %v1926, 0.0
        %v1953 = vadd.f32 %v1928, 0.0
        %v1954 = vadd.f32 %v1930, 0.0
        %v1971 = vrot.slane %v701, 7
        %v1972 = vrot.slane %v704, 7
        %v1973 = vsel %vm825, %v1971, %v1972
        %v1974 = vrot.slane %v710, 7
        %v1975 = vrot.slane %v713, 7
        %v1976 = vsel %vm825, %v1974, %v1975
        %v1977 = vrot.slane %v719, 7
        %v1978 = vrot.slane %v722, 7
        %v1979 = vsel %vm825, %v1977, %v1978
        %v1980 = vrot.slane %v728, 7
        %v1981 = vrot.slane %v731, 7
        %v1982 = vsel %vm825, %v1980, %v1981
        %v1983 = vrot.slane %v737, 7
        %v1984 = vrot.slane %v740, 7
        %v1985 = vsel %vm825, %v1983, %v1984
        %v1986 = vrot.slane %v746, 7
        %v1987 = vrot.slane %v749, 7
        %v1988 = vsel %vm825, %v1986, %v1987
        %v1989 = vrot.slane %v755, 7
        %v1990 = vrot.slane %v758, 7
        %v1991 = vsel %vm825, %v1989, %v1990
        %v1992 = vrot.slane %v764, 7
        %v1993 = vrot.slane %v767, 7
        %v1994 = vsel %vm825, %v1992, %v1993
        %v2019 = vmul.f32 %v1884, %v1971
        %v2020 = vmul.f32 %v1886, %v1973
        %v2021 = vmul.f32 %v1888, %v1972
        %v2022 = vmul.f32 %v1890, %v1974
        %v2023 = vmul.f32 %v1892, %v1976
        %v2024 = vmul.f32 %v1894, %v1975
        %v2025 = vmul.f32 %v1896, %v1977
        %v2026 = vmul.f32 %v1898, %v1979
        %v2027 = vmul.f32 %v1900, %v1978
        %v2028 = vmul.f32 %v1902, %v1980
        %v2029 = vmul.f32 %v1904, %v1982
        %v2030 = vmul.f32 %v1906, %v1981
        %v2031 = vmul.f32 %v1908, %v1983
        %v2032 = vmul.f32 %v1910, %v1985
        %v2033 = vmul.f32 %v1912, %v1984
        %v2034 = vmul.f32 %v1914, %v1986
        %v2035 = vmul.f32 %v1916, %v1988
        %v2036 = vmul.f32 %v1918, %v1987
        %v2037 = vmul.f32 %v1920, %v1989
        %v2038 = vmul.f32 %v1922, %v1991
        %v2039 = vmul.f32 %v1924, %v1990
        %v2040 = vmul.f32 %v1926, %v1992
        %v2041 = vmul.f32 %v1928, %v1994
        %v2042 = vmul.f32 %v1930, %v1993
        %v2043 = vadd.f32 %v2019, 0.0
        %v2044 = vadd.f32 %v2020, 0.0
        %v2045 = vadd.f32 %v2021, 0.0
        %v2046 = vadd.f32 %v2022, 0.0
        %v2047 = vadd.f32 %v2023, 0.0
        %v2048 = vadd.f32 %v2024, 0.0
        %v2049 = vadd.f32 %v2025, 0.0
        %v2050 = vadd.f32 %v2026, 0.0
        %v2051 = vadd.f32 %v2027, 0.0
        %v2052 = vadd.f32 %v2028, 0.0
        %v2053 = vadd.f32 %v2029, 0.0
        %v2054 = vadd.f32 %v2030, 0.0
        %v2055 = vadd.f32 %v2031, 0.0
        %v2056 = vadd.f32 %v2032, 0.0
        %v2057 = vadd.f32 %v2033, 0.0
        %v2058 = vadd.f32 %v2034, 0.0
        %v2059 = vadd.f32 %v2035, 0.0
        %v2060 = vadd.f32 %v2036, 0.0
        %v2061 = vadd.f32 %v2037, 0.0
        %v2062 = vadd.f32 %v2038, 0.0
        %v2063 = vadd.f32 %v2039, 0.0
        %v2064 = vadd.f32 %v2040, 0.0
        %v2065 = vadd.f32 %v2041, 0.0
        %v2066 = vadd.f32 %v2042, 0.0
        %v2067 = vsub.f32 %v923, %v1835
        %v2068 = vsub.f32 %v924, %v1836
        %v2069 = vsub.f32 %v925, %v1837
        %v2070 = vsub.f32 %v926, %v1838
        %v2071 = vsub.f32 %v927, %v1839
        %v2072 = vsub.f32 %v928, %v1840
        %v2073 = vsub.f32 %v929, %v1841
        %v2074 = vsub.f32 %v930, %v1842
        %v2075 = vsub.f32 %v931, %v1843
        %v2076 = vsub.f32 %v932, %v1844
        %v2077 = vsub.f32 %v933, %v1845
        %v2078 = vsub.f32 %v934, %v1846
        %v2079 = vsub.f32 %v935, %v1847
        %v2080 = vsub.f32 %v936, %v1848
        %v2081 = vsub.f32 %v937, %v1849
        %v2082 = vsub.f32 %v938, %v1850
        %v2083 = vsub.f32 %v939, %v1851
        %v2084 = vsub.f32 %v940, %v1852
        %v2085 = vsub.f32 %v941, %v1853
        %v2086 = vsub.f32 %v942, %v1854
        %v2087 = vsub.f32 %v943, %v1855
        %v2088 = vsub.f32 %v944, %v1856
        %v2089 = vsub.f32 %v945, %v1857
        %v2090 = vsub.f32 %v946, %v1858
        %v2091 = vmul.f32 %v2067, 1.442695
        %v2092 = vpow.pop %v2091
        %v2093 = vmul.f32 %v2068, 1.442695
        %v2094 = vpow.pop %v2093
        %v2095 = vmul.f32 %v2069, 1.442695
        %v2096 = vpow.pop %v2095
        %v2097 = vmul.f32 %v2070, 1.442695
        %v2098 = vpow.pop %v2097
        %v2099 = vmul.f32 %v2071, 1.442695
        %v2100 = vpow.pop %v2099
        %v2101 = vmul.f32 %v2072, 1.442695
        %v2102 = vpow.pop %v2101
        %v2103 = vmul.f32 %v2073, 1.442695
        %v2104 = vpow.pop %v2103
        %v2105 = vmul.f32 %v2074, 1.442695
        %v2106 = vpow.pop %v2105
        %v2107 = vmul.f32 %v2075, 1.442695
        %v2108 = vpow.pop %v2107
        %v2109 = vmul.f32 %v2076, 1.442695
        %v2110 = vpow.pop %v2109
        %v2111 = vmul.f32 %v2077, 1.442695
        %v2112 = vpow.pop %v2111
        %v2113 = vmul.f32 %v2078, 1.442695
        %v2114 = vpow.pop %v2113
        %v2115 = vmul.f32 %v2079, 1.442695
        %v2116 = vpow.pop %v2115
        %v2117 = vmul.f32 %v2080, 1.442695
        %v2118 = vpow.pop %v2117
        %v2119 = vmul.f32 %v2081, 1.442695
        %v2120 = vpow.pop %v2119
        %v2121 = vmul.f32 %v2082, 1.442695
        %v2122 = vpow.pop %v2121
        %v2123 = vmul.f32 %v2083, 1.442695
        %v2124 = vpow.pop %v2123
        %v2125 = vmul.f32 %v2084, 1.442695
        %v2126 = vpow.pop %v2125
        %v2127 = vmul.f32 %v2085, 1.442695
        %v2128 = vpow.pop %v2127
        %v2129 = vmul.f32 %v2086, 1.442695
        %v2130 = vpow.pop %v2129
        %v2131 = vmul.f32 %v2087, 1.442695
        %v2132 = vpow.pop %v2131
        %v2133 = vmul.f32 %v2088, 1.442695
        %v2134 = vpow.pop %v2133
        %v2135 = vmul.f32 %v2089, 1.442695
        %v2136 = vpow.pop %v2135
        %v2137 = vmul.f32 %v2090, 1.442695
        %v2138 = vpow.pop %v2137
        %v2139 = vadd.f32 %v1931, %v2092
        %v2140 = vadd.f32 %v1932, %v2094
        %v2141 = vadd.f32 %v1933, %v2096
        %v2142 = vadd.f32 %v1934, %v2098
        %v2143 = vadd.f32 %v1935, %v2100
        %v2144 = vadd.f32 %v1936, %v2102
        %v2145 = vadd.f32 %v1937, %v2104
        %v2146 = vadd.f32 %v1938, %v2106
        %v2147 = vadd.f32 %v1939, %v2108
        %v2148 = vadd.f32 %v1940, %v2110
        %v2149 = vadd.f32 %v1941, %v2112
        %v2150 = vadd.f32 %v1942, %v2114
        %v2151 = vadd.f32 %v1943, %v2116
        %v2152 = vadd.f32 %v1944, %v2118
        %v2153 = vadd.f32 %v1945, %v2120
        %v2154 = vadd.f32 %v1946, %v2122
        %v2155 = vadd.f32 %v1947, %v2124
        %v2156 = vadd.f32 %v1948, %v2126
        %v2157 = vadd.f32 %v1949, %v2128
        %v2158 = vadd.f32 %v1950, %v2130
        %v2159 = vadd.f32 %v1951, %v2132
        %v2160 = vadd.f32 %v1952, %v2134
        %v2161 = vadd.f32 %v1953, %v2136
        %v2162 = vadd.f32 %v1954, %v2138
        %v2163 = vmul.f32 %v2092, %v701
        %v2164 = vmul.f32 %v2094, %v704
        %v2165 = vmul.f32 %v2096, %v707
        %v2166 = vmul.f32 %v2098, %v710
        %v2167 = vmul.f32 %v2100, %v713
        %v2168 = vmul.f32 %v2102, %v716
        %v2169 = vmul.f32 %v2104, %v719
        %v2170 = vmul.f32 %v2106, %v722
        %v2171 = vmul.f32 %v2108, %v725
        %v2172 = vmul.f32 %v2110, %v728
        %v2173 = vmul.f32 %v2112, %v731
        %v2174 = vmul.f32 %v2114, %v734
        %v2175 = vmul.f32 %v2116, %v737
        %v2176 = vmul.f32 %v2118, %v740
        %v2177 = vmul.f32 %v2120, %v743
        %v2178 = vmul.f32 %v2122, %v746
        %v2179 = vmul.f32 %v2124, %v749
        %v2180 = vmul.f32 %v2126, %v752
        %v2181 = vmul.f32 %v2128, %v755
        %v2182 = vmul.f32 %v2130, %v758
        %v2183 = vmul.f32 %v2132, %v761
        %v2184 = vmul.f32 %v2134, %v764
        %v2185 = vmul.f32 %v2136, %v767
        %v2186 = vmul.f32 %v2138, %v770
        %v2187 = vadd.f32 %v2043, %v2163
        %v2188 = vadd.f32 %v2044, %v2164
        %v2189 = vadd.f32 %v2045, %v2165
        %v2190 = vadd.f32 %v2046, %v2166
        %v2191 = vadd.f32 %v2047, %v2167
        %v2192 = vadd.f32 %v2048, %v2168
        %v2193 = vadd.f32 %v2049, %v2169
        %v2194 = vadd.f32 %v2050, %v2170
        %v2195 = vadd.f32 %v2051, %v2171
        %v2196 = vadd.f32 %v2052, %v2172
        %v2197 = vadd.f32 %v2053, %v2173
        %v2198 = vadd.f32 %v2054, %v2174
        %v2199 = vadd.f32 %v2055, %v2175
        %v2200 = vadd.f32 %v2056, %v2176
        %v2201 = vadd.f32 %v2057, %v2177
        %v2202 = vadd.f32 %v2058, %v2178
        %v2203 = vadd.f32 %v2059, %v2179
        %v2204 = vadd.f32 %v2060, %v2180
        %v2205 = vadd.f32 %v2061, %v2181
        %v2206 = vadd.f32 %v2062, %v2182
        %v2207 = vadd.f32 %v2063, %v2183
        %v2208 = vadd.f32 %v2064, %v2184
        %v2209 = vadd.f32 %v2065, %v2185
        %v2210 = vadd.f32 %v2066, %v2186
        %v2211 = vsub.f32 %v1085, %v1835
        %v2212 = vsub.f32 %v1086, %v1836
        %v2213 = vsub.f32 %v1087, %v1837
        %v2214 = vsub.f32 %v1088, %v1838
        %v2215 = vsub.f32 %v1089, %v1839
        %v2216 = vsub.f32 %v1090, %v1840
        %v2217 = vsub.f32 %v1091, %v1841
        %v2218 = vsub.f32 %v1092, %v1842
        %v2219 = vsub.f32 %v1093, %v1843
        %v2220 = vsub.f32 %v1094, %v1844
        %v2221 = vsub.f32 %v1095, %v1845
        %v2222 = vsub.f32 %v1096, %v1846
        %v2223 = vsub.f32 %v1097, %v1847
        %v2224 = vsub.f32 %v1098, %v1848
        %v2225 = vsub.f32 %v1099, %v1849
        %v2226 = vsub.f32 %v1100, %v1850
        %v2227 = vsub.f32 %v1101, %v1851
        %v2228 = vsub.f32 %v1102, %v1852
        %v2229 = vsub.f32 %v1103, %v1853
        %v2230 = vsub.f32 %v1104, %v1854
        %v2231 = vsub.f32 %v1105, %v1855
        %v2232 = vsub.f32 %v1106, %v1856
        %v2233 = vsub.f32 %v1107, %v1857
        %v2234 = vsub.f32 %v1108, %v1858
        %v2235 = vmul.f32 %v2211, 1.442695
        %v2236 = vpow.pop %v2235
        %v2237 = vmul.f32 %v2212, 1.442695
        %v2238 = vpow.pop %v2237
        %v2239 = vmul.f32 %v2213, 1.442695
        %v2240 = vpow.pop %v2239
        %v2241 = vmul.f32 %v2214, 1.442695
        %v2242 = vpow.pop %v2241
        %v2243 = vmul.f32 %v2215, 1.442695
        %v2244 = vpow.pop %v2243
        %v2245 = vmul.f32 %v2216, 1.442695
        %v2246 = vpow.pop %v2245
        %v2247 = vmul.f32 %v2217, 1.442695
        %v2248 = vpow.pop %v2247
        %v2249 = vmul.f32 %v2218, 1.442695
        %v2250 = vpow.pop %v2249
        %v2251 = vmul.f32 %v2219, 1.442695
        %v2252 = vpow.pop %v2251
        %v2253 = vmul.f32 %v2220, 1.442695
        %v2254 = vpow.pop %v2253
        %v2255 = vmul.f32 %v2221, 1.442695
        %v2256 = vpow.pop %v2255
        %v2257 = vmul.f32 %v2222, 1.442695
        %v2258 = vpow.pop %v2257
        %v2259 = vmul.f32 %v2223, 1.442695
        %v2260 = vpow.pop %v2259
        %v2261 = vmul.f32 %v2224, 1.442695
        %v2262 = vpow.pop %v2261
        %v2263 = vmul.f32 %v2225, 1.442695
        %v2264 = vpow.pop %v2263
        %v2265 = vmul.f32 %v2226, 1.442695
        %v2266 = vpow.pop %v2265
        %v2267 = vmul.f32 %v2227, 1.442695
        %v2268 = vpow.pop %v2267
        %v2269 = vmul.f32 %v2228, 1.442695
        %v2270 = vpow.pop %v2269
        %v2271 = vmul.f32 %v2229, 1.442695
        %v2272 = vpow.pop %v2271
        %v2273 = vmul.f32 %v2230, 1.442695
        %v2274 = vpow.pop %v2273
        %v2275 = vmul.f32 %v2231, 1.442695
        %v2276 = vpow.pop %v2275
        %v2277 = vmul.f32 %v2232, 1.442695
        %v2278 = vpow.pop %v2277
        %v2279 = vmul.f32 %v2233, 1.442695
        %v2280 = vpow.pop %v2279
        %v2281 = vmul.f32 %v2234, 1.442695
        %v2282 = vpow.pop %v2281
        %v2283 = vadd.f32 %v2139, %v2236
        %v2284 = vadd.f32 %v2140, %v2238
        %v2285 = vadd.f32 %v2141, %v2240
        %v2286 = vadd.f32 %v2142, %v2242
        %v2287 = vadd.f32 %v2143, %v2244
        %v2288 = vadd.f32 %v2144, %v2246
        %v2289 = vadd.f32 %v2145, %v2248
        %v2290 = vadd.f32 %v2146, %v2250
        %v2291 = vadd.f32 %v2147, %v2252
        %v2292 = vadd.f32 %v2148, %v2254
        %v2293 = vadd.f32 %v2149, %v2256
        %v2294 = vadd.f32 %v2150, %v2258
        %v2295 = vadd.f32 %v2151, %v2260
        %v2296 = vadd.f32 %v2152, %v2262
        %v2297 = vadd.f32 %v2153, %v2264
        %v2298 = vadd.f32 %v2154, %v2266
        %v2299 = vadd.f32 %v2155, %v2268
        %v2300 = vadd.f32 %v2156, %v2270
        %v2301 = vadd.f32 %v2157, %v2272
        %v2302 = vadd.f32 %v2158, %v2274
        %v2303 = vadd.f32 %v2159, %v2276
        %v2304 = vadd.f32 %v2160, %v2278
        %v2305 = vadd.f32 %v2161, %v2280
        %v2306 = vadd.f32 %v2162, %v2282
        %v2315 = vrot.slane %v701, 1
        %v2316 = vrot.slane %v704, 1
        %v2317 = vsel %vm1020, %v2315, %v2316
        %v2318 = vrot.slane %v707, 1
        %v2319 = vsel %vm1020, %v2316, %v2318
        %v2320 = vrot.slane %v710, 1
        %v2321 = vrot.slane %v713, 1
        %v2322 = vsel %vm1020, %v2320, %v2321
        %v2323 = vrot.slane %v716, 1
        %v2324 = vsel %vm1020, %v2321, %v2323
        %v2325 = vrot.slane %v719, 1
        %v2326 = vrot.slane %v722, 1
        %v2327 = vsel %vm1020, %v2325, %v2326
        %v2328 = vrot.slane %v725, 1
        %v2329 = vsel %vm1020, %v2326, %v2328
        %v2330 = vrot.slane %v728, 1
        %v2331 = vrot.slane %v731, 1
        %v2332 = vsel %vm1020, %v2330, %v2331
        %v2333 = vrot.slane %v734, 1
        %v2334 = vsel %vm1020, %v2331, %v2333
        %v2335 = vrot.slane %v737, 1
        %v2336 = vrot.slane %v740, 1
        %v2337 = vsel %vm1020, %v2335, %v2336
        %v2338 = vrot.slane %v743, 1
        %v2339 = vsel %vm1020, %v2336, %v2338
        %v2340 = vrot.slane %v746, 1
        %v2341 = vrot.slane %v749, 1
        %v2342 = vsel %vm1020, %v2340, %v2341
        %v2343 = vrot.slane %v752, 1
        %v2344 = vsel %vm1020, %v2341, %v2343
        %v2345 = vrot.slane %v755, 1
        %v2346 = vrot.slane %v758, 1
        %v2347 = vsel %vm1020, %v2345, %v2346
        %v2348 = vrot.slane %v761, 1
        %v2349 = vsel %vm1020, %v2346, %v2348
        %v2350 = vrot.slane %v764, 1
        %v2351 = vrot.slane %v767, 1
        %v2352 = vsel %vm1020, %v2350, %v2351
        %v2353 = vrot.slane %v770, 1
        %v2354 = vsel %vm1020, %v2351, %v2353
        %v2379 = vmul.f32 %v2236, %v2317
        %v2380 = vmul.f32 %v2238, %v2319
        %v2381 = vmul.f32 %v2240, %v2318
        %v2382 = vmul.f32 %v2242, %v2322
        %v2383 = vmul.f32 %v2244, %v2324
        %v2384 = vmul.f32 %v2246, %v2323
        %v2385 = vmul.f32 %v2248, %v2327
        %v2386 = vmul.f32 %v2250, %v2329
        %v2387 = vmul.f32 %v2252, %v2328
        %v2388 = vmul.f32 %v2254, %v2332
        %v2389 = vmul.f32 %v2256, %v2334
        %v2390 = vmul.f32 %v2258, %v2333
        %v2391 = vmul.f32 %v2260, %v2337
        %v2392 = vmul.f32 %v2262, %v2339
        %v2393 = vmul.f32 %v2264, %v2338
        %v2394 = vmul.f32 %v2266, %v2342
        %v2395 = vmul.f32 %v2268, %v2344
        %v2396 = vmul.f32 %v2270, %v2343
        %v2397 = vmul.f32 %v2272, %v2347
        %v2398 = vmul.f32 %v2274, %v2349
        %v2399 = vmul.f32 %v2276, %v2348
        %v2400 = vmul.f32 %v2278, %v2352
        %v2401 = vmul.f32 %v2280, %v2354
        %v2402 = vmul.f32 %v2282, %v2353
        %v2403 = vadd.f32 %v2187, %v2379
        %v2404 = vadd.f32 %v2188, %v2380
        %v2405 = vadd.f32 %v2189, %v2381
        %v2406 = vadd.f32 %v2190, %v2382
        %v2407 = vadd.f32 %v2191, %v2383
        %v2408 = vadd.f32 %v2192, %v2384
        %v2409 = vadd.f32 %v2193, %v2385
        %v2410 = vadd.f32 %v2194, %v2386
        %v2411 = vadd.f32 %v2195, %v2387
        %v2412 = vadd.f32 %v2196, %v2388
        %v2413 = vadd.f32 %v2197, %v2389
        %v2414 = vadd.f32 %v2198, %v2390
        %v2415 = vadd.f32 %v2199, %v2391
        %v2416 = vadd.f32 %v2200, %v2392
        %v2417 = vadd.f32 %v2201, %v2393
        %v2418 = vadd.f32 %v2202, %v2394
        %v2419 = vadd.f32 %v2203, %v2395
        %v2420 = vadd.f32 %v2204, %v2396
        %v2421 = vadd.f32 %v2205, %v2397
        %v2422 = vadd.f32 %v2206, %v2398
        %v2423 = vadd.f32 %v2207, %v2399
        %v2424 = vadd.f32 %v2208, %v2400
        %v2425 = vadd.f32 %v2209, %v2401
        %v2426 = vadd.f32 %v2210, %v2402
        %v2427 = vsub.f32 %v1214, %v1835
        %v2428 = vsub.f32 %v1215, %v1836
        %v2429 = vsub.f32 %v1216, %v1837
        %v2430 = vsub.f32 %v1217, %v1838
        %v2431 = vsub.f32 %v1218, %v1839
        %v2432 = vsub.f32 %v1219, %v1840
        %v2433 = vsub.f32 %v1220, %v1841
        %v2434 = vsub.f32 %v1221, %v1842
        %v2435 = vsub.f32 %v1222, %v1843
        %v2436 = vsub.f32 %v1223, %v1844
        %v2437 = vsub.f32 %v1224, %v1845
        %v2438 = vsub.f32 %v1225, %v1846
        %v2439 = vsub.f32 %v1226, %v1847
        %v2440 = vsub.f32 %v1227, %v1848
        %v2441 = vsub.f32 %v1228, %v1849
        %v2442 = vsub.f32 %v1229, %v1850
        %v2443 = vsub.f32 %v1230, %v1851
        %v2444 = vsub.f32 %v1231, %v1852
        %v2445 = vsub.f32 %v1232, %v1853
        %v2446 = vsub.f32 %v1233, %v1854
        %v2447 = vsub.f32 %v1234, %v1855
        %v2448 = vsub.f32 %v1235, %v1856
        %v2449 = vsub.f32 %v1236, %v1857
        %v2450 = vsub.f32 %v1237, %v1858
        %v2451 = vmul.f32 %v2427, 1.442695
        %v2452 = vpow.pop %v2451
        %v2453 = vmul.f32 %v2428, 1.442695
        %v2454 = vpow.pop %v2453
        %v2455 = vmul.f32 %v2429, 1.442695
        %v2456 = vpow.pop %v2455
        %v2457 = vmul.f32 %v2430, 1.442695
        %v2458 = vpow.pop %v2457
        %v2459 = vmul.f32 %v2431, 1.442695
        %v2460 = vpow.pop %v2459
        %v2461 = vmul.f32 %v2432, 1.442695
        %v2462 = vpow.pop %v2461
        %v2463 = vmul.f32 %v2433, 1.442695
        %v2464 = vpow.pop %v2463
        %v2465 = vmul.f32 %v2434, 1.442695
        %v2466 = vpow.pop %v2465
        %v2467 = vmul.f32 %v2435, 1.442695
        %v2468 = vpow.pop %v2467
        %v2469 = vmul.f32 %v2436, 1.442695
        %v2470 = vpow.pop %v2469
        %v2471 = vmul.f32 %v2437, 1.442695
        %v2472 = vpow.pop %v2471
        %v2473 = vmul.f32 %v2438, 1.442695
        %v2474 = vpow.pop %v2473
        %v2475 = vmul.f32 %v2439, 1.442695
        %v2476 = vpow.pop %v2475
        %v2477 = vmul.f32 %v2440, 1.442695
        %v2478 = vpow.pop %v2477
        %v2479 = vmul.f32 %v2441, 1.442695
        %v2480 = vpow.pop %v2479
        %v2481 = vmul.f32 %v2442, 1.442695
        %v2482 = vpow.pop %v2481
        %v2483 = vmul.f32 %v2443, 1.442695
        %v2484 = vpow.pop %v2483
        %v2485 = vmul.f32 %v2444, 1.442695
        %v2486 = vpow.pop %v2485
        %v2487 = vmul.f32 %v2445, 1.442695
        %v2488 = vpow.pop %v2487
        %v2489 = vmul.f32 %v2446, 1.442695
        %v2490 = vpow.pop %v2489
        %v2491 = vmul.f32 %v2447, 1.442695
        %v2492 = vpow.pop %v2491
        %v2493 = vmul.f32 %v2448, 1.442695
        %v2494 = vpow.pop %v2493
        %v2495 = vmul.f32 %v2449, 1.442695
        %v2496 = vpow.pop %v2495
        %v2497 = vmul.f32 %v2450, 1.442695
        %v2498 = vpow.pop %v2497
        %v2499 = vadd.f32 %v2283, %v2452
        %v2500 = vadd.f32 %v2284, %v2454
        %v2501 = vadd.f32 %v2285, %v2456
        %v2502 = vadd.f32 %v2286, %v2458
        %v2503 = vadd.f32 %v2287, %v2460
        %v2504 = vadd.f32 %v2288, %v2462
        %v2505 = vadd.f32 %v2289, %v2464
        %v2506 = vadd.f32 %v2290, %v2466
        %v2507 = vadd.f32 %v2291, %v2468
        %v2508 = vadd.f32 %v2292, %v2470
        %v2509 = vadd.f32 %v2293, %v2472
        %v2510 = vadd.f32 %v2294, %v2474
        %v2511 = vadd.f32 %v2295, %v2476
        %v2512 = vadd.f32 %v2296, %v2478
        %v2513 = vadd.f32 %v2297, %v2480
        %v2514 = vadd.f32 %v2298, %v2482
        %v2515 = vadd.f32 %v2299, %v2484
        %v2516 = vadd.f32 %v2300, %v2486
        %v2517 = vadd.f32 %v2301, %v2488
        %v2518 = vadd.f32 %v2302, %v2490
        %v2519 = vadd.f32 %v2303, %v2492
        %v2520 = vadd.f32 %v2304, %v2494
        %v2521 = vadd.f32 %v2305, %v2496
        %v2522 = vadd.f32 %v2306, %v2498
        %v2525 = vrot.slane %v773, 7
        %v2526 = vrot.slane %v776, 7
        %v2527 = vsel %vm825, %v2525, %v2526
        %v2531 = vmul.f32 %v2452, %v1974
        %v2532 = vmul.f32 %v2454, %v1976
        %v2533 = vmul.f32 %v2456, %v1975
        %v2534 = vmul.f32 %v2458, %v1977
        %v2535 = vmul.f32 %v2460, %v1979
        %v2536 = vmul.f32 %v2462, %v1978
        %v2537 = vmul.f32 %v2464, %v1980
        %v2538 = vmul.f32 %v2466, %v1982
        %v2539 = vmul.f32 %v2468, %v1981
        %v2540 = vmul.f32 %v2470, %v1983
        %v2541 = vmul.f32 %v2472, %v1985
        %v2542 = vmul.f32 %v2474, %v1984
        %v2543 = vmul.f32 %v2476, %v1986
        %v2544 = vmul.f32 %v2478, %v1988
        %v2545 = vmul.f32 %v2480, %v1987
        %v2546 = vmul.f32 %v2482, %v1989
        %v2547 = vmul.f32 %v2484, %v1991
        %v2548 = vmul.f32 %v2486, %v1990
        %v2549 = vmul.f32 %v2488, %v1992
        %v2550 = vmul.f32 %v2490, %v1994
        %v2551 = vmul.f32 %v2492, %v1993
        %v2552 = vmul.f32 %v2494, %v2525
        %v2553 = vmul.f32 %v2496, %v2527
        %v2554 = vmul.f32 %v2498, %v2526
        %v2555 = vadd.f32 %v2403, %v2531
        %v2556 = vadd.f32 %v2404, %v2532
        %v2557 = vadd.f32 %v2405, %v2533
        %v2558 = vadd.f32 %v2406, %v2534
        %v2559 = vadd.f32 %v2407, %v2535
        %v2560 = vadd.f32 %v2408, %v2536
        %v2561 = vadd.f32 %v2409, %v2537
        %v2562 = vadd.f32 %v2410, %v2538
        %v2563 = vadd.f32 %v2411, %v2539
        %v2564 = vadd.f32 %v2412, %v2540
        %v2565 = vadd.f32 %v2413, %v2541
        %v2566 = vadd.f32 %v2414, %v2542
        %v2567 = vadd.f32 %v2415, %v2543
        %v2568 = vadd.f32 %v2416, %v2544
        %v2569 = vadd.f32 %v2417, %v2545
        %v2570 = vadd.f32 %v2418, %v2546
        %v2571 = vadd.f32 %v2419, %v2547
        %v2572 = vadd.f32 %v2420, %v2548
        %v2573 = vadd.f32 %v2421, %v2549
        %v2574 = vadd.f32 %v2422, %v2550
        %v2575 = vadd.f32 %v2423, %v2551
        %v2576 = vadd.f32 %v2424, %v2552
        %v2577 = vadd.f32 %v2425, %v2553
        %v2578 = vadd.f32 %v2426, %v2554
        %v2579 = vsub.f32 %v1287, %v1835
        %v2580 = vsub.f32 %v1288, %v1836
        %v2581 = vsub.f32 %v1289, %v1837
        %v2582 = vsub.f32 %v1290, %v1838
        %v2583 = vsub.f32 %v1291, %v1839
        %v2584 = vsub.f32 %v1292, %v1840
        %v2585 = vsub.f32 %v1293, %v1841
        %v2586 = vsub.f32 %v1294, %v1842
        %v2587 = vsub.f32 %v1295, %v1843
        %v2588 = vsub.f32 %v1296, %v1844
        %v2589 = vsub.f32 %v1297, %v1845
        %v2590 = vsub.f32 %v1298, %v1846
        %v2591 = vsub.f32 %v1299, %v1847
        %v2592 = vsub.f32 %v1300, %v1848
        %v2593 = vsub.f32 %v1301, %v1849
        %v2594 = vsub.f32 %v1302, %v1850
        %v2595 = vsub.f32 %v1303, %v1851
        %v2596 = vsub.f32 %v1304, %v1852
        %v2597 = vsub.f32 %v1305, %v1853
        %v2598 = vsub.f32 %v1306, %v1854
        %v2599 = vsub.f32 %v1307, %v1855
        %v2600 = vsub.f32 %v1308, %v1856
        %v2601 = vsub.f32 %v1309, %v1857
        %v2602 = vsub.f32 %v1310, %v1858
        %v2603 = vmul.f32 %v2579, 1.442695
        %v2604 = vpow.pop %v2603
        %v2605 = vmul.f32 %v2580, 1.442695
        %v2606 = vpow.pop %v2605
        %v2607 = vmul.f32 %v2581, 1.442695
        %v2608 = vpow.pop %v2607
        %v2609 = vmul.f32 %v2582, 1.442695
        %v2610 = vpow.pop %v2609
        %v2611 = vmul.f32 %v2583, 1.442695
        %v2612 = vpow.pop %v2611
        %v2613 = vmul.f32 %v2584, 1.442695
        %v2614 = vpow.pop %v2613
        %v2615 = vmul.f32 %v2585, 1.442695
        %v2616 = vpow.pop %v2615
        %v2617 = vmul.f32 %v2586, 1.442695
        %v2618 = vpow.pop %v2617
        %v2619 = vmul.f32 %v2587, 1.442695
        %v2620 = vpow.pop %v2619
        %v2621 = vmul.f32 %v2588, 1.442695
        %v2622 = vpow.pop %v2621
        %v2623 = vmul.f32 %v2589, 1.442695
        %v2624 = vpow.pop %v2623
        %v2625 = vmul.f32 %v2590, 1.442695
        %v2626 = vpow.pop %v2625
        %v2627 = vmul.f32 %v2591, 1.442695
        %v2628 = vpow.pop %v2627
        %v2629 = vmul.f32 %v2592, 1.442695
        %v2630 = vpow.pop %v2629
        %v2631 = vmul.f32 %v2593, 1.442695
        %v2632 = vpow.pop %v2631
        %v2633 = vmul.f32 %v2594, 1.442695
        %v2634 = vpow.pop %v2633
        %v2635 = vmul.f32 %v2595, 1.442695
        %v2636 = vpow.pop %v2635
        %v2637 = vmul.f32 %v2596, 1.442695
        %v2638 = vpow.pop %v2637
        %v2639 = vmul.f32 %v2597, 1.442695
        %v2640 = vpow.pop %v2639
        %v2641 = vmul.f32 %v2598, 1.442695
        %v2642 = vpow.pop %v2641
        %v2643 = vmul.f32 %v2599, 1.442695
        %v2644 = vpow.pop %v2643
        %v2645 = vmul.f32 %v2600, 1.442695
        %v2646 = vpow.pop %v2645
        %v2647 = vmul.f32 %v2601, 1.442695
        %v2648 = vpow.pop %v2647
        %v2649 = vmul.f32 %v2602, 1.442695
        %v2650 = vpow.pop %v2649
        %v2651 = vadd.f32 %v2499, %v2604
        %v2652 = vadd.f32 %v2500, %v2606
        %v2653 = vadd.f32 %v2501, %v2608
        %v2654 = vadd.f32 %v2502, %v2610
        %v2655 = vadd.f32 %v2503, %v2612
        %v2656 = vadd.f32 %v2504, %v2614
        %v2657 = vadd.f32 %v2505, %v2616
        %v2658 = vadd.f32 %v2506, %v2618
        %v2659 = vadd.f32 %v2507, %v2620
        %v2660 = vadd.f32 %v2508, %v2622
        %v2661 = vadd.f32 %v2509, %v2624
        %v2662 = vadd.f32 %v2510, %v2626
        %v2663 = vadd.f32 %v2511, %v2628
        %v2664 = vadd.f32 %v2512, %v2630
        %v2665 = vadd.f32 %v2513, %v2632
        %v2666 = vadd.f32 %v2514, %v2634
        %v2667 = vadd.f32 %v2515, %v2636
        %v2668 = vadd.f32 %v2516, %v2638
        %v2669 = vadd.f32 %v2517, %v2640
        %v2670 = vadd.f32 %v2518, %v2642
        %v2671 = vadd.f32 %v2519, %v2644
        %v2672 = vadd.f32 %v2520, %v2646
        %v2673 = vadd.f32 %v2521, %v2648
        %v2674 = vadd.f32 %v2522, %v2650
        %v2675 = vmul.f32 %v2604, %v710
        %v2676 = vmul.f32 %v2606, %v713
        %v2677 = vmul.f32 %v2608, %v716
        %v2678 = vmul.f32 %v2610, %v719
        %v2679 = vmul.f32 %v2612, %v722
        %v2680 = vmul.f32 %v2614, %v725
        %v2681 = vmul.f32 %v2616, %v728
        %v2682 = vmul.f32 %v2618, %v731
        %v2683 = vmul.f32 %v2620, %v734
        %v2684 = vmul.f32 %v2622, %v737
        %v2685 = vmul.f32 %v2624, %v740
        %v2686 = vmul.f32 %v2626, %v743
        %v2687 = vmul.f32 %v2628, %v746
        %v2688 = vmul.f32 %v2630, %v749
        %v2689 = vmul.f32 %v2632, %v752
        %v2690 = vmul.f32 %v2634, %v755
        %v2691 = vmul.f32 %v2636, %v758
        %v2692 = vmul.f32 %v2638, %v761
        %v2693 = vmul.f32 %v2640, %v764
        %v2694 = vmul.f32 %v2642, %v767
        %v2695 = vmul.f32 %v2644, %v770
        %v2696 = vmul.f32 %v2646, %v773
        %v2697 = vmul.f32 %v2648, %v776
        %v2698 = vmul.f32 %v2650, %v779
        %v2699 = vadd.f32 %v2555, %v2675
        %v2700 = vadd.f32 %v2556, %v2676
        %v2701 = vadd.f32 %v2557, %v2677
        %v2702 = vadd.f32 %v2558, %v2678
        %v2703 = vadd.f32 %v2559, %v2679
        %v2704 = vadd.f32 %v2560, %v2680
        %v2705 = vadd.f32 %v2561, %v2681
        %v2706 = vadd.f32 %v2562, %v2682
        %v2707 = vadd.f32 %v2563, %v2683
        %v2708 = vadd.f32 %v2564, %v2684
        %v2709 = vadd.f32 %v2565, %v2685
        %v2710 = vadd.f32 %v2566, %v2686
        %v2711 = vadd.f32 %v2567, %v2687
        %v2712 = vadd.f32 %v2568, %v2688
        %v2713 = vadd.f32 %v2569, %v2689
        %v2714 = vadd.f32 %v2570, %v2690
        %v2715 = vadd.f32 %v2571, %v2691
        %v2716 = vadd.f32 %v2572, %v2692
        %v2717 = vadd.f32 %v2573, %v2693
        %v2718 = vadd.f32 %v2574, %v2694
        %v2719 = vadd.f32 %v2575, %v2695
        %v2720 = vadd.f32 %v2576, %v2696
        %v2721 = vadd.f32 %v2577, %v2697
        %v2722 = vadd.f32 %v2578, %v2698
        %v2723 = vsub.f32 %v1448, %v1835
        %v2724 = vsub.f32 %v1449, %v1836
        %v2725 = vsub.f32 %v1450, %v1837
        %v2726 = vsub.f32 %v1451, %v1838
        %v2727 = vsub.f32 %v1452, %v1839
        %v2728 = vsub.f32 %v1453, %v1840
        %v2729 = vsub.f32 %v1454, %v1841
        %v2730 = vsub.f32 %v1455, %v1842
        %v2731 = vsub.f32 %v1456, %v1843
        %v2732 = vsub.f32 %v1457, %v1844
        %v2733 = vsub.f32 %v1458, %v1845
        %v2734 = vsub.f32 %v1459, %v1846
        %v2735 = vsub.f32 %v1460, %v1847
        %v2736 = vsub.f32 %v1461, %v1848
        %v2737 = vsub.f32 %v1462, %v1849
        %v2738 = vsub.f32 %v1463, %v1850
        %v2739 = vsub.f32 %v1464, %v1851
        %v2740 = vsub.f32 %v1465, %v1852
        %v2741 = vsub.f32 %v1466, %v1853
        %v2742 = vsub.f32 %v1467, %v1854
        %v2743 = vsub.f32 %v1468, %v1855
        %v2744 = vsub.f32 %v1469, %v1856
        %v2745 = vsub.f32 %v1470, %v1857
        %v2746 = vsub.f32 %v1471, %v1858
        %v2747 = vmul.f32 %v2723, 1.442695
        %v2748 = vpow.pop %v2747
        %v2749 = vmul.f32 %v2724, 1.442695
        %v2750 = vpow.pop %v2749
        %v2751 = vmul.f32 %v2725, 1.442695
        %v2752 = vpow.pop %v2751
        %v2753 = vmul.f32 %v2726, 1.442695
        %v2754 = vpow.pop %v2753
        %v2755 = vmul.f32 %v2727, 1.442695
        %v2756 = vpow.pop %v2755
        %v2757 = vmul.f32 %v2728, 1.442695
        %v2758 = vpow.pop %v2757
        %v2759 = vmul.f32 %v2729, 1.442695
        %v2760 = vpow.pop %v2759
        %v2761 = vmul.f32 %v2730, 1.442695
        %v2762 = vpow.pop %v2761
        %v2763 = vmul.f32 %v2731, 1.442695
        %v2764 = vpow.pop %v2763
        %v2765 = vmul.f32 %v2732, 1.442695
        %v2766 = vpow.pop %v2765
        %v2767 = vmul.f32 %v2733, 1.442695
        %v2768 = vpow.pop %v2767
        %v2769 = vmul.f32 %v2734, 1.442695
        %v2770 = vpow.pop %v2769
        %v2771 = vmul.f32 %v2735, 1.442695
        %v2772 = vpow.pop %v2771
        %v2773 = vmul.f32 %v2736, 1.442695
        %v2774 = vpow.pop %v2773
        %v2775 = vmul.f32 %v2737, 1.442695
        %v2776 = vpow.pop %v2775
        %v2777 = vmul.f32 %v2738, 1.442695
        %v2778 = vpow.pop %v2777
        %v2779 = vmul.f32 %v2739, 1.442695
        %v2780 = vpow.pop %v2779
        %v2781 = vmul.f32 %v2740, 1.442695
        %v2782 = vpow.pop %v2781
        %v2783 = vmul.f32 %v2741, 1.442695
        %v2784 = vpow.pop %v2783
        %v2785 = vmul.f32 %v2742, 1.442695
        %v2786 = vpow.pop %v2785
        %v2787 = vmul.f32 %v2743, 1.442695
        %v2788 = vpow.pop %v2787
        %v2789 = vmul.f32 %v2744, 1.442695
        %v2790 = vpow.pop %v2789
        %v2791 = vmul.f32 %v2745, 1.442695
        %v2792 = vpow.pop %v2791
        %v2793 = vmul.f32 %v2746, 1.442695
        %v2794 = vpow.pop %v2793
        %v2795 = vadd.f32 %v2651, %v2748
        %v2796 = vadd.f32 %v2652, %v2750
        %v2797 = vadd.f32 %v2653, %v2752
        %v2798 = vadd.f32 %v2654, %v2754
        %v2799 = vadd.f32 %v2655, %v2756
        %v2800 = vadd.f32 %v2656, %v2758
        %v2801 = vadd.f32 %v2657, %v2760
        %v2802 = vadd.f32 %v2658, %v2762
        %v2803 = vadd.f32 %v2659, %v2764
        %v2804 = vadd.f32 %v2660, %v2766
        %v2805 = vadd.f32 %v2661, %v2768
        %v2806 = vadd.f32 %v2662, %v2770
        %v2807 = vadd.f32 %v2663, %v2772
        %v2808 = vadd.f32 %v2664, %v2774
        %v2809 = vadd.f32 %v2665, %v2776
        %v2810 = vadd.f32 %v2666, %v2778
        %v2811 = vadd.f32 %v2667, %v2780
        %v2812 = vadd.f32 %v2668, %v2782
        %v2813 = vadd.f32 %v2669, %v2784
        %v2814 = vadd.f32 %v2670, %v2786
        %v2815 = vadd.f32 %v2671, %v2788
        %v2816 = vadd.f32 %v2672, %v2790
        %v2817 = vadd.f32 %v2673, %v2792
        %v2818 = vadd.f32 %v2674, %v2794
        %v2820 = vrot.slane %v773, 1
        %v2821 = vrot.slane %v776, 1
        %v2822 = vsel %vm1020, %v2820, %v2821
        %v2823 = vrot.slane %v779, 1
        %v2824 = vsel %vm1020, %v2821, %v2823
        %v2828 = vmul.f32 %v2748, %v2322
        %v2829 = vmul.f32 %v2750, %v2324
        %v2830 = vmul.f32 %v2752, %v2323
        %v2831 = vmul.f32 %v2754, %v2327
        %v2832 = vmul.f32 %v2756, %v2329
        %v2833 = vmul.f32 %v2758, %v2328
        %v2834 = vmul.f32 %v2760, %v2332
        %v2835 = vmul.f32 %v2762, %v2334
        %v2836 = vmul.f32 %v2764, %v2333
        %v2837 = vmul.f32 %v2766, %v2337
        %v2838 = vmul.f32 %v2768, %v2339
        %v2839 = vmul.f32 %v2770, %v2338
        %v2840 = vmul.f32 %v2772, %v2342
        %v2841 = vmul.f32 %v2774, %v2344
        %v2842 = vmul.f32 %v2776, %v2343
        %v2843 = vmul.f32 %v2778, %v2347
        %v2844 = vmul.f32 %v2780, %v2349
        %v2845 = vmul.f32 %v2782, %v2348
        %v2846 = vmul.f32 %v2784, %v2352
        %v2847 = vmul.f32 %v2786, %v2354
        %v2848 = vmul.f32 %v2788, %v2353
        %v2849 = vmul.f32 %v2790, %v2822
        %v2850 = vmul.f32 %v2792, %v2824
        %v2851 = vmul.f32 %v2794, %v2823
        %v2852 = vadd.f32 %v2699, %v2828
        %v2853 = vadd.f32 %v2700, %v2829
        %v2854 = vadd.f32 %v2701, %v2830
        %v2855 = vadd.f32 %v2702, %v2831
        %v2856 = vadd.f32 %v2703, %v2832
        %v2857 = vadd.f32 %v2704, %v2833
        %v2858 = vadd.f32 %v2705, %v2834
        %v2859 = vadd.f32 %v2706, %v2835
        %v2860 = vadd.f32 %v2707, %v2836
        %v2861 = vadd.f32 %v2708, %v2837
        %v2862 = vadd.f32 %v2709, %v2838
        %v2863 = vadd.f32 %v2710, %v2839
        %v2864 = vadd.f32 %v2711, %v2840
        %v2865 = vadd.f32 %v2712, %v2841
        %v2866 = vadd.f32 %v2713, %v2842
        %v2867 = vadd.f32 %v2714, %v2843
        %v2868 = vadd.f32 %v2715, %v2844
        %v2869 = vadd.f32 %v2716, %v2845
        %v2870 = vadd.f32 %v2717, %v2846
        %v2871 = vadd.f32 %v2718, %v2847
        %v2872 = vadd.f32 %v2719, %v2848
        %v2873 = vadd.f32 %v2720, %v2849
        %v2874 = vadd.f32 %v2721, %v2850
        %v2875 = vadd.f32 %v2722, %v2851
        %v2876 = vsub.f32 %v1577, %v1835
        %v2877 = vsub.f32 %v1578, %v1836
        %v2878 = vsub.f32 %v1579, %v1837
        %v2879 = vsub.f32 %v1580, %v1838
        %v2880 = vsub.f32 %v1581, %v1839
        %v2881 = vsub.f32 %v1582, %v1840
        %v2882 = vsub.f32 %v1583, %v1841
        %v2883 = vsub.f32 %v1584, %v1842
        %v2884 = vsub.f32 %v1585, %v1843
        %v2885 = vsub.f32 %v1586, %v1844
        %v2886 = vsub.f32 %v1587, %v1845
        %v2887 = vsub.f32 %v1588, %v1846
        %v2888 = vsub.f32 %v1589, %v1847
        %v2889 = vsub.f32 %v1590, %v1848
        %v2890 = vsub.f32 %v1591, %v1849
        %v2891 = vsub.f32 %v1592, %v1850
        %v2892 = vsub.f32 %v1593, %v1851
        %v2893 = vsub.f32 %v1594, %v1852
        %v2894 = vsub.f32 %v1595, %v1853
        %v2895 = vsub.f32 %v1596, %v1854
        %v2896 = vsub.f32 %v1597, %v1855
        %v2897 = vsub.f32 %v1598, %v1856
        %v2898 = vsub.f32 %v1599, %v1857
        %v2899 = vsub.f32 %v1600, %v1858
        %v2900 = vmul.f32 %v2876, 1.442695
        %v2901 = vpow.pop %v2900
        %v2902 = vmul.f32 %v2877, 1.442695
        %v2903 = vpow.pop %v2902
        %v2904 = vmul.f32 %v2878, 1.442695
        %v2905 = vpow.pop %v2904
        %v2906 = vmul.f32 %v2879, 1.442695
        %v2907 = vpow.pop %v2906
        %v2908 = vmul.f32 %v2880, 1.442695
        %v2909 = vpow.pop %v2908
        %v2910 = vmul.f32 %v2881, 1.442695
        %v2911 = vpow.pop %v2910
        %v2912 = vmul.f32 %v2882, 1.442695
        %v2913 = vpow.pop %v2912
        %v2914 = vmul.f32 %v2883, 1.442695
        %v2915 = vpow.pop %v2914
        %v2916 = vmul.f32 %v2884, 1.442695
        %v2917 = vpow.pop %v2916
        %v2918 = vmul.f32 %v2885, 1.442695
        %v2919 = vpow.pop %v2918
        %v2920 = vmul.f32 %v2886, 1.442695
        %v2921 = vpow.pop %v2920
        %v2922 = vmul.f32 %v2887, 1.442695
        %v2923 = vpow.pop %v2922
        %v2924 = vmul.f32 %v2888, 1.442695
        %v2925 = vpow.pop %v2924
        %v2926 = vmul.f32 %v2889, 1.442695
        %v2927 = vpow.pop %v2926
        %v2928 = vmul.f32 %v2890, 1.442695
        %v2929 = vpow.pop %v2928
        %v2930 = vmul.f32 %v2891, 1.442695
        %v2931 = vpow.pop %v2930
        %v2932 = vmul.f32 %v2892, 1.442695
        %v2933 = vpow.pop %v2932
        %v2934 = vmul.f32 %v2893, 1.442695
        %v2935 = vpow.pop %v2934
        %v2936 = vmul.f32 %v2894, 1.442695
        %v2937 = vpow.pop %v2936
        %v2938 = vmul.f32 %v2895, 1.442695
        %v2939 = vpow.pop %v2938
        %v2940 = vmul.f32 %v2896, 1.442695
        %v2941 = vpow.pop %v2940
        %v2942 = vmul.f32 %v2897, 1.442695
        %v2943 = vpow.pop %v2942
        %v2944 = vmul.f32 %v2898, 1.442695
        %v2945 = vpow.pop %v2944
        %v2946 = vmul.f32 %v2899, 1.442695
        %v2947 = vpow.pop %v2946
        %v2948 = vadd.f32 %v2795, %v2901
        %v2949 = vadd.f32 %v2796, %v2903
        %v2950 = vadd.f32 %v2797, %v2905
        %v2951 = vadd.f32 %v2798, %v2907
        %v2952 = vadd.f32 %v2799, %v2909
        %v2953 = vadd.f32 %v2800, %v2911
        %v2954 = vadd.f32 %v2801, %v2913
        %v2955 = vadd.f32 %v2802, %v2915
        %v2956 = vadd.f32 %v2803, %v2917
        %v2957 = vadd.f32 %v2804, %v2919
        %v2958 = vadd.f32 %v2805, %v2921
        %v2959 = vadd.f32 %v2806, %v2923
        %v2960 = vadd.f32 %v2807, %v2925
        %v2961 = vadd.f32 %v2808, %v2927
        %v2962 = vadd.f32 %v2809, %v2929
        %v2963 = vadd.f32 %v2810, %v2931
        %v2964 = vadd.f32 %v2811, %v2933
        %v2965 = vadd.f32 %v2812, %v2935
        %v2966 = vadd.f32 %v2813, %v2937
        %v2967 = vadd.f32 %v2814, %v2939
        %v2968 = vadd.f32 %v2815, %v2941
        %v2969 = vadd.f32 %v2816, %v2943
        %v2970 = vadd.f32 %v2817, %v2945
        %v2971 = vadd.f32 %v2818, %v2947
        %v2974 = vrot.slane %v782, 7
        %v2975 = vrot.slane %v785, 7
        %v2976 = vsel %vm825, %v2974, %v2975
        %v2980 = vmul.f32 %v2901, %v1977
        %v2981 = vmul.f32 %v2903, %v1979
        %v2982 = vmul.f32 %v2905, %v1978
        %v2983 = vmul.f32 %v2907, %v1980
        %v2984 = vmul.f32 %v2909, %v1982
        %v2985 = vmul.f32 %v2911, %v1981
        %v2986 = vmul.f32 %v2913, %v1983
        %v2987 = vmul.f32 %v2915, %v1985
        %v2988 = vmul.f32 %v2917, %v1984
        %v2989 = vmul.f32 %v2919, %v1986
        %v2990 = vmul.f32 %v2921, %v1988
        %v2991 = vmul.f32 %v2923, %v1987
        %v2992 = vmul.f32 %v2925, %v1989
        %v2993 = vmul.f32 %v2927, %v1991
        %v2994 = vmul.f32 %v2929, %v1990
        %v2995 = vmul.f32 %v2931, %v1992
        %v2996 = vmul.f32 %v2933, %v1994
        %v2997 = vmul.f32 %v2935, %v1993
        %v2998 = vmul.f32 %v2937, %v2525
        %v2999 = vmul.f32 %v2939, %v2527
        %v3000 = vmul.f32 %v2941, %v2526
        %v3001 = vmul.f32 %v2943, %v2974
        %v3002 = vmul.f32 %v2945, %v2976
        %v3003 = vmul.f32 %v2947, %v2975
        %v3004 = vadd.f32 %v2852, %v2980
        %v3005 = vadd.f32 %v2853, %v2981
        %v3006 = vadd.f32 %v2854, %v2982
        %v3007 = vadd.f32 %v2855, %v2983
        %v3008 = vadd.f32 %v2856, %v2984
        %v3009 = vadd.f32 %v2857, %v2985
        %v3010 = vadd.f32 %v2858, %v2986
        %v3011 = vadd.f32 %v2859, %v2987
        %v3012 = vadd.f32 %v2860, %v2988
        %v3013 = vadd.f32 %v2861, %v2989
        %v3014 = vadd.f32 %v2862, %v2990
        %v3015 = vadd.f32 %v2863, %v2991
        %v3016 = vadd.f32 %v2864, %v2992
        %v3017 = vadd.f32 %v2865, %v2993
        %v3018 = vadd.f32 %v2866, %v2994
        %v3019 = vadd.f32 %v2867, %v2995
        %v3020 = vadd.f32 %v2868, %v2996
        %v3021 = vadd.f32 %v2869, %v2997
        %v3022 = vadd.f32 %v2870, %v2998
        %v3023 = vadd.f32 %v2871, %v2999
        %v3024 = vadd.f32 %v2872, %v3000
        %v3025 = vadd.f32 %v2873, %v3001
        %v3026 = vadd.f32 %v2874, %v3002
        %v3027 = vadd.f32 %v2875, %v3003
        %v3028 = vsub.f32 %v1650, %v1835
        %v3029 = vsub.f32 %v1651, %v1836
        %v3030 = vsub.f32 %v1652, %v1837
        %v3031 = vsub.f32 %v1653, %v1838
        %v3032 = vsub.f32 %v1654, %v1839
        %v3033 = vsub.f32 %v1655, %v1840
        %v3034 = vsub.f32 %v1656, %v1841
        %v3035 = vsub.f32 %v1657, %v1842
        %v3036 = vsub.f32 %v1658, %v1843
        %v3037 = vsub.f32 %v1659, %v1844
        %v3038 = vsub.f32 %v1660, %v1845
        %v3039 = vsub.f32 %v1661, %v1846
        %v3040 = vsub.f32 %v1662, %v1847
        %v3041 = vsub.f32 %v1663, %v1848
        %v3042 = vsub.f32 %v1664, %v1849
        %v3043 = vsub.f32 %v1665, %v1850
        %v3044 = vsub.f32 %v1666, %v1851
        %v3045 = vsub.f32 %v1667, %v1852
        %v3046 = vsub.f32 %v1668, %v1853
        %v3047 = vsub.f32 %v1669, %v1854
        %v3048 = vsub.f32 %v1670, %v1855
        %v3049 = vsub.f32 %v1671, %v1856
        %v3050 = vsub.f32 %v1672, %v1857
        %v3051 = vsub.f32 %v1673, %v1858
        %v3052 = vmul.f32 %v3028, 1.442695
        %v3053 = vpow.pop %v3052
        %v3054 = vmul.f32 %v3029, 1.442695
        %v3055 = vpow.pop %v3054
        %v3056 = vmul.f32 %v3030, 1.442695
        %v3057 = vpow.pop %v3056
        %v3058 = vmul.f32 %v3031, 1.442695
        %v3059 = vpow.pop %v3058
        %v3060 = vmul.f32 %v3032, 1.442695
        %v3061 = vpow.pop %v3060
        %v3062 = vmul.f32 %v3033, 1.442695
        %v3063 = vpow.pop %v3062
        %v3064 = vmul.f32 %v3034, 1.442695
        %v3065 = vpow.pop %v3064
        %v3066 = vmul.f32 %v3035, 1.442695
        %v3067 = vpow.pop %v3066
        %v3068 = vmul.f32 %v3036, 1.442695
        %v3069 = vpow.pop %v3068
        %v3070 = vmul.f32 %v3037, 1.442695
        %v3071 = vpow.pop %v3070
        %v3072 = vmul.f32 %v3038, 1.442695
        %v3073 = vpow.pop %v3072
        %v3074 = vmul.f32 %v3039, 1.442695
        %v3075 = vpow.pop %v3074
        %v3076 = vmul.f32 %v3040, 1.442695
        %v3077 = vpow.pop %v3076
        %v3078 = vmul.f32 %v3041, 1.442695
        %v3079 = vpow.pop %v3078
        %v3080 = vmul.f32 %v3042, 1.442695
        %v3081 = vpow.pop %v3080
        %v3082 = vmul.f32 %v3043, 1.442695
        %v3083 = vpow.pop %v3082
        %v3084 = vmul.f32 %v3044, 1.442695
        %v3085 = vpow.pop %v3084
        %v3086 = vmul.f32 %v3045, 1.442695
        %v3087 = vpow.pop %v3086
        %v3088 = vmul.f32 %v3046, 1.442695
        %v3089 = vpow.pop %v3088
        %v3090 = vmul.f32 %v3047, 1.442695
        %v3091 = vpow.pop %v3090
        %v3092 = vmul.f32 %v3048, 1.442695
        %v3093 = vpow.pop %v3092
        %v3094 = vmul.f32 %v3049, 1.442695
        %v3095 = vpow.pop %v3094
        %v3096 = vmul.f32 %v3050, 1.442695
        %v3097 = vpow.pop %v3096
        %v3098 = vmul.f32 %v3051, 1.442695
        %v3099 = vpow.pop %v3098
        %v3100 = vadd.f32 %v2948, %v3053
        %v3101 = vadd.f32 %v2949, %v3055
        %v3102 = vadd.f32 %v2950, %v3057
        %v3103 = vadd.f32 %v2951, %v3059
        %v3104 = vadd.f32 %v2952, %v3061
        %v3105 = vadd.f32 %v2953, %v3063
        %v3106 = vadd.f32 %v2954, %v3065
        %v3107 = vadd.f32 %v2955, %v3067
        %v3108 = vadd.f32 %v2956, %v3069
        %v3109 = vadd.f32 %v2957, %v3071
        %v3110 = vadd.f32 %v2958, %v3073
        %v3111 = vadd.f32 %v2959, %v3075
        %v3112 = vadd.f32 %v2960, %v3077
        %v3113 = vadd.f32 %v2961, %v3079
        %v3114 = vadd.f32 %v2962, %v3081
        %v3115 = vadd.f32 %v2963, %v3083
        %v3116 = vadd.f32 %v2964, %v3085
        %v3117 = vadd.f32 %v2965, %v3087
        %v3118 = vadd.f32 %v2966, %v3089
        %v3119 = vadd.f32 %v2967, %v3091
        %v3120 = vadd.f32 %v2968, %v3093
        %v3121 = vadd.f32 %v2969, %v3095
        %v3122 = vadd.f32 %v2970, %v3097
        %v3123 = vadd.f32 %v2971, %v3099
        %v3124 = vmul.f32 %v3053, %v719
        %v3125 = vmul.f32 %v3055, %v722
        %v3126 = vmul.f32 %v3057, %v725
        %v3127 = vmul.f32 %v3059, %v728
        %v3128 = vmul.f32 %v3061, %v731
        %v3129 = vmul.f32 %v3063, %v734
        %v3130 = vmul.f32 %v3065, %v737
        %v3131 = vmul.f32 %v3067, %v740
        %v3132 = vmul.f32 %v3069, %v743
        %v3133 = vmul.f32 %v3071, %v746
        %v3134 = vmul.f32 %v3073, %v749
        %v3135 = vmul.f32 %v3075, %v752
        %v3136 = vmul.f32 %v3077, %v755
        %v3137 = vmul.f32 %v3079, %v758
        %v3138 = vmul.f32 %v3081, %v761
        %v3139 = vmul.f32 %v3083, %v764
        %v3140 = vmul.f32 %v3085, %v767
        %v3141 = vmul.f32 %v3087, %v770
        %v3142 = vmul.f32 %v3089, %v773
        %v3143 = vmul.f32 %v3091, %v776
        %v3144 = vmul.f32 %v3093, %v779
        %v3145 = vmul.f32 %v3095, %v782
        %v3146 = vmul.f32 %v3097, %v785
        %v3147 = vmul.f32 %v3099, %v788
        %v3148 = vadd.f32 %v3004, %v3124
        %v3149 = vadd.f32 %v3005, %v3125
        %v3150 = vadd.f32 %v3006, %v3126
        %v3151 = vadd.f32 %v3007, %v3127
        %v3152 = vadd.f32 %v3008, %v3128
        %v3153 = vadd.f32 %v3009, %v3129
        %v3154 = vadd.f32 %v3010, %v3130
        %v3155 = vadd.f32 %v3011, %v3131
        %v3156 = vadd.f32 %v3012, %v3132
        %v3157 = vadd.f32 %v3013, %v3133
        %v3158 = vadd.f32 %v3014, %v3134
        %v3159 = vadd.f32 %v3015, %v3135
        %v3160 = vadd.f32 %v3016, %v3136
        %v3161 = vadd.f32 %v3017, %v3137
        %v3162 = vadd.f32 %v3018, %v3138
        %v3163 = vadd.f32 %v3019, %v3139
        %v3164 = vadd.f32 %v3020, %v3140
        %v3165 = vadd.f32 %v3021, %v3141
        %v3166 = vadd.f32 %v3022, %v3142
        %v3167 = vadd.f32 %v3023, %v3143
        %v3168 = vadd.f32 %v3024, %v3144
        %v3169 = vadd.f32 %v3025, %v3145
        %v3170 = vadd.f32 %v3026, %v3146
        %v3171 = vadd.f32 %v3027, %v3147
        %v3172 = vsub.f32 %v1811, %v1835
        %v3173 = vsub.f32 %v1812, %v1836
        %v3174 = vsub.f32 %v1813, %v1837
        %v3175 = vsub.f32 %v1814, %v1838
        %v3176 = vsub.f32 %v1815, %v1839
        %v3177 = vsub.f32 %v1816, %v1840
        %v3178 = vsub.f32 %v1817, %v1841
        %v3179 = vsub.f32 %v1818, %v1842
        %v3180 = vsub.f32 %v1819, %v1843
        %v3181 = vsub.f32 %v1820, %v1844
        %v3182 = vsub.f32 %v1821, %v1845
        %v3183 = vsub.f32 %v1822, %v1846
        %v3184 = vsub.f32 %v1823, %v1847
        %v3185 = vsub.f32 %v1824, %v1848
        %v3186 = vsub.f32 %v1825, %v1849
        %v3187 = vsub.f32 %v1826, %v1850
        %v3188 = vsub.f32 %v1827, %v1851
        %v3189 = vsub.f32 %v1828, %v1852
        %v3190 = vsub.f32 %v1829, %v1853
        %v3191 = vsub.f32 %v1830, %v1854
        %v3192 = vsub.f32 %v1831, %v1855
        %v3193 = vsub.f32 %v1832, %v1856
        %v3194 = vsub.f32 %v1833, %v1857
        %v3195 = vsub.f32 %v1834, %v1858
        %v3196 = vmul.f32 %v3172, 1.442695
        %v3197 = vpow.pop %v3196
        %v3198 = vmul.f32 %v3173, 1.442695
        %v3199 = vpow.pop %v3198
        %v3200 = vmul.f32 %v3174, 1.442695
        %v3201 = vpow.pop %v3200
        %v3202 = vmul.f32 %v3175, 1.442695
        %v3203 = vpow.pop %v3202
        %v3204 = vmul.f32 %v3176, 1.442695
        %v3205 = vpow.pop %v3204
        %v3206 = vmul.f32 %v3177, 1.442695
        %v3207 = vpow.pop %v3206
        %v3208 = vmul.f32 %v3178, 1.442695
        %v3209 = vpow.pop %v3208
        %v3210 = vmul.f32 %v3179, 1.442695
        %v3211 = vpow.pop %v3210
        %v3212 = vmul.f32 %v3180, 1.442695
        %v3213 = vpow.pop %v3212
        %v3214 = vmul.f32 %v3181, 1.442695
        %v3215 = vpow.pop %v3214
        %v3216 = vmul.f32 %v3182, 1.442695
        %v3217 = vpow.pop %v3216
        %v3218 = vmul.f32 %v3183, 1.442695
        %v3219 = vpow.pop %v3218
        %v3220 = vmul.f32 %v3184, 1.442695
        %v3221 = vpow.pop %v3220
        %v3222 = vmul.f32 %v3185, 1.442695
        %v3223 = vpow.pop %v3222
        %v3224 = vmul.f32 %v3186, 1.442695
        %v3225 = vpow.pop %v3224
        %v3226 = vmul.f32 %v3187, 1.442695
        %v3227 = vpow.pop %v3226
        %v3228 = vmul.f32 %v3188, 1.442695
        %v3229 = vpow.pop %v3228
        %v3230 = vmul.f32 %v3189, 1.442695
        %v3231 = vpow.pop %v3230
        %v3232 = vmul.f32 %v3190, 1.442695
        %v3233 = vpow.pop %v3232
        %v3234 = vmul.f32 %v3191, 1.442695
        %v3235 = vpow.pop %v3234
        %v3236 = vmul.f32 %v3192, 1.442695
        %v3237 = vpow.pop %v3236
        %v3238 = vmul.f32 %v3193, 1.442695
        %v3239 = vpow.pop %v3238
        %v3240 = vmul.f32 %v3194, 1.442695
        %v3241 = vpow.pop %v3240
        %v3242 = vmul.f32 %v3195, 1.442695
        %v3243 = vpow.pop %v3242
        %v3244 = vadd.f32 %v3100, %v3197
        %v3245 = vadd.f32 %v3101, %v3199
        %v3246 = vadd.f32 %v3102, %v3201
        %v3247 = vadd.f32 %v3103, %v3203
        %v3248 = vadd.f32 %v3104, %v3205
        %v3249 = vadd.f32 %v3105, %v3207
        %v3250 = vadd.f32 %v3106, %v3209
        %v3251 = vadd.f32 %v3107, %v3211
        %v3252 = vadd.f32 %v3108, %v3213
        %v3253 = vadd.f32 %v3109, %v3215
        %v3254 = vadd.f32 %v3110, %v3217
        %v3255 = vadd.f32 %v3111, %v3219
        %v3256 = vadd.f32 %v3112, %v3221
        %v3257 = vadd.f32 %v3113, %v3223
        %v3258 = vadd.f32 %v3114, %v3225
        %v3259 = vadd.f32 %v3115, %v3227
        %v3260 = vadd.f32 %v3116, %v3229
        %v3261 = vadd.f32 %v3117, %v3231
        %v3262 = vadd.f32 %v3118, %v3233
        %v3263 = vadd.f32 %v3119, %v3235
        %v3264 = vadd.f32 %v3120, %v3237
        %v3265 = vadd.f32 %v3121, %v3239
        %v3266 = vadd.f32 %v3122, %v3241
        %v3267 = vadd.f32 %v3123, %v3243
        %v3269 = vrot.slane %v782, 1
        %v3270 = vrot.slane %v785, 1
        %v3271 = vsel %vm1020, %v3269, %v3270
        %v3272 = vrot.slane %v788, 1
        %v3273 = vsel %vm1020, %v3270, %v3272
        %v3277 = vmul.f32 %v3197, %v2327
        %v3278 = vmul.f32 %v3199, %v2329
        %v3279 = vmul.f32 %v3201, %v2328
        %v3280 = vmul.f32 %v3203, %v2332
        %v3281 = vmul.f32 %v3205, %v2334
        %v3282 = vmul.f32 %v3207, %v2333
        %v3283 = vmul.f32 %v3209, %v2337
        %v3284 = vmul.f32 %v3211, %v2339
        %v3285 = vmul.f32 %v3213, %v2338
        %v3286 = vmul.f32 %v3215, %v2342
        %v3287 = vmul.f32 %v3217, %v2344
        %v3288 = vmul.f32 %v3219, %v2343
        %v3289 = vmul.f32 %v3221, %v2347
        %v3290 = vmul.f32 %v3223, %v2349
        %v3291 = vmul.f32 %v3225, %v2348
        %v3292 = vmul.f32 %v3227, %v2352
        %v3293 = vmul.f32 %v3229, %v2354
        %v3294 = vmul.f32 %v3231, %v2353
        %v3295 = vmul.f32 %v3233, %v2822
        %v3296 = vmul.f32 %v3235, %v2824
        %v3297 = vmul.f32 %v3237, %v2823
        %v3298 = vmul.f32 %v3239, %v3271
        %v3299 = vmul.f32 %v3241, %v3273
        %v3300 = vmul.f32 %v3243, %v3272
        %v3301 = vadd.f32 %v3148, %v3277
        %v3302 = vadd.f32 %v3149, %v3278
        %v3303 = vadd.f32 %v3150, %v3279
        %v3304 = vadd.f32 %v3151, %v3280
        %v3305 = vadd.f32 %v3152, %v3281
        %v3306 = vadd.f32 %v3153, %v3282
        %v3307 = vadd.f32 %v3154, %v3283
        %v3308 = vadd.f32 %v3155, %v3284
        %v3309 = vadd.f32 %v3156, %v3285
        %v3310 = vadd.f32 %v3157, %v3286
        %v3311 = vadd.f32 %v3158, %v3287
        %v3312 = vadd.f32 %v3159, %v3288
        %v3313 = vadd.f32 %v3160, %v3289
        %v3314 = vadd.f32 %v3161, %v3290
        %v3315 = vadd.f32 %v3162, %v3291
        %v3316 = vadd.f32 %v3163, %v3292
        %v3317 = vadd.f32 %v3164, %v3293
        %v3318 = vadd.f32 %v3165, %v3294
        %v3319 = vadd.f32 %v3166, %v3295
        %v3320 = vadd.f32 %v3167, %v3296
        %v3321 = vadd.f32 %v3168, %v3297
        %v3322 = vadd.f32 %v3169, %v3298
        %v3323 = vadd.f32 %v3170, %v3299
        %v3324 = vadd.f32 %v3171, %v3300
        %v3325 = vrcp.pop %v3244
        %v3326 = vrcp.pop %v3245
        %v3327 = vrcp.pop %v3246
        %v3328 = vrcp.pop %v3247
        %v3329 = vrcp.pop %v3248
        %v3330 = vrcp.pop %v3249
        %v3331 = vrcp.pop %v3250
        %v3332 = vrcp.pop %v3251
        %v3333 = vrcp.pop %v3252
        %v3334 = vrcp.pop %v3253
        %v3335 = vrcp.pop %v3254
        %v3336 = vrcp.pop %v3255
        %v3337 = vrcp.pop %v3256
        %v3338 = vrcp.pop %v3257
        %v3339 = vrcp.pop %v3258
        %v3340 = vrcp.pop %v3259
        %v3341 = vrcp.pop %v3260
        %v3342 = vrcp.pop %v3261
        %v3343 = vrcp.pop %v3262
        %v3344 = vrcp.pop %v3263
        %v3345 = vrcp.pop %v3264
        %v3346 = vrcp.pop %v3265
        %v3347 = vrcp.pop %v3266
        %v3348 = vrcp.pop %v3267
        %v3349 = vmul.f32 %v3244, %v3325
        %v3350 = vmul.f32 %v3245, %v3326
        %v3351 = vmul.f32 %v3246, %v3327
        %v3352 = vmul.f32 %v3247, %v3328
        %v3353 = vmul.f32 %v3248, %v3329
        %v3354 = vmul.f32 %v3249, %v3330
        %v3355 = vmul.f32 %v3250, %v3331
        %v3356 = vmul.f32 %v3251, %v3332
        %v3357 = vmul.f32 %v3252, %v3333
        %v3358 = vmul.f32 %v3253, %v3334
        %v3359 = vmul.f32 %v3254, %v3335
        %v3360 = vmul.f32 %v3255, %v3336
        %v3361 = vmul.f32 %v3256, %v3337
        %v3362 = vmul.f32 %v3257, %v3338
        %v3363 = vmul.f32 %v3258, %v3339
        %v3364 = vmul.f32 %v3259, %v3340
        %v3365 = vmul.f32 %v3260, %v3341
        %v3366 = vmul.f32 %v3261, %v3342
        %v3367 = vmul.f32 %v3262, %v3343
        %v3368 = vmul.f32 %v3263, %v3344
        %v3369 = vmul.f32 %v3264, %v3345
        %v3370 = vmul.f32 %v3265, %v3346
        %v3371 = vmul.f32 %v3266, %v3347
        %v3372 = vmul.f32 %v3267, %v3348
        %v3373 = vsub.f32 2.0, %v3349
        %v3374 = vsub.f32 2.0, %v3350
        %v3375 = vsub.f32 2.0, %v3351
        %v3376 = vsub.f32 2.0, %v3352
        %v3377 = vsub.f32 2.0, %v3353
        %v3378 = vsub.f32 2.0, %v3354
        %v3379 = vsub.f32 2.0, %v3355
        %v3380 = vsub.f32 2.0, %v3356
        %v3381 = vsub.f32 2.0, %v3357
        %v3382 = vsub.f32 2.0, %v3358
        %v3383 = vsub.f32 2.0, %v3359
        %v3384 = vsub.f32 2.0, %v3360
        %v3385 = vsub.f32 2.0, %v3361
        %v3386 = vsub.f32 2.0, %v3362
        %v3387 = vsub.f32 2.0, %v3363
        %v3388 = vsub.f32 2.0, %v3364
        %v3389 = vsub.f32 2.0, %v3365
        %v3390 = vsub.f32 2.0, %v3366
        %v3391 = vsub.f32 2.0, %v3367
        %v3392 = vsub.f32 2.0, %v3368
        %v3393 = vsub.f32 2.0, %v3369
        %v3394 = vsub.f32 2.0, %v3370
        %v3395 = vsub.f32 2.0, %v3371
        %v3396 = vsub.f32 2.0, %v3372
        %v3397 = vmul.f32 %v3325, %v3373
        %v3398 = vmul.f32 %v3326, %v3374
        %v3399 = vmul.f32 %v3327, %v3375
        %v3400 = vmul.f32 %v3328, %v3376
        %v3401 = vmul.f32 %v3329, %v3377
        %v3402 = vmul.f32 %v3330, %v3378
        %v3403 = vmul.f32 %v3331, %v3379
        %v3404 = vmul.f32 %v3332, %v3380
        %v3405 = vmul.f32 %v3333, %v3381
        %v3406 = vmul.f32 %v3334, %v3382
        %v3407 = vmul.f32 %v3335, %v3383
        %v3408 = vmul.f32 %v3336, %v3384
        %v3409 = vmul.f32 %v3337, %v3385
        %v3410 = vmul.f32 %v3338, %v3386
        %v3411 = vmul.f32 %v3339, %v3387
        %v3412 = vmul.f32 %v3340, %v3388
        %v3413 = vmul.f32 %v3341, %v3389
        %v3414 = vmul.f32 %v3342, %v3390
        %v3415 = vmul.f32 %v3343, %v3391
        %v3416 = vmul.f32 %v3344, %v3392
        %v3417 = vmul.f32 %v3345, %v3393
        %v3418 = vmul.f32 %v3346, %v3394
        %v3419 = vmul.f32 %v3347, %v3395
        %v3420 = vmul.f32 %v3348, %v3396
        %v3421 = vmul.f32 %v3301, %v3397
        %v3422 = vmul.f32 %v3302, %v3398
        %v3423 = vmul.f32 %v3303, %v3399
        %v3424 = vmul.f32 %v3304, %v3400
        %v3425 = vmul.f32 %v3305, %v3401
        %v3426 = vmul.f32 %v3306, %v3402
        %v3427 = vmul.f32 %v3307, %v3403
        %v3428 = vmul.f32 %v3308, %v3404
        %v3429 = vmul.f32 %v3309, %v3405
        %v3430 = vmul.f32 %v3310, %v3406
        %v3431 = vmul.f32 %v3311, %v3407
        %v3432 = vmul.f32 %v3312, %v3408
        %v3433 = vmul.f32 %v3313, %v3409
        %v3434 = vmul.f32 %v3314, %v3410
        %v3435 = vmul.f32 %v3315, %v3411
        %v3436 = vmul.f32 %v3316, %v3412
        %v3437 = vmul.f32 %v3317, %v3413
        %v3438 = vmul.f32 %v3318, %v3414
        %v3439 = vmul.f32 %v3319, %v3415
        %v3440 = vmul.f32 %v3320, %v3416
        %v3441 = vmul.f32 %v3321, %v3417
        %v3442 = vmul.f32 %v3322, %v3418
        %v3443 = vmul.f32 %v3323, %v3419
        %v3444 = vmul.f32 %v3324, %v3420
        %3445 = vst [vmem:[%s331 - $0x1] sm:$0xfe] %v3421
        %3446 = vst [vmem:[%s331 + $0x7] sm:$0xff] %v3422
        %3447 = vst [vmem:[%s331 + $0xf] sm:$0x1] %v3423
        %3448 = vst [vmem:[%s331 + $0xf] sm:$0xfe] %v3424
        %3449 = vst [vmem:[%s331 + $0x17] sm:$0xff] %v3425
        %3450 = vst [vmem:[%s331 + $0x1f] sm:$0x1] %v3426
        %3451 = vst [vmem:[%s331 + $0x1f] sm:$0xfe] %v3427
        %3452 = vst [vmem:[%s331 + $0x27] sm:$0xff] %v3428
        %3453 = vst [vmem:[%s331 + $0x2f] sm:$0x1] %v3429
        %3454 = vst [vmem:[%s331 + $0x2f] sm:$0xfe] %v3430
        %3455 = vst [vmem:[%s331 + $0x37] sm:$0xff] %v3431
        %3456 = vst [vmem:[%s331 + $0x3f] sm:$0x1] %v3432
        %3457 = vst [vmem:[%s331 + $0x3f] sm:$0xfe] %v3433
        %3458 = vst [vmem:[%s331 + $0x47] sm:$0xff] %v3434
        %3459 = vst [vmem:[%s331 + $0x4f] sm:$0x1] %v3435
        %3460 = vst [vmem:[%s331 + $0x4f] sm:$0xfe] %v3436
        %3461 = vst [vmem:[%s331 + $0x57] sm:$0xff] %v3437
        %3462 = vst [vmem:[%s331 + $0x5f] sm:$0x1] %v3438
        %3463 = vst [vmem:[%s331 + $0x5f] sm:$0xfe] %v3439
        %3464 = vst [vmem:[%s331 + $0x67] sm:$0xff] %v3440
        %3465 = vst [vmem:[%s331 + $0x6f] sm:$0x1] %v3441
        %3466 = vst [vmem:[%s331 + $0x6f] sm:$0xfe] %v3442
        %3467 = vst [vmem:[%s331 + $0x77] sm:$0xff] %v3443
        %3468 = vst [vmem:[%s331 + $0x7f] sm:$0x1] %v3444
        %s3469 = sand.u32 %s149, 1
        %s3470 = scalar_lea.sflag [#allocation4], %s3469
        %s3471 = sand.u32 %s149, 1
        %s3472 = smul.addr %s3471, 128
        %s3473 = scalar_lea.vmem [#allocation10], %s3472
        // Predicated region
        $region53: #{tpu_custom_call.1} parent=35 // pred_check
          %p3474 = pneg %p159
        $region54: #{tpu_custom_call.1} parent=35 // pred_check_branch
          %3476 = sbr.rel (%p3474) target = $region56
        $region55: #{tpu_custom_call.1} parent=35 // pred_region
          %s3477 = smul.u32 8, %s30
          %3479 = vsyncadd %s3470, 0
          %s3480 = smul.addr %s3477, 2
          %s3481 = smul.addr %s29, 32
          %s3482 = sadd.s32 %s3480, %s3481
          %s3483 = smul.addr %s3482, 8
          %s3484 = scalar_lea.hbm %s4, %s3483
          %s3485 = sshll.u32 %s3473, 4
          %s3486 = int_to_ptr.vmem [resolvable:$true] %s3485
          %s3487 = sshll.u32 %s3484, 4
          %s3488 = int_to_ptr.hbm [resolvable:$true] %s3487
          %3493 = dma.vmem_to_hbm [thread:$0]  %s3486, 2048, %s3488, %s3470, 128, 128, 8
        $region56: #{tpu_custom_call.1} parent=35 // pred_fallthru
          _
      $region36: #{tpu_custom_call.1} parent=5 // pred_fallthru
        _
      %p3494 = scmp.le.s32.totalorder 2, %s20
      // Predicated region
      $region57: #{tpu_custom_call.1} parent=5 // pred_check
        %p3495 = pneg %p3494
      $region58: #{tpu_custom_call.1} parent=5 // pred_check_branch
        %3497 = sbr.rel (%p3495) target = $region60
      $region59: #{tpu_custom_call.1} parent=5 // pred_region
        %s3498 = ssub.s32 %s20, 2
        // Predicated region
        $region61: #{tpu_custom_call.1} parent=59 // pred_check
          %p3499 = pneg %p165
        $region62: #{tpu_custom_call.1} parent=59 // pred_check_branch
          %3501 = sbr.rel (%p3499) target = $region64
        $region63: #{tpu_custom_call.1} parent=59 // pred_region
          %s3502 = sand.u32 %s150, 1
          %s3503 = scalar_lea.sflag [#allocation4], %s3502
          %s3504 = sand.u32 %s150, 1
          %s3505 = smul.addr %s3504, 128
          %s3506 = scalar_lea.vmem [#allocation10], %s3505
          %3508 = dma.done %s3503, 2048
        $region64: #{tpu_custom_call.1} parent=59 // pred_fallthru
          _
      $region60: #{tpu_custom_call.1} parent=5 // pred_fallthru
        _
    $region6: #{tpu_custom_call.1} parent=1 // loop_footer
      %s24 = sadd.s32 1, %s20
    $region7: #{tpu_custom_call.1} parent=1 // loop_footer_branch
      %19 = sbr.rel target = $region3
    $region8: #{tpu_custom_call.1} parent=1 // loop_exit
      _
    %3509 = vsyncpa [#allocation3], 1
    %s3510 = scalar_lea.sflag [#allocation3], 1
    %3511 = vsyncpa %s3510, 1
    %3512 = vsyncpa [#allocation6], 1
    %s3513 = scalar_lea.sflag [#allocation6], 1
    %3514 = vsyncpa %s3513, 1
    %3515 = vsyncpa [#allocation9], 1
    %3516 = vsyncpa [#allocation4], 1
    %s3517 = scalar_lea.sflag [#allocation4], 1
    %3518 = vsyncpa %s3517, 1

</llo_original>
